<compile_context>
chip_gen: v7x
topology: tpu7x:2x2x1
jax: 0.10.0
libtpu: 0.0.40
codegen_flags: <defaults>
</compile_context>

<pallas_src>
import math
import functools

import jax
import jax.numpy as jnp
from jax.experimental import pallas as pl
from jax.experimental.pallas import tpu as pltpu

EPS = 1e-6          # LayerNormalization eps
NEG_SCALE = 1.0e9   # additive mask bias magnitude (masked_fill value)


def _encoder_block_kernel(ln_ref,            # SMEM (4,) [alpha1, beta1, alpha2, beta2]
                          x_ref,             # (Bb, S, D)  f32
                          mask_ref,          # (Bb, 1, S)  f32 key-padding (1=keep)
                          wqkv_ref,          # (D, 3D)     bf16  [Wq*(1/sqrt dk) | Wk | Wv]
                          wo_ref,            # (D, D)      bf16
                          bo_ref,            # (1, D)      f32
                          w1_ref,            # (D, F)      bf16
                          b1_ref,            # (1, F)      f32
                          w2_ref,            # (F, D)      bf16
                          b2_ref,            # (1, D)      f32
                          o_ref,             # (Bb, S, D)  f32
                          ctx_ref,           # scratch (Bb*S, D) bf16
                          *, num_heads: int):
    Bb, S, D = x_ref.shape
    d_k = D // num_heads
    R = Bb * S

    alpha1, beta1, alpha2, beta2 = ln_ref[0], ln_ref[1], ln_ref[2], ln_ref[3]

    def layer_norm(z, alpha, beta):
        # Matches the PyTorch LayerNormalization: unbiased std, (std + eps).
        mean = jnp.sum(z, axis=-1, keepdims=True) * (1.0 / D)
        c = z - mean
        var = jnp.sum(c * c, axis=-1, keepdims=True) * (1.0 / (D - 1))
        inv = pl.reciprocal(jnp.sqrt(var) + EPS, approx=False)   # exact for LN parity
        return alpha * c * inv + beta

    x = x_ref[...].reshape(R, D)                       # fold batch into GEMM rows

    # ---- residual connection 0: x + SelfAttention(LayerNorm(x)) -------------
    ln1 = layer_norm(x, alpha1, beta1)
    qkv = jnp.dot(ln1.astype(jnp.bfloat16), wqkv_ref[...],
                  preferred_element_type=jnp.float32)            # (R, 3D), one matmul
    qkv16 = qkv.astype(jnp.bfloat16)                             # single whole-tensor pack
    q = qkv16[:, :D]                                             # scale already folded in Wq
    k = qkv16[:, D:2 * D]
    v = qkv16[:, 2 * D:]

    # Additive key-padding bias, (Bb, 1, S); broadcast happens inside the add.
    bias = (mask_ref[...] - 1.0) * NEG_SCALE                     # keep -> 0, mask -> -1e9

    # Per-head attention (H small, static unroll), batched over the batch block.
    # Per-head contexts land in a bf16 scratch so the output projection is a
    # single K=D matmul against the full Wo.
    for h in range(num_heads):
        sl = slice(h * d_k, (h + 1) * d_k)
        qh = q[:, sl].reshape(Bb, S, d_k)
        kh = k[:, sl].reshape(Bb, S, d_k)
        vh = v[:, sl].reshape(Bb, S, d_k)

        s = jnp.einsum('bqd,bkd->bqk', qh, kh,
                       preferred_element_type=jnp.float32) + bias   # f32 scores
        m = jnp.max(s, axis=-1, keepdims=True)
        p = jnp.exp(s - m)
        p = p * pl.reciprocal(jnp.sum(p, axis=-1, keepdims=True), approx=True)

        ctx = jnp.einsum('bqk,bkd->bqd', p.astype(jnp.bfloat16), vh,
                         preferred_element_type=jnp.float32)          # (Bb, S, d_k)
        ctx_ref[:, sl] = ctx.reshape(R, d_k).astype(jnp.bfloat16)

    attn_out = jnp.dot(ctx_ref[...], wo_ref[...],
                       preferred_element_type=jnp.float32)            # ONE (R,D)@(D,D)
    x1 = x + attn_out + bo_ref[0]                      # dropout == identity (eval)

    # ---- residual connection 1: x1 + FFN(LayerNorm(x1)) ---------------------
    ln2 = layer_norm(x1, alpha2, beta2)
    hidden = jnp.maximum(
        jnp.dot(ln2.astype(jnp.bfloat16), w1_ref[...],
                preferred_element_type=jnp.float32) + b1_ref[0],
        0.0).astype(jnp.bfloat16)                      # fused bias + ReLU + bf16 cast
    ff = jnp.dot(hidden, w2_ref[...], preferred_element_type=jnp.float32) + b2_ref[0]
    x2 = x1 + ff                                       # dropout == identity (eval)

    o_ref[...] = x2.reshape(Bb, S, D)                  # lane-dense store (D multiple of 128)


def _tpu_vmem_bytes():
    try:
        return int(pltpu.get_tpu_info().vmem_capacity_bytes)
    except Exception:
        return 64 * 1024 * 1024      # conservative (v7x-sized) fallback


def _default_block_b(B, S, *, min_steps, target_rows=512):
    """Largest batch block (divisor of B) with ~target_rows GEMM rows per step."""
    best = 1
    for bb in range(2, B + 1):
        if B % bb == 0 and (B // bb) >= min_steps and bb * S <= target_rows:
            best = bb
    return best


def encoder_block(x, src_key_mask, params, *, num_heads, block_b=None):
    """x: (B, S, D) f32.  src_key_mask: (B, S) f32, 1 = keep / 0 = mask (key padding)."""
    B, S, D = x.shape
    F = params["w1"].shape[1]
    d_k = D // num_heads

    vmem_bytes = _tpu_vmem_bytes()
    # v7x exposes 64 MiB VMEM per TensorCore and has 2 TCs sharing the grid;
    # v5e/v6e (128 MiB) are single-core, so the grid is a sequential loop and
    # forcing extra steps only adds per-step overhead.
    likely_two_cores = vmem_bytes <= 64 * 1024 * 1024
    vmem_limit = int(min(vmem_bytes * 3 // 4, 100 * 1024 * 1024))

    if block_b is None:
        block_b = _default_block_b(B, S, min_steps=2 if likely_two_cores else 1)
    assert B % block_b == 0

    ln_params = jnp.array(
        [params["alpha1"], params["beta1"], params["alpha2"], params["beta2"]],
        dtype=jnp.float32)

    # Fused QKV weight, 1/sqrt(d_k) folded into the Wq columns; MXU operands
    # pre-cast to bf16 (f32 accumulation in-kernel).
    wqkv = jnp.concatenate(
        [params["wq"] * (1.0 / math.sqrt(d_k)), params["wk"], params["wv"]],
        axis=1).astype(jnp.bfloat16)                                  # (D, 3D)
    wo = params["wo"].astype(jnp.bfloat16)
    w1 = params["w1"].astype(jnp.bfloat16)
    w2 = params["w2"].astype(jnp.bfloat16)

    mask3 = src_key_mask.reshape(B, 1, S).astype(jnp.float32)

    kernel = functools.partial(_encoder_block_kernel, num_heads=num_heads)

    def build(single_buffer_weights):
        def full(shape, weight=False):
            idx = lambda i, _s=shape: (0,) * len(_s)
            if weight and single_buffer_weights:
                # Weights are grid-invariant: single-buffer them (halves their
                # VMEM footprint, which matters at real D/F on v7x's 64 MiB).
                return pl.BlockSpec(shape, idx, pipeline_mode=pl.Buffered(1))
            return pl.BlockSpec(shape, idx)

        return pl.pallas_call(
            kernel,
            out_shape=jax.ShapeDtypeStruct((B, S, D), jnp.float32),
            grid=(B // block_b,),
            in_specs=[
                pl.BlockSpec(memory_space=pltpu.MemorySpace.SMEM),        # layernorm scalars
                pl.BlockSpec((block_b, S, D), lambda i: (i, 0, 0)),       # x
                pl.BlockSpec((block_b, 1, S), lambda i: (i, 0, 0)),       # key-padding mask
                full((D, 3 * D), weight=True),                            # Wqkv (bf16)
                full((D, D), weight=True),                                # Wo   (bf16)
                full((1, D)),                                             # bo
                full((D, F), weight=True),                                # W1   (bf16)
                full((1, F)),                                             # b1
                full((F, D), weight=True),                                # W2   (bf16)
                full((1, D)),                                             # b2
            ],
            out_specs=pl.BlockSpec((block_b, S, D), lambda i: (i, 0, 0)),
            scratch_shapes=[pltpu.VMEM((block_b * S, D), jnp.bfloat16)],  # per-head ctx slab
            compiler_params=pltpu.CompilerParams(
                dimension_semantics=("parallel",),
                vmem_limit_bytes=vmem_limit),
        )

    args = (ln_params, x, mask3, wqkv, wo, params["bo"], w1, params["b1"],
            w2, params["b2"])
    try:
        return build(single_buffer_weights=True)(*args)
    except Exception:
        # TODO(synk): pl.Buffered(1) single-buffered weight blocks not supported
        # on this jax/Mosaic version; fall back to default double buffering.
        return build(single_buffer_weights=False)(*args)


def _reference(x, src_key_mask, params, *, num_heads):
    """Pure-JAX f32 reference mirroring the PyTorch forward (eval mode)."""
    B, S, D = x.shape
    d_k = D // num_heads

    def layer_norm(z, alpha, beta):
        mean = jnp.mean(z, axis=-1, keepdims=True)
        std = jnp.sqrt(jnp.sum((z - mean) ** 2, axis=-1, keepdims=True) / (D - 1))
        return alpha * (z - mean) / (std + EPS) + beta

    ln1 = layer_norm(x, params["alpha1"], params["beta1"])
    q = (ln1 @ params["wq"]).reshape(B, S, num_heads, d_k).transpose(0, 2, 1, 3)
    k = (ln1 @ params["wk"]).reshape(B, S, num_heads, d_k).transpose(0, 2, 1, 3)
    v = (ln1 @ params["wv"]).reshape(B, S, num_heads, d_k).transpose(0, 2, 1, 3)
    scores = (q @ jnp.swapaxes(k, -2, -1)) / math.sqrt(d_k)
    scores = jnp.where(src_key_mask[:, None, None, :] == 0, -NEG_SCALE, scores)
    attn = jax.nn.softmax(scores, axis=-1)
    ctx = (attn @ v).transpose(0, 2, 1, 3).reshape(B, S, D)
    x1 = x + (ctx @ params["wo"] + params["bo"][0])

    ln2 = layer_norm(x1, params["alpha2"], params["beta2"])
    ff = jnp.maximum(ln2 @ params["w1"] + params["b1"][0], 0.0) @ params["w2"] + params["b2"][0]
    return x1 + ff


if __name__ == "__main__":
    # batch, seq, d_model, heads, d_ff — d_model a multiple of 128 (lane-dense).
    B, S, D, H, F = 2, 8, 128, 4, 256

    key = jax.random.PRNGKey(0)
    ks = jax.random.split(key, 10)

    params = {
        # Linear weights stored as (in_features, out_features)  (x @ W == PyTorch x @ W.T).
        "wq": jax.random.normal(ks[0], (D, D), jnp.float32) * 0.05,
        "wk": jax.random.normal(ks[1], (D, D), jnp.float32) * 0.05,
        "wv": jax.random.normal(ks[2], (D, D), jnp.float32) * 0.05,
        "wo": jax.random.normal(ks[3], (D, D), jnp.float32) * 0.05,
        "bo": jax.random.normal(ks[4], (1, D), jnp.float32) * 0.05,
        "w1": jax.random.normal(ks[5], (D, F), jnp.float32) * 0.05,
        "b1": jax.random.normal(ks[6], (1, F), jnp.float32) * 0.05,
        "w2": jax.random.normal(ks[7], (F, D), jnp.float32) * 0.05,
        "b2": jax.random.normal(ks[8], (1, D), jnp.float32) * 0.05,
        # LayerNormalization scalars (learnable; non-default values to exercise them).
        "alpha1": 1.05, "beta1": 0.02,
        "alpha2": 0.97, "beta2": -0.01,
    }

    x = jax.random.normal(ks[9], (B, S, D), jnp.float32)
    # Key-padding mask: last 2 key positions masked out for batch 1.
    key_mask = jnp.ones((B, S), jnp.float32).at[1, S - 2:].set(0.0)

    out = jax.block_until_ready(encoder_block(x, key_mask, params, num_heads=H))
    ref = _reference(x, key_mask, params, num_heads=H)

    assert out.shape == (B, S, D)
    # bf16 MXU operands + approx softmax reciprocal vs. full-f32 reference => relaxed tolerance.
    max_err = float(jnp.max(jnp.abs(out - ref)))
    assert jnp.allclose(out, ref, atol=3e-2, rtol=3e-2), f"mismatch vs reference, max|err|={max_err}"

    print("KERNEL_OK")
</pallas_src>

<mosaic_0001>
module attributes {stable_mosaic.version = 11 : i64} {
  func.func @_encoder_block_kernel(%arg0: i32, %arg1: memref<4xf32, #tpu.memory_space<smem>>, %arg2: memref<1x8x128xf32, #tpu.memory_space<vmem>>, %arg3: memref<1x1x8xf32, #tpu.memory_space<vmem>>, %arg4: memref<128x384xbf16, #tpu.memory_space<vmem>>, %arg5: memref<128x128xbf16, #tpu.memory_space<vmem>>, %arg6: memref<1x128xf32, #tpu.memory_space<vmem>>, %arg7: memref<128x256xbf16, #tpu.memory_space<vmem>>, %arg8: memref<1x256xf32, #tpu.memory_space<vmem>>, %arg9: memref<256x128xbf16, #tpu.memory_space<vmem>>, %arg10: memref<1x128xf32, #tpu.memory_space<vmem>>, %arg11: memref<1x8x128xf32, #tpu.memory_space<vmem>>, %arg12: memref<8x128xbf16, #tpu.memory_space<vmem>>) attributes {dimension_semantics = [#tpu.dimension_semantics<parallel>], iteration_bounds = array<i64: 2>, scalar_prefetch = 0 : i64, scratch_operands = 1 : i64, tpu.core_type = #tpu.core_type<tc>, window_params = [{transform_indices = @transform_0, window_bounds = array<i64: 4>}, {transform_indices = @transform_1, window_bounds = array<i64: 1, 8, 128>}, {transform_indices = @transform_2, window_bounds = array<i64: 1, 1, 8>}, {pipeline_mode = #tpu.pipeline_mode<synchronous>, transform_indices = @transform_3, window_bounds = array<i64: 128, 384>}, {pipeline_mode = #tpu.pipeline_mode<synchronous>, transform_indices = @transform_4, window_bounds = array<i64: 128, 128>}, {pipeline_mode = #tpu.pipeline_mode<synchronous>, transform_indices = @transform_5, window_bounds = array<i64: 1, 128>}, {pipeline_mode = #tpu.pipeline_mode<synchronous>, transform_indices = @transform_6, window_bounds = array<i64: 128, 256>}, {pipeline_mode = #tpu.pipeline_mode<synchronous>, transform_indices = @transform_7, window_bounds = array<i64: 1, 256>}, {pipeline_mode = #tpu.pipeline_mode<synchronous>, transform_indices = @transform_8, window_bounds = array<i64: 256, 128>}, {pipeline_mode = #tpu.pipeline_mode<synchronous>, transform_indices = @transform_9, window_bounds = array<i64: 1, 128>}, {transform_indices = @transform_10, window_bounds = array<i64: 1, 8, 128>}]} {
    %c0 = arith.constant 0 : index
    %0 = memref.load %arg1[%c0] : memref<4xf32, #tpu.memory_space<smem>>
    %c1 = arith.constant 1 : index
    %1 = memref.load %arg1[%c1] : memref<4xf32, #tpu.memory_space<smem>>
    %c2 = arith.constant 2 : index
    %2 = memref.load %arg1[%c2] : memref<4xf32, #tpu.memory_space<smem>>
    %c3 = arith.constant 3 : index
    %3 = memref.load %arg1[%c3] : memref<4xf32, #tpu.memory_space<smem>>
    %c0_0 = arith.constant 0 : index
    %c0_1 = arith.constant 0 : index
    %c0_2 = arith.constant 0 : index
    %4 = vector.load %arg2[%c0_0, %c0_1, %c0_2] : memref<1x8x128xf32, #tpu.memory_space<vmem>>, vector<1x8x128xf32>
    %5 = vector.shape_cast %4 : vector<1x8x128xf32> to vector<8x128xf32>
    %cst = arith.constant dense<0.000000e+00> : vector<8xf32>
    %6 = vector.multi_reduction <add>, %5, %cst [1] : vector<8x128xf32> to vector<8xf32>
    %7 = vector.shape_cast %6 : vector<8xf32> to vector<8x1xf32>
    %cst_3 = arith.constant 7.812500e-03 : f32
    %8 = vector.broadcast %cst_3 : f32 to vector<8x1xf32>
    %9 = arith.mulf %7, %8 : vector<8x1xf32>
    %10 = vector.broadcast %9 : vector<8x1xf32> to vector<8x128xf32>
    %11 = arith.subf %5, %10 : vector<8x128xf32>
    %12 = arith.mulf %11, %11 : vector<8x128xf32>
    %cst_4 = arith.constant dense<0.000000e+00> : vector<8xf32>
    %13 = vector.multi_reduction <add>, %12, %cst_4 [1] : vector<8x128xf32> to vector<8xf32>
    %14 = vector.shape_cast %13 : vector<8xf32> to vector<8x1xf32>
    %cst_5 = arith.constant 0.00787401571 : f32
    %15 = vector.broadcast %cst_5 : f32 to vector<8x1xf32>
    %16 = arith.mulf %14, %15 : vector<8x1xf32>
    %17 = math.sqrt %16 : vector<8x1xf32>
    %cst_6 = arith.constant 9.99999997E-7 : f32
    %18 = vector.broadcast %cst_6 : f32 to vector<8x1xf32>
    %19 = arith.addf %17, %18 : vector<8x1xf32>
    %20 = tpu.reciprocal %19 : vector<8x1xf32> -> vector<8x1xf32>
    %21 = vector.broadcast %0 : f32 to vector<8x128xf32>
    %22 = arith.mulf %21, %11 : vector<8x128xf32>
    %23 = vector.broadcast %20 : vector<8x1xf32> to vector<8x128xf32>
    %24 = arith.mulf %22, %23 : vector<8x128xf32>
    %25 = vector.broadcast %1 : f32 to vector<8x128xf32>
    %26 = arith.addf %24, %25 : vector<8x128xf32>
    %27 = arith.truncf %26 : vector<8x128xf32> to vector<8x128xbf16>
    %c0_7 = arith.constant 0 : index
    %c0_8 = arith.constant 0 : index
    %28 = vector.load %arg4[%c0_7, %c0_8] : memref<128x384xbf16, #tpu.memory_space<vmem>>, vector<128x384xbf16>
    %cst_9 = arith.constant dense<0.000000e+00> : vector<8x384xf32>
    %29 = tpu.matmul %27, %28, %cst_9 {dimension_numbers = #tpu.dot_dimension_numbers<[1], [0], [0], [1], [0, 0, 1, 1], [], []>} : vector<8x128xbf16>, vector<128x384xbf16>, vector<8x384xf32> -> vector<8x384xf32>
    %30 = arith.truncf %29 : vector<8x384xf32> to vector<8x384xbf16>
    %31 = vector.extract_strided_slice %30 {offsets = [0, 0], sizes = [8, 128], strides = [1, 1]} : vector<8x384xbf16> to vector<8x128xbf16>
    %32 = vector.extract_strided_slice %30 {offsets = [0, 128], sizes = [8, 128], strides = [1, 1]} : vector<8x384xbf16> to vector<8x128xbf16>
    %33 = vector.extract_strided_slice %30 {offsets = [0, 256], sizes = [8, 128], strides = [1, 1]} : vector<8x384xbf16> to vector<8x128xbf16>
    %c0_10 = arith.constant 0 : index
    %c0_11 = arith.constant 0 : index
    %c0_12 = arith.constant 0 : index
    %34 = vector.load %arg3[%c0_10, %c0_11, %c0_12] : memref<1x1x8xf32, #tpu.memory_space<vmem>>, vector<1x1x8xf32>
    %cst_13 = arith.constant 1.000000e+00 : f32
    %35 = vector.broadcast %cst_13 : f32 to vector<1x1x8xf32>
    %36 = arith.subf %34, %35 : vector<1x1x8xf32>
    %cst_14 = arith.constant 1.000000e+09 : f32
    %37 = vector.broadcast %cst_14 : f32 to vector<1x1x8xf32>
    %38 = arith.mulf %36, %37 : vector<1x1x8xf32>
    %39 = vector.extract_strided_slice %31 {offsets = [0, 0], sizes = [8, 32], strides = [1, 1]} : vector<8x128xbf16> to vector<8x32xbf16>
    %40 = vector.shape_cast %39 : vector<8x32xbf16> to vector<1x8x32xbf16>
    %41 = vector.extract_strided_slice %32 {offsets = [0, 0], sizes = [8, 32], strides = [1, 1]} : vector<8x128xbf16> to vector<8x32xbf16>
    %42 = vector.shape_cast %41 : vector<8x32xbf16> to vector<1x8x32xbf16>
    %43 = vector.extract_strided_slice %33 {offsets = [0, 0], sizes = [8, 32], strides = [1, 1]} : vector<8x128xbf16> to vector<8x32xbf16>
    %44 = vector.shape_cast %43 : vector<8x32xbf16> to vector<1x8x32xbf16>
    "tpu.trace_start"() <{level = 10 : i32, message = "bqd,bkd->bqk"}> : () -> ()
    %cst_15 = arith.constant dense<0.000000e+00> : vector<1x8x8xf32>
    %45 = tpu.matmul %40, %42, %cst_15 {dimension_numbers = #tpu.dot_dimension_numbers<[2], [2], [1], [1], [0, 0, 0, 1, 1, 1], [0], [0]>} : vector<1x8x32xbf16>, vector<1x8x32xbf16>, vector<1x8x8xf32> -> vector<1x8x8xf32>
    "tpu.trace_stop"() : () -> ()
    %46 = vector.broadcast %38 : vector<1x1x8xf32> to vector<1x8x8xf32>
    %47 = arith.addf %45, %46 : vector<1x8x8xf32>
    %cst_16 = arith.constant dense<0xFF800000> : vector<1x8xf32>
    %48 = vector.multi_reduction <maximumf>, %47, %cst_16 [2] : vector<1x8x8xf32> to vector<1x8xf32>
    %49 = vector.shape_cast %48 : vector<1x8xf32> to vector<1x8x1xf32>
    %50 = vector.broadcast %49 : vector<1x8x1xf32> to vector<1x8x8xf32>
    %51 = arith.subf %47, %50 : vector<1x8x8xf32>
    %52 = math.exp %51 : vector<1x8x8xf32>
    %cst_17 = arith.constant dense<0.000000e+00> : vector<1x8xf32>
    %53 = vector.multi_reduction <add>, %52, %cst_17 [2] : vector<1x8x8xf32> to vector<1x8xf32>
    %54 = vector.shape_cast %53 : vector<1x8xf32> to vector<1x8x1xf32>
    %55 = tpu.reciprocal %54 {approx = true} : vector<1x8x1xf32> -> vector<1x8x1xf32>
    %56 = vector.broadcast %55 : vector<1x8x1xf32> to vector<1x8x8xf32>
    %57 = arith.mulf %52, %56 : vector<1x8x8xf32>
    %58 = arith.truncf %57 : vector<1x8x8xf32> to vector<1x8x8xbf16>
    "tpu.trace_start"() <{level = 10 : i32, message = "bqk,bkd->bqd"}> : () -> ()
    %cst_18 = arith.constant dense<0.000000e+00> : vector<1x8x32xf32>
    %59 = tpu.matmul %58, %44, %cst_18 {dimension_numbers = #tpu.dot_dimension_numbers<[2], [1], [1], [2], [0, 0, 0, 1, 1, 2], [0], [0]>} : vector<1x8x8xbf16>, vector<1x8x32xbf16>, vector<1x8x32xf32> -> vector<1x8x32xf32>
    "tpu.trace_stop"() : () -> ()
    %60 = vector.shape_cast %59 : vector<1x8x32xf32> to vector<8x32xf32>
    %61 = arith.truncf %60 : vector<8x32xf32> to vector<8x32xbf16>
    %c0_19 = arith.constant 0 : index
    %c0_20 = arith.constant 0 : index
    %62 = vector.load %arg12[%c0_19, %c0_20] : memref<8x128xbf16, #tpu.memory_space<vmem>>, vector<8x32xbf16>
    tpu.vector_store %arg12[%c0_19, %c0_20], %61 {strides = array<i32>} : memref<8x128xbf16, #tpu.memory_space<vmem>>, vector<8x32xbf16>,
    %63 = vector.extract_strided_slice %31 {offsets = [0, 32], sizes = [8, 32], strides = [1, 1]} : vector<8x128xbf16> to vector<8x32xbf16>
    %64 = vector.shape_cast %63 : vector<8x32xbf16> to vector<1x8x32xbf16>
    %65 = vector.extract_strided_slice %32 {offsets = [0, 32], sizes = [8, 32], strides = [1, 1]} : vector<8x128xbf16> to vector<8x32xbf16>
    %66 = vector.shape_cast %65 : vector<8x32xbf16> to vector<1x8x32xbf16>
    %67 = vector.extract_strided_slice %33 {offsets = [0, 32], sizes = [8, 32], strides = [1, 1]} : vector<8x128xbf16> to vector<8x32xbf16>
    %68 = vector.shape_cast %67 : vector<8x32xbf16> to vector<1x8x32xbf16>
    "tpu.trace_start"() <{level = 10 : i32, message = "bqd,bkd->bqk"}> : () -> ()
    %cst_21 = arith.constant dense<0.000000e+00> : vector<1x8x8xf32>
    %69 = tpu.matmul %64, %66, %cst_21 {dimension_numbers = #tpu.dot_dimension_numbers<[2], [2], [1], [1], [0, 0, 0, 1, 1, 1], [0], [0]>} : vector<1x8x32xbf16>, vector<1x8x32xbf16>, vector<1x8x8xf32> -> vector<1x8x8xf32>
    "tpu.trace_stop"() : () -> ()
    %70 = vector.broadcast %38 : vector<1x1x8xf32> to vector<1x8x8xf32>
    %71 = arith.addf %69, %70 : vector<1x8x8xf32>
    %cst_22 = arith.constant dense<0xFF800000> : vector<1x8xf32>
    %72 = vector.multi_reduction <maximumf>, %71, %cst_22 [2] : vector<1x8x8xf32> to vector<1x8xf32>
    %73 = vector.shape_cast %72 : vector<1x8xf32> to vector<1x8x1xf32>
    %74 = vector.broadcast %73 : vector<1x8x1xf32> to vector<1x8x8xf32>
    %75 = arith.subf %71, %74 : vector<1x8x8xf32>
    %76 = math.exp %75 : vector<1x8x8xf32>
    %cst_23 = arith.constant dense<0.000000e+00> : vector<1x8xf32>
    %77 = vector.multi_reduction <add>, %76, %cst_23 [2] : vector<1x8x8xf32> to vector<1x8xf32>
    %78 = vector.shape_cast %77 : vector<1x8xf32> to vector<1x8x1xf32>
    %79 = tpu.reciprocal %78 {approx = true} : vector<1x8x1xf32> -> vector<1x8x1xf32>
    %80 = vector.broadcast %79 : vector<1x8x1xf32> to vector<1x8x8xf32>
    %81 = arith.mulf %76, %80 : vector<1x8x8xf32>
    %82 = arith.truncf %81 : vector<1x8x8xf32> to vector<1x8x8xbf16>
    "tpu.trace_start"() <{level = 10 : i32, message = "bqk,bkd->bqd"}> : () -> ()
    %cst_24 = arith.constant dense<0.000000e+00> : vector<1x8x32xf32>
    %83 = tpu.matmul %82, %68, %cst_24 {dimension_numbers = #tpu.dot_dimension_numbers<[2], [1], [1], [2], [0, 0, 0, 1, 1, 2], [0], [0]>} : vector<1x8x8xbf16>, vector<1x8x32xbf16>, vector<1x8x32xf32> -> vector<1x8x32xf32>
    "tpu.trace_stop"() : () -> ()
    %84 = vector.shape_cast %83 : vector<1x8x32xf32> to vector<8x32xf32>
    %85 = arith.truncf %84 : vector<8x32xf32> to vector<8x32xbf16>
    %c0_25 = arith.constant 0 : index
    %c32 = arith.constant 32 : index
    %86 = vector.load %arg12[%c0_25, %c32] : memref<8x128xbf16, #tpu.memory_space<vmem>>, vector<8x32xbf16>
    tpu.vector_store %arg12[%c0_25, %c32], %85 {strides = array<i32>} : memref<8x128xbf16, #tpu.memory_space<vmem>>, vector<8x32xbf16>,
    %87 = vector.extract_strided_slice %31 {offsets = [0, 64], sizes = [8, 32], strides = [1, 1]} : vector<8x128xbf16> to vector<8x32xbf16>
    %88 = vector.shape_cast %87 : vector<8x32xbf16> to vector<1x8x32xbf16>
    %89 = vector.extract_strided_slice %32 {offsets = [0, 64], sizes = [8, 32], strides = [1, 1]} : vector<8x128xbf16> to vector<8x32xbf16>
    %90 = vector.shape_cast %89 : vector<8x32xbf16> to vector<1x8x32xbf16>
    %91 = vector.extract_strided_slice %33 {offsets = [0, 64], sizes = [8, 32], strides = [1, 1]} : vector<8x128xbf16> to vector<8x32xbf16>
    %92 = vector.shape_cast %91 : vector<8x32xbf16> to vector<1x8x32xbf16>
    "tpu.trace_start"() <{level = 10 : i32, message = "bqd,bkd->bqk"}> : () -> ()
    %cst_26 = arith.constant dense<0.000000e+00> : vector<1x8x8xf32>
    %93 = tpu.matmul %88, %90, %cst_26 {dimension_numbers = #tpu.dot_dimension_numbers<[2], [2], [1], [1], [0, 0, 0, 1, 1, 1], [0], [0]>} : vector<1x8x32xbf16>, vector<1x8x32xbf16>, vector<1x8x8xf32> -> vector<1x8x8xf32>
    "tpu.trace_stop"() : () -> ()
    %94 = vector.broadcast %38 : vector<1x1x8xf32> to vector<1x8x8xf32>
    %95 = arith.addf %93, %94 : vector<1x8x8xf32>
    %cst_27 = arith.constant dense<0xFF800000> : vector<1x8xf32>
    %96 = vector.multi_reduction <maximumf>, %95, %cst_27 [2] : vector<1x8x8xf32> to vector<1x8xf32>
    %97 = vector.shape_cast %96 : vector<1x8xf32> to vector<1x8x1xf32>
    %98 = vector.broadcast %97 : vector<1x8x1xf32> to vector<1x8x8xf32>
    %99 = arith.subf %95, %98 : vector<1x8x8xf32>
    %100 = math.exp %99 : vector<1x8x8xf32>
    %cst_28 = arith.constant dense<0.000000e+00> : vector<1x8xf32>
    %101 = vector.multi_reduction <add>, %100, %cst_28 [2] : vector<1x8x8xf32> to vector<1x8xf32>
    %102 = vector.shape_cast %101 : vector<1x8xf32> to vector<1x8x1xf32>
    %103 = tpu.reciprocal %102 {approx = true} : vector<1x8x1xf32> -> vector<1x8x1xf32>
    %104 = vector.broadcast %103 : vector<1x8x1xf32> to vector<1x8x8xf32>
    %105 = arith.mulf %100, %104 : vector<1x8x8xf32>
    %106 = arith.truncf %105 : vector<1x8x8xf32> to vector<1x8x8xbf16>
    "tpu.trace_start"() <{level = 10 : i32, message = "bqk,bkd->bqd"}> : () -> ()
    %cst_29 = arith.constant dense<0.000000e+00> : vector<1x8x32xf32>
    %107 = tpu.matmul %106, %92, %cst_29 {dimension_numbers = #tpu.dot_dimension_numbers<[2], [1], [1], [2], [0, 0, 0, 1, 1, 2], [0], [0]>} : vector<1x8x8xbf16>, vector<1x8x32xbf16>, vector<1x8x32xf32> -> vector<1x8x32xf32>
    "tpu.trace_stop"() : () -> ()
    %108 = vector.shape_cast %107 : vector<1x8x32xf32> to vector<8x32xf32>
    %109 = arith.truncf %108 : vector<8x32xf32> to vector<8x32xbf16>
    %c0_30 = arith.constant 0 : index
    %c64 = arith.constant 64 : index
    %110 = vector.load %arg12[%c0_30, %c64] : memref<8x128xbf16, #tpu.memory_space<vmem>>, vector<8x32xbf16>
    tpu.vector_store %arg12[%c0_30, %c64], %109 {strides = array<i32>} : memref<8x128xbf16, #tpu.memory_space<vmem>>, vector<8x32xbf16>,
    %111 = vector.extract_strided_slice %31 {offsets = [0, 96], sizes = [8, 32], strides = [1, 1]} : vector<8x128xbf16> to vector<8x32xbf16>
    %112 = vector.shape_cast %111 : vector<8x32xbf16> to vector<1x8x32xbf16>
    %113 = vector.extract_strided_slice %32 {offsets = [0, 96], sizes = [8, 32], strides = [1, 1]} : vector<8x128xbf16> to vector<8x32xbf16>
    %114 = vector.shape_cast %113 : vector<8x32xbf16> to vector<1x8x32xbf16>
    %115 = vector.extract_strided_slice %33 {offsets = [0, 96], sizes = [8, 32], strides = [1, 1]} : vector<8x128xbf16> to vector<8x32xbf16>
    %116 = vector.shape_cast %115 : vector<8x32xbf16> to vector<1x8x32xbf16>
    "tpu.trace_start"() <{level = 10 : i32, message = "bqd,bkd->bqk"}> : () -> ()
    %cst_31 = arith.constant dense<0.000000e+00> : vector<1x8x8xf32>
    %117 = tpu.matmul %112, %114, %cst_31 {dimension_numbers = #tpu.dot_dimension_numbers<[2], [2], [1], [1], [0, 0, 0, 1, 1, 1], [0], [0]>} : vector<1x8x32xbf16>, vector<1x8x32xbf16>, vector<1x8x8xf32> -> vector<1x8x8xf32>
    "tpu.trace_stop"() : () -> ()
    %118 = vector.broadcast %38 : vector<1x1x8xf32> to vector<1x8x8xf32>
    %119 = arith.addf %117, %118 : vector<1x8x8xf32>
    %cst_32 = arith.constant dense<0xFF800000> : vector<1x8xf32>
    %120 = vector.multi_reduction <maximumf>, %119, %cst_32 [2] : vector<1x8x8xf32> to vector<1x8xf32>
    %121 = vector.shape_cast %120 : vector<1x8xf32> to vector<1x8x1xf32>
    %122 = vector.broadcast %121 : vector<1x8x1xf32> to vector<1x8x8xf32>
    %123 = arith.subf %119, %122 : vector<1x8x8xf32>
    %124 = math.exp %123 : vector<1x8x8xf32>
    %cst_33 = arith.constant dense<0.000000e+00> : vector<1x8xf32>
    %125 = vector.multi_reduction <add>, %124, %cst_33 [2] : vector<1x8x8xf32> to vector<1x8xf32>
    %126 = vector.shape_cast %125 : vector<1x8xf32> to vector<1x8x1xf32>
    %127 = tpu.reciprocal %126 {approx = true} : vector<1x8x1xf32> -> vector<1x8x1xf32>
    %128 = vector.broadcast %127 : vector<1x8x1xf32> to vector<1x8x8xf32>
    %129 = arith.mulf %124, %128 : vector<1x8x8xf32>
    %130 = arith.truncf %129 : vector<1x8x8xf32> to vector<1x8x8xbf16>
    "tpu.trace_start"() <{level = 10 : i32, message = "bqk,bkd->bqd"}> : () -> ()
    %cst_34 = arith.constant dense<0.000000e+00> : vector<1x8x32xf32>
    %131 = tpu.matmul %130, %116, %cst_34 {dimension_numbers = #tpu.dot_dimension_numbers<[2], [1], [1], [2], [0, 0, 0, 1, 1, 2], [0], [0]>} : vector<1x8x8xbf16>, vector<1x8x32xbf16>, vector<1x8x32xf32> -> vector<1x8x32xf32>
    "tpu.trace_stop"() : () -> ()
    %132 = vector.shape_cast %131 : vector<1x8x32xf32> to vector<8x32xf32>
    %133 = arith.truncf %132 : vector<8x32xf32> to vector<8x32xbf16>
    %c0_35 = arith.constant 0 : index
    %c96 = arith.constant 96 : index
    %134 = vector.load %arg12[%c0_35, %c96] : memref<8x128xbf16, #tpu.memory_space<vmem>>, vector<8x32xbf16>
    tpu.vector_store %arg12[%c0_35, %c96], %133 {strides = array<i32>} : memref<8x128xbf16, #tpu.memory_space<vmem>>, vector<8x32xbf16>,
    %c0_36 = arith.constant 0 : index
    %c0_37 = arith.constant 0 : index
    %135 = vector.load %arg12[%c0_36, %c0_37] : memref<8x128xbf16, #tpu.memory_space<vmem>>, vector<8x128xbf16>
    %c0_38 = arith.constant 0 : index
    %c0_39 = arith.constant 0 : index
    %136 = vector.load %arg5[%c0_38, %c0_39] : memref<128x128xbf16, #tpu.memory_space<vmem>>, vector<128x128xbf16>
    %cst_40 = arith.constant dense<0.000000e+00> : vector<8x128xf32>
    %137 = tpu.matmul %135, %136, %cst_40 {dimension_numbers = #tpu.dot_dimension_numbers<[1], [0], [0], [1], [0, 0, 1, 1], [], []>} : vector<8x128xbf16>, vector<128x128xbf16>, vector<8x128xf32> -> vector<8x128xf32>
    %138 = arith.addf %5, %137 : vector<8x128xf32>
    %c0_41 = arith.constant 0 : index
    %c0_42 = arith.constant 0 : index
    %139 = vector.load %arg6[%c0_41, %c0_42] : memref<1x128xf32, #tpu.memory_space<vmem>>, vector<1x128xf32>
    %140 = vector.shape_cast %139 : vector<1x128xf32> to vector<128xf32>
    %141 = vector.shape_cast %140 : vector<128xf32> to vector<1x128xf32>
    %142 = vector.broadcast %141 : vector<1x128xf32> to vector<8x128xf32>
    %143 = arith.addf %138, %142 : vector<8x128xf32>
    %cst_43 = arith.constant dense<0.000000e+00> : vector<8xf32>
    %144 = vector.multi_reduction <add>, %143, %cst_43 [1] : vector<8x128xf32> to vector<8xf32>
    %145 = vector.shape_cast %144 : vector<8xf32> to vector<8x1xf32>
    %cst_44 = arith.constant 7.812500e-03 : f32
    %146 = vector.broadcast %cst_44 : f32 to vector<8x1xf32>
    %147 = arith.mulf %145, %146 : vector<8x1xf32>
    %148 = vector.broadcast %147 : vector<8x1xf32> to vector<8x128xf32>
    %149 = arith.subf %143, %148 : vector<8x128xf32>
    %150 = arith.mulf %149, %149 : vector<8x128xf32>
    %cst_45 = arith.constant dense<0.000000e+00> : vector<8xf32>
    %151 = vector.multi_reduction <add>, %150, %cst_45 [1] : vector<8x128xf32> to vector<8xf32>
    %152 = vector.shape_cast %151 : vector<8xf32> to vector<8x1xf32>
    %cst_46 = arith.constant 0.00787401571 : f32
    %153 = vector.broadcast %cst_46 : f32 to vector<8x1xf32>
    %154 = arith.mulf %152, %153 : vector<8x1xf32>
    %155 = math.sqrt %154 : vector<8x1xf32>
    %cst_47 = arith.constant 9.99999997E-7 : f32
    %156 = vector.broadcast %cst_47 : f32 to vector<8x1xf32>
    %157 = arith.addf %155, %156 : vector<8x1xf32>
    %158 = tpu.reciprocal %157 : vector<8x1xf32> -> vector<8x1xf32>
    %159 = vector.broadcast %2 : f32 to vector<8x128xf32>
    %160 = arith.mulf %159, %149 : vector<8x128xf32>
    %161 = vector.broadcast %158 : vector<8x1xf32> to vector<8x128xf32>
    %162 = arith.mulf %160, %161 : vector<8x128xf32>
    %163 = vector.broadcast %3 : f32 to vector<8x128xf32>
    %164 = arith.addf %162, %163 : vector<8x128xf32>
    %165 = arith.truncf %164 : vector<8x128xf32> to vector<8x128xbf16>
    %c0_48 = arith.constant 0 : index
    %c0_49 = arith.constant 0 : index
    %166 = vector.load %arg7[%c0_48, %c0_49] : memref<128x256xbf16, #tpu.memory_space<vmem>>, vector<128x256xbf16>
    %cst_50 = arith.constant dense<0.000000e+00> : vector<8x256xf32>
    %167 = tpu.matmul %165, %166, %cst_50 {dimension_numbers = #tpu.dot_dimension_numbers<[1], [0], [0], [1], [0, 0, 1, 1], [], []>} : vector<8x128xbf16>, vector<128x256xbf16>, vector<8x256xf32> -> vector<8x256xf32>
    %c0_51 = arith.constant 0 : index
    %c0_52 = arith.constant 0 : index
    %168 = vector.load %arg8[%c0_51, %c0_52] : memref<1x256xf32, #tpu.memory_space<vmem>>, vector<1x256xf32>
    %169 = vector.shape_cast %168 : vector<1x256xf32> to vector<256xf32>
    %170 = vector.shape_cast %169 : vector<256xf32> to vector<1x256xf32>
    %171 = vector.broadcast %170 : vector<1x256xf32> to vector<8x256xf32>
    %172 = arith.addf %167, %171 : vector<8x256xf32>
    %cst_53 = arith.constant 0.000000e+00 : f32
    %173 = vector.broadcast %cst_53 : f32 to vector<8x256xf32>
    %174 = arith.maximumf %172, %173 : vector<8x256xf32>
    %175 = arith.truncf %174 : vector<8x256xf32> to vector<8x256xbf16>
    %c0_54 = arith.constant 0 : index
    %c0_55 = arith.constant 0 : index
    %176 = vector.load %arg9[%c0_54, %c0_55] : memref<256x128xbf16, #tpu.memory_space<vmem>>, vector<256x128xbf16>
    %cst_56 = arith.constant dense<0.000000e+00> : vector<8x128xf32>
    %177 = tpu.matmul %175, %176, %cst_56 {dimension_numbers = #tpu.dot_dimension_numbers<[1], [0], [0], [1], [0, 0, 1, 1], [], []>} : vector<8x256xbf16>, vector<256x128xbf16>, vector<8x128xf32> -> vector<8x128xf32>
    %c0_57 = arith.constant 0 : index
    %c0_58 = arith.constant 0 : index
    %178 = vector.load %arg10[%c0_57, %c0_58] : memref<1x128xf32, #tpu.memory_space<vmem>>, vector<1x128xf32>
    %179 = vector.shape_cast %178 : vector<1x128xf32> to vector<128xf32>
    %180 = vector.shape_cast %179 : vector<128xf32> to vector<1x128xf32>
    %181 = vector.broadcast %180 : vector<1x128xf32> to vector<8x128xf32>
    %182 = arith.addf %177, %181 : vector<8x128xf32>
    %183 = arith.addf %143, %182 : vector<8x128xf32>
    %184 = vector.shape_cast %183 : vector<8x128xf32> to vector<1x8x128xf32>
    %c0_59 = arith.constant 0 : index
    %c0_60 = arith.constant 0 : index
    %c0_61 = arith.constant 0 : index
    %185 = vector.load %arg11[%c0_59, %c0_60, %c0_61] : memref<1x8x128xf32, #tpu.memory_space<vmem>>, vector<1x8x128xf32>
    tpu.vector_store %arg11[%c0_59, %c0_60, %c0_61], %184 {strides = array<i32>} : memref<1x8x128xf32, #tpu.memory_space<vmem>>, vector<1x8x128xf32>,
    return
  }
  func.func @transform_0(%arg0: i32) -> i32 {
    %c0_i32 = arith.constant 0 : i32
    %c0_i32_0 = arith.constant 0 : i32
    return %c0_i32 : i32
  }
  func.func @transform_1(%arg0: i32) -> (i32, i32, i32) {
    %c0_i32 = arith.constant 0 : i32
    %c0_i32_0 = arith.constant 0 : i32
    %c0_i32_1 = arith.constant 0 : i32
    return %arg0, %c0_i32, %c0_i32_0 : i32, i32, i32
  }
  func.func @transform_2(%arg0: i32) -> (i32, i32, i32) {
    %c0_i32 = arith.constant 0 : i32
    %c0_i32_0 = arith.constant 0 : i32
    %c0_i32_1 = arith.constant 0 : i32
    return %arg0, %c0_i32, %c0_i32_0 : i32, i32, i32
  }
  func.func @transform_3(%arg0: i32) -> (i32, i32) {
    %c0_i32 = arith.constant 0 : i32
    %c0_i32_0 = arith.constant 0 : i32
    %c0_i32_1 = arith.constant 0 : i32
    return %c0_i32, %c0_i32_0 : i32, i32
  }
  func.func @transform_4(%arg0: i32) -> (i32, i32) {
    %c0_i32 = arith.constant 0 : i32
    %c0_i32_0 = arith.constant 0 : i32
    %c0_i32_1 = arith.constant 0 : i32
    return %c0_i32, %c0_i32_0 : i32, i32
  }
  func.func @transform_5(%arg0: i32) -> (i32, i32) {
    %c0_i32 = arith.constant 0 : i32
    %c0_i32_0 = arith.constant 0 : i32
    %c0_i32_1 = arith.constant 0 : i32
    return %c0_i32, %c0_i32_0 : i32, i32
  }
  func.func @transform_6(%arg0: i32) -> (i32, i32) {
    %c0_i32 = arith.constant 0 : i32
    %c0_i32_0 = arith.constant 0 : i32
    %c0_i32_1 = arith.constant 0 : i32
    return %c0_i32, %c0_i32_0 : i32, i32
  }
  func.func @transform_7(%arg0: i32) -> (i32, i32) {
    %c0_i32 = arith.constant 0 : i32
    %c0_i32_0 = arith.constant 0 : i32
    %c0_i32_1 = arith.constant 0 : i32
    return %c0_i32, %c0_i32_0 : i32, i32
  }
  func.func @transform_8(%arg0: i32) -> (i32, i32) {
    %c0_i32 = arith.constant 0 : i32
    %c0_i32_0 = arith.constant 0 : i32
    %c0_i32_1 = arith.constant 0 : i32
    return %c0_i32, %c0_i32_0 : i32, i32
  }
  func.func @transform_9(%arg0: i32) -> (i32, i32) {
    %c0_i32 = arith.constant 0 : i32
    %c0_i32_0 = arith.constant 0 : i32
    %c0_i32_1 = arith.constant 0 : i32
    return %c0_i32, %c0_i32_0 : i32, i32
  }
  func.func @transform_10(%arg0: i32) -> (i32, i32, i32) {
    %c0_i32 = arith.constant 0 : i32
    %c0_i32_0 = arith.constant 0 : i32
    %c0_i32_1 = arith.constant 0 : i32
    return %arg0, %c0_i32, %c0_i32_0 : i32, i32, i32
  }
}

module attributes {stable_mosaic.version = 11 : i64} {
  func.func @_encoder_block_kernel(%arg0: i32, %arg1: memref<4xf32, #tpu.memory_space<smem>>, %arg2: memref<1x8x128xf32, #tpu.memory_space<vmem>>, %arg3: memref<1x1x8xf32, #tpu.memory_space<vmem>>, %arg4: memref<128x384xbf16, #tpu.memory_space<vmem>>, %arg5: memref<128x128xbf16, #tpu.memory_space<vmem>>, %arg6: memref<1x128xf32, #tpu.memory_space<vmem>>, %arg7: memref<128x256xbf16, #tpu.memory_space<vmem>>, %arg8: memref<1x256xf32, #tpu.memory_space<vmem>>, %arg9: memref<256x128xbf16, #tpu.memory_space<vmem>>, %arg10: memref<1x128xf32, #tpu.memory_space<vmem>>, %arg11: memref<1x8x128xf32, #tpu.memory_space<vmem>>, %arg12: memref<8x128xbf16, #tpu.memory_space<vmem>>) attributes {dimension_semantics = [#tpu.dimension_semantics<parallel>], iteration_bounds = array<i64: 2>, scalar_prefetch = 0 : i64, scratch_operands = 1 : i64, tpu.core_type = #tpu.core_type<tc>, window_params = [{transform_indices = @transform_0, window_bounds = array<i64: 4>}, {transform_indices = @transform_1, window_bounds = array<i64: 1, 8, 128>}, {transform_indices = @transform_2, window_bounds = array<i64: 1, 1, 8>}, {pipeline_mode = #tpu.pipeline_mode<synchronous>, transform_indices = @transform_3, window_bounds = array<i64: 128, 384>}, {pipeline_mode = #tpu.pipeline_mode<synchronous>, transform_indices = @transform_4, window_bounds = array<i64: 128, 128>}, {pipeline_mode = #tpu.pipeline_mode<synchronous>, transform_indices = @transform_5, window_bounds = array<i64: 1, 128>}, {pipeline_mode = #tpu.pipeline_mode<synchronous>, transform_indices = @transform_6, window_bounds = array<i64: 128, 256>}, {pipeline_mode = #tpu.pipeline_mode<synchronous>, transform_indices = @transform_7, window_bounds = array<i64: 1, 256>}, {pipeline_mode = #tpu.pipeline_mode<synchronous>, transform_indices = @transform_8, window_bounds = array<i64: 256, 128>}, {pipeline_mode = #tpu.pipeline_mode<synchronous>, transform_indices = @transform_9, window_bounds = array<i64: 1, 128>}, {transform_indices = @transform_10, window_bounds = array<i64: 1, 8, 128>}]} {
    %c0 = arith.constant 0 : index
    %0 = memref.load %arg1[%c0] : memref<4xf32, #tpu.memory_space<smem>>
    %c1 = arith.constant 1 : index
    %1 = memref.load %arg1[%c1] : memref<4xf32, #tpu.memory_space<smem>>
    %c2 = arith.constant 2 : index
    %2 = memref.load %arg1[%c2] : memref<4xf32, #tpu.memory_space<smem>>
    %c3 = arith.constant 3 : index
    %3 = memref.load %arg1[%c3] : memref<4xf32, #tpu.memory_space<smem>>
    %c0_0 = arith.constant 0 : index
    %c0_1 = arith.constant 0 : index
    %c0_2 = arith.constant 0 : index
    %4 = vector.load %arg2[%c0_0, %c0_1, %c0_2] : memref<1x8x128xf32, #tpu.memory_space<vmem>>, vector<1x8x128xf32>
    %5 = vector.shape_cast %4 : vector<1x8x128xf32> to vector<8x128xf32>
    %cst = arith.constant dense<0.000000e+00> : vector<8xf32>
    %6 = vector.multi_reduction <add>, %5, %cst [1] : vector<8x128xf32> to vector<8xf32>
    %7 = vector.shape_cast %6 : vector<8xf32> to vector<8x1xf32>
    %cst_3 = arith.constant 7.812500e-03 : f32
    %8 = vector.broadcast %cst_3 : f32 to vector<8x1xf32>
    %9 = arith.mulf %7, %8 : vector<8x1xf32>
    %10 = vector.broadcast %9 : vector<8x1xf32> to vector<8x128xf32>
    %11 = arith.subf %5, %10 : vector<8x128xf32>
    %12 = arith.mulf %11, %11 : vector<8x128xf32>
    %cst_4 = arith.constant dense<0.000000e+00> : vector<8xf32>
    %13 = vector.multi_reduction <add>, %12, %cst_4 [1] : vector<8x128xf32> to vector<8xf32>
    %14 = vector.shape_cast %13 : vector<8xf32> to vector<8x1xf32>
    %cst_5 = arith.constant 0.00787401571 : f32
    %15 = vector.broadcast %cst_5 : f32 to vector<8x1xf32>
    %16 = arith.mulf %14, %15 : vector<8x1xf32>
    %17 = math.sqrt %16 : vector<8x1xf32>
    %cst_6 = arith.constant 9.99999997E-7 : f32
    %18 = vector.broadcast %cst_6 : f32 to vector<8x1xf32>
    %19 = arith.addf %17, %18 : vector<8x1xf32>
    %20 = tpu.reciprocal %19 : vector<8x1xf32> -> vector<8x1xf32>
    %21 = vector.broadcast %0 : f32 to vector<8x128xf32>
    %22 = arith.mulf %21, %11 : vector<8x128xf32>
    %23 = vector.broadcast %20 : vector<8x1xf32> to vector<8x128xf32>
    %24 = arith.mulf %22, %23 : vector<8x128xf32>
    %25 = vector.broadcast %1 : f32 to vector<8x128xf32>
    %26 = arith.addf %24, %25 : vector<8x128xf32>
    %27 = arith.truncf %26 : vector<8x128xf32> to vector<8x128xbf16>
    %c0_7 = arith.constant 0 : index
    %c0_8 = arith.constant 0 : index
    %28 = vector.load %arg4[%c0_7, %c0_8] : memref<128x384xbf16, #tpu.memory_space<vmem>>, vector<128x384xbf16>
    %cst_9 = arith.constant dense<0.000000e+00> : vector<8x384xf32>
    %29 = tpu.matmul %27, %28, %cst_9 {dimension_numbers = #tpu.dot_dimension_numbers<[1], [0], [0], [1], [0, 0, 1, 1], [], []>} : vector<8x128xbf16>, vector<128x384xbf16>, vector<8x384xf32> -> vector<8x384xf32>
    %30 = arith.truncf %29 : vector<8x384xf32> to vector<8x384xbf16>
    %31 = vector.extract_strided_slice %30 {offsets = [0, 0], sizes = [8, 128], strides = [1, 1]} : vector<8x384xbf16> to vector<8x128xbf16>
    %32 = vector.extract_strided_slice %30 {offsets = [0, 128], sizes = [8, 128], strides = [1, 1]} : vector<8x384xbf16> to vector<8x128xbf16>
    %33 = vector.extract_strided_slice %30 {offsets = [0, 256], sizes = [8, 128], strides = [1, 1]} : vector<8x384xbf16> to vector<8x128xbf16>
    %c0_10 = arith.constant 0 : index
    %c0_11 = arith.constant 0 : index
    %c0_12 = arith.constant 0 : index
    %34 = vector.load %arg3[%c0_10, %c0_11, %c0_12] : memref<1x1x8xf32, #tpu.memory_space<vmem>>, vector<1x1x8xf32>
    %cst_13 = arith.constant 1.000000e+00 : f32
    %35 = vector.broadcast %cst_13 : f32 to vector<1x1x8xf32>
    %36 = arith.subf %34, %35 : vector<1x1x8xf32>
    %cst_14 = arith.constant 1.000000e+09 : f32
    %37 = vector.broadcast %cst_14 : f32 to vector<1x1x8xf32>
    %38 = arith.mulf %36, %37 : vector<1x1x8xf32>
    %39 = vector.extract_strided_slice %31 {offsets = [0, 0], sizes = [8, 32], strides = [1, 1]} : vector<8x128xbf16> to vector<8x32xbf16>
    %40 = vector.shape_cast %39 : vector<8x32xbf16> to vector<1x8x32xbf16>
    %41 = vector.extract_strided_slice %32 {offsets = [0, 0], sizes = [8, 32], strides = [1, 1]} : vector<8x128xbf16> to vector<8x32xbf16>
    %42 = vector.shape_cast %41 : vector<8x32xbf16> to vector<1x8x32xbf16>
    %43 = vector.extract_strided_slice %33 {offsets = [0, 0], sizes = [8, 32], strides = [1, 1]} : vector<8x128xbf16> to vector<8x32xbf16>
    %44 = vector.shape_cast %43 : vector<8x32xbf16> to vector<1x8x32xbf16>
    "tpu.trace_start"() <{level = 10 : i32, message = "bqd,bkd->bqk"}> : () -> ()
    %cst_15 = arith.constant dense<0.000000e+00> : vector<1x8x8xf32>
    %45 = tpu.matmul %40, %42, %cst_15 {dimension_numbers = #tpu.dot_dimension_numbers<[2], [2], [1], [1], [0, 0, 0, 1, 1, 1], [0], [0]>} : vector<1x8x32xbf16>, vector<1x8x32xbf16>, vector<1x8x8xf32> -> vector<1x8x8xf32>
    "tpu.trace_stop"() : () -> ()
    %46 = vector.broadcast %38 : vector<1x1x8xf32> to vector<1x8x8xf32>
    %47 = arith.addf %45, %46 : vector<1x8x8xf32>
    %cst_16 = arith.constant dense<0xFF800000> : vector<1x8xf32>
    %48 = vector.multi_reduction <maximumf>, %47, %cst_16 [2] : vector<1x8x8xf32> to vector<1x8xf32>
    %49 = vector.shape_cast %48 : vector<1x8xf32> to vector<1x8x1xf32>
    %50 = vector.broadcast %49 : vector<1x8x1xf32> to vector<1x8x8xf32>
    %51 = arith.subf %47, %50 : vector<1x8x8xf32>
    %52 = math.exp %51 : vector<1x8x8xf32>
    %cst_17 = arith.constant dense<0.000000e+00> : vector<1x8xf32>
    %53 = vector.multi_reduction <add>, %52, %cst_17 [2] : vector<1x8x8xf32> to vector<1x8xf32>
    %54 = vector.shape_cast %53 : vector<1x8xf32> to vector<1x8x1xf32>
    %55 = tpu.reciprocal %54 {approx = true} : vector<1x8x1xf32> -> vector<1x8x1xf32>
    %56 = vector.broadcast %55 : vector<1x8x1xf32> to vector<1x8x8xf32>
    %57 = arith.mulf %52, %56 : vector<1x8x8xf32>
    %58 = arith.truncf %57 : vector<1x8x8xf32> to vector<1x8x8xbf16>
    "tpu.trace_start"() <{level = 10 : i32, message = "bqk,bkd->bqd"}> : () -> ()
    %cst_18 = arith.constant dense<0.000000e+00> : vector<1x8x32xf32>
    %59 = tpu.matmul %58, %44, %cst_18 {dimension_numbers = #tpu.dot_dimension_numbers<[2], [1], [1], [2], [0, 0, 0, 1, 1, 2], [0], [0]>} : vector<1x8x8xbf16>, vector<1x8x32xbf16>, vector<1x8x32xf32> -> vector<1x8x32xf32>
    "tpu.trace_stop"() : () -> ()
    %60 = vector.shape_cast %59 : vector<1x8x32xf32> to vector<8x32xf32>
    %61 = arith.truncf %60 : vector<8x32xf32> to vector<8x32xbf16>
    %c0_19 = arith.constant 0 : index
    %c0_20 = arith.constant 0 : index
    %62 = vector.load %arg12[%c0_19, %c0_20] : memref<8x128xbf16, #tpu.memory_space<vmem>>, vector<8x32xbf16>
    tpu.vector_store %arg12[%c0_19, %c0_20], %61 {strides = array<i32>} : memref<8x128xbf16, #tpu.memory_space<vmem>>, vector<8x32xbf16>,
    %63 = vector.extract_strided_slice %31 {offsets = [0, 32], sizes = [8, 32], strides = [1, 1]} : vector<8x128xbf16> to vector<8x32xbf16>
    %64 = vector.shape_cast %63 : vector<8x32xbf16> to vector<1x8x32xbf16>
    %65 = vector.extract_strided_slice %32 {offsets = [0, 32], sizes = [8, 32], strides = [1, 1]} : vector<8x128xbf16> to vector<8x32xbf16>
    %66 = vector.shape_cast %65 : vector<8x32xbf16> to vector<1x8x32xbf16>
    %67 = vector.extract_strided_slice %33 {offsets = [0, 32], sizes = [8, 32], strides = [1, 1]} : vector<8x128xbf16> to vector<8x32xbf16>
    %68 = vector.shape_cast %67 : vector<8x32xbf16> to vector<1x8x32xbf16>
    "tpu.trace_start"() <{level = 10 : i32, message = "bqd,bkd->bqk"}> : () -> ()
    %cst_21 = arith.constant dense<0.000000e+00> : vector<1x8x8xf32>
    %69 = tpu.matmul %64, %66, %cst_21 {dimension_numbers = #tpu.dot_dimension_numbers<[2], [2], [1], [1], [0, 0, 0, 1, 1, 1], [0], [0]>} : vector<1x8x32xbf16>, vector<1x8x32xbf16>, vector<1x8x8xf32> -> vector<1x8x8xf32>
    "tpu.trace_stop"() : () -> ()
    %70 = vector.broadcast %38 : vector<1x1x8xf32> to vector<1x8x8xf32>
    %71 = arith.addf %69, %70 : vector<1x8x8xf32>
    %cst_22 = arith.constant dense<0xFF800000> : vector<1x8xf32>
    %72 = vector.multi_reduction <maximumf>, %71, %cst_22 [2] : vector<1x8x8xf32> to vector<1x8xf32>
    %73 = vector.shape_cast %72 : vector<1x8xf32> to vector<1x8x1xf32>
    %74 = vector.broadcast %73 : vector<1x8x1xf32> to vector<1x8x8xf32>
    %75 = arith.subf %71, %74 : vector<1x8x8xf32>
    %76 = math.exp %75 : vector<1x8x8xf32>
    %cst_23 = arith.constant dense<0.000000e+00> : vector<1x8xf32>
    %77 = vector.multi_reduction <add>, %76, %cst_23 [2] : vector<1x8x8xf32> to vector<1x8xf32>
    %78 = vector.shape_cast %77 : vector<1x8xf32> to vector<1x8x1xf32>
    %79 = tpu.reciprocal %78 {approx = true} : vector<1x8x1xf32> -> vector<1x8x1xf32>
    %80 = vector.broadcast %79 : vector<1x8x1xf32> to vector<1x8x8xf32>
    %81 = arith.mulf %76, %80 : vector<1x8x8xf32>
    %82 = arith.truncf %81 : vector<1x8x8xf32> to vector<1x8x8xbf16>
    "tpu.trace_start"() <{level = 10 : i32, message = "bqk,bkd->bqd"}> : () -> ()
    %cst_24 = arith.constant dense<0.000000e+00> : vector<1x8x32xf32>
    %83 = tpu.matmul %82, %68, %cst_24 {dimension_numbers = #tpu.dot_dimension_numbers<[2], [1], [1], [2], [0, 0, 0, 1, 1, 2], [0], [0]>} : vector<1x8x8xbf16>, vector<1x8x32xbf16>, vector<1x8x32xf32> -> vector<1x8x32xf32>
    "tpu.trace_stop"() : () -> ()
    %84 = vector.shape_cast %83 : vector<1x8x32xf32> to vector<8x32xf32>
    %85 = arith.truncf %84 : vector<8x32xf32> to vector<8x32xbf16>
    %c0_25 = arith.constant 0 : index
    %c32 = arith.constant 32 : index
    %86 = vector.load %arg12[%c0_25, %c32] : memref<8x128xbf16, #tpu.memory_space<vmem>>, vector<8x32xbf16>
    tpu.vector_store %arg12[%c0_25, %c32], %85 {strides = array<i32>} : memref<8x128xbf16, #tpu.memory_space<vmem>>, vector<8x32xbf16>,
    %87 = vector.extract_strided_slice %31 {offsets = [0, 64], sizes = [8, 32], strides = [1, 1]} : vector<8x128xbf16> to vector<8x32xbf16>
    %88 = vector.shape_cast %87 : vector<8x32xbf16> to vector<1x8x32xbf16>
    %89 = vector.extract_strided_slice %32 {offsets = [0, 64], sizes = [8, 32], strides = [1, 1]} : vector<8x128xbf16> to vector<8x32xbf16>
    %90 = vector.shape_cast %89 : vector<8x32xbf16> to vector<1x8x32xbf16>
    %91 = vector.extract_strided_slice %33 {offsets = [0, 64], sizes = [8, 32], strides = [1, 1]} : vector<8x128xbf16> to vector<8x32xbf16>
    %92 = vector.shape_cast %91 : vector<8x32xbf16> to vector<1x8x32xbf16>
    "tpu.trace_start"() <{level = 10 : i32, message = "bqd,bkd->bqk"}> : () -> ()
    %cst_26 = arith.constant dense<0.000000e+00> : vector<1x8x8xf32>
    %93 = tpu.matmul %88, %90, %cst_26 {dimension_numbers = #tpu.dot_dimension_numbers<[2], [2], [1], [1], [0, 0, 0, 1, 1, 1], [0], [0]>} : vector<1x8x32xbf16>, vector<1x8x32xbf16>, vector<1x8x8xf32> -> vector<1x8x8xf32>
    "tpu.trace_stop"() : () -> ()
    %94 = vector.broadcast %38 : vector<1x1x8xf32> to vector<1x8x8xf32>
    %95 = arith.addf %93, %94 : vector<1x8x8xf32>
    %cst_27 = arith.constant dense<0xFF800000> : vector<1x8xf32>
    %96 = vector.multi_reduction <maximumf>, %95, %cst_27 [2] : vector<1x8x8xf32> to vector<1x8xf32>
    %97 = vector.shape_cast %96 : vector<1x8xf32> to vector<1x8x1xf32>
    %98 = vector.broadcast %97 : vector<1x8x1xf32> to vector<1x8x8xf32>
    %99 = arith.subf %95, %98 : vector<1x8x8xf32>
    %100 = math.exp %99 : vector<1x8x8xf32>
    %cst_28 = arith.constant dense<0.000000e+00> : vector<1x8xf32>
    %101 = vector.multi_reduction <add>, %100, %cst_28 [2] : vector<1x8x8xf32> to vector<1x8xf32>
    %102 = vector.shape_cast %101 : vector<1x8xf32> to vector<1x8x1xf32>
    %103 = tpu.reciprocal %102 {approx = true} : vector<1x8x1xf32> -> vector<1x8x1xf32>
    %104 = vector.broadcast %103 : vector<1x8x1xf32> to vector<1x8x8xf32>
    %105 = arith.mulf %100, %104 : vector<1x8x8xf32>
    %106 = arith.truncf %105 : vector<1x8x8xf32> to vector<1x8x8xbf16>
    "tpu.trace_start"() <{level = 10 : i32, message = "bqk,bkd->bqd"}> : () -> ()
    %cst_29 = arith.constant dense<0.000000e+00> : vector<1x8x32xf32>
    %107 = tpu.matmul %106, %92, %cst_29 {dimension_numbers = #tpu.dot_dimension_numbers<[2], [1], [1], [2], [0, 0, 0, 1, 1, 2], [0], [0]>} : vector<1x8x8xbf16>, vector<1x8x32xbf16>, vector<1x8x32xf32> -> vector<1x8x32xf32>
    "tpu.trace_stop"() : () -> ()
    %108 = vector.shape_cast %107 : vector<1x8x32xf32> to vector<8x32xf32>
    %109 = arith.truncf %108 : vector<8x32xf32> to vector<8x32xbf16>
    %c0_30 = arith.constant 0 : index
    %c64 = arith.constant 64 : index
    %110 = vector.load %arg12[%c0_30, %c64] : memref<8x128xbf16, #tpu.memory_space<vmem>>, vector<8x32xbf16>
    tpu.vector_store %arg12[%c0_30, %c64], %109 {strides = array<i32>} : memref<8x128xbf16, #tpu.memory_space<vmem>>, vector<8x32xbf16>,
    %111 = vector.extract_strided_slice %31 {offsets = [0, 96], sizes = [8, 32], strides = [1, 1]} : vector<8x128xbf16> to vector<8x32xbf16>
    %112 = vector.shape_cast %111 : vector<8x32xbf16> to vector<1x8x32xbf16>
    %113 = vector.extract_strided_slice %32 {offsets = [0, 96], sizes = [8, 32], strides = [1, 1]} : vector<8x128xbf16> to vector<8x32xbf16>
    %114 = vector.shape_cast %113 : vector<8x32xbf16> to vector<1x8x32xbf16>
    %115 = vector.extract_strided_slice %33 {offsets = [0, 96], sizes = [8, 32], strides = [1, 1]} : vector<8x128xbf16> to vector<8x32xbf16>
    %116 = vector.shape_cast %115 : vector<8x32xbf16> to vector<1x8x32xbf16>
    "tpu.trace_start"() <{level = 10 : i32, message = "bqd,bkd->bqk"}> : () -> ()
    %cst_31 = arith.constant dense<0.000000e+00> : vector<1x8x8xf32>
    %117 = tpu.matmul %112, %114, %cst_31 {dimension_numbers = #tpu.dot_dimension_numbers<[2], [2], [1], [1], [0, 0, 0, 1, 1, 1], [0], [0]>} : vector<1x8x32xbf16>, vector<1x8x32xbf16>, vector<1x8x8xf32> -> vector<1x8x8xf32>
    "tpu.trace_stop"() : () -> ()
    %118 = vector.broadcast %38 : vector<1x1x8xf32> to vector<1x8x8xf32>
    %119 = arith.addf %117, %118 : vector<1x8x8xf32>
    %cst_32 = arith.constant dense<0xFF800000> : vector<1x8xf32>
    %120 = vector.multi_reduction <maximumf>, %119, %cst_32 [2] : vector<1x8x8xf32> to vector<1x8xf32>
    %121 = vector.shape_cast %120 : vector<1x8xf32> to vector<1x8x1xf32>
    %122 = vector.broadcast %121 : vector<1x8x1xf32> to vector<1x8x8xf32>
    %123 = arith.subf %119, %122 : vector<1x8x8xf32>
    %124 = math.exp %123 : vector<1x8x8xf32>
    %cst_33 = arith.constant dense<0.000000e+00> : vector<1x8xf32>
    %125 = vector.multi_reduction <add>, %124, %cst_33 [2] : vector<1x8x8xf32> to vector<1x8xf32>
    %126 = vector.shape_cast %125 : vector<1x8xf32> to vector<1x8x1xf32>
    %127 = tpu.reciprocal %126 {approx = true} : vector<1x8x1xf32> -> vector<1x8x1xf32>
    %128 = vector.broadcast %127 : vector<1x8x1xf32> to vector<1x8x8xf32>
    %129 = arith.mulf %124, %128 : vector<1x8x8xf32>
    %130 = arith.truncf %129 : vector<1x8x8xf32> to vector<1x8x8xbf16>
    "tpu.trace_start"() <{level = 10 : i32, message = "bqk,bkd->bqd"}> : () -> ()
    %cst_34 = arith.constant dense<0.000000e+00> : vector<1x8x32xf32>
    %131 = tpu.matmul %130, %116, %cst_34 {dimension_numbers = #tpu.dot_dimension_numbers<[2], [1], [1], [2], [0, 0, 0, 1, 1, 2], [0], [0]>} : vector<1x8x8xbf16>, vector<1x8x32xbf16>, vector<1x8x32xf32> -> vector<1x8x32xf32>
    "tpu.trace_stop"() : () -> ()
    %132 = vector.shape_cast %131 : vector<1x8x32xf32> to vector<8x32xf32>
    %133 = arith.truncf %132 : vector<8x32xf32> to vector<8x32xbf16>
    %c0_35 = arith.constant 0 : index
    %c96 = arith.constant 96 : index
    %134 = vector.load %arg12[%c0_35, %c96] : memref<8x128xbf16, #tpu.memory_space<vmem>>, vector<8x32xbf16>
    tpu.vector_store %arg12[%c0_35, %c96], %133 {strides = array<i32>} : memref<8x128xbf16, #tpu.memory_space<vmem>>, vector<8x32xbf16>,
    %c0_36 = arith.constant 0 : index
    %c0_37 = arith.constant 0 : index
    %135 = vector.load %arg12[%c0_36, %c0_37] : memref<8x128xbf16, #tpu.memory_space<vmem>>, vector<8x128xbf16>
    %c0_38 = arith.constant 0 : index
    %c0_39 = arith.constant 0 : index
    %136 = vector.load %arg5[%c0_38, %c0_39] : memref<128x128xbf16, #tpu.memory_space<vmem>>, vector<128x128xbf16>
    %cst_40 = arith.constant dense<0.000000e+00> : vector<8x128xf32>
    %137 = tpu.matmul %135, %136, %cst_40 {dimension_numbers = #tpu.dot_dimension_numbers<[1], [0], [0], [1], [0, 0, 1, 1], [], []>} : vector<8x128xbf16>, vector<128x128xbf16>, vector<8x128xf32> -> vector<8x128xf32>
    %138 = arith.addf %5, %137 : vector<8x128xf32>
    %c0_41 = arith.constant 0 : index
    %c0_42 = arith.constant 0 : index
    %139 = vector.load %arg6[%c0_41, %c0_42] : memref<1x128xf32, #tpu.memory_space<vmem>>, vector<1x128xf32>
    %140 = vector.shape_cast %139 : vector<1x128xf32> to vector<128xf32>
    %141 = vector.shape_cast %140 : vector<128xf32> to vector<1x128xf32>
    %142 = vector.broadcast %141 : vector<1x128xf32> to vector<8x128xf32>
    %143 = arith.addf %138, %142 : vector<8x128xf32>
    %cst_43 = arith.constant dense<0.000000e+00> : vector<8xf32>
    %144 = vector.multi_reduction <add>, %143, %cst_43 [1] : vector<8x128xf32> to vector<8xf32>
    %145 = vector.shape_cast %144 : vector<8xf32> to vector<8x1xf32>
    %cst_44 = arith.constant 7.812500e-03 : f32
    %146 = vector.broadcast %cst_44 : f32 to vector<8x1xf32>
    %147 = arith.mulf %145, %146 : vector<8x1xf32>
    %148 = vector.broadcast %147 : vector<8x1xf32> to vector<8x128xf32>
    %149 = arith.subf %143, %148 : vector<8x128xf32>
    %150 = arith.mulf %149, %149 : vector<8x128xf32>
    %cst_45 = arith.constant dense<0.000000e+00> : vector<8xf32>
    %151 = vector.multi_reduction <add>, %150, %cst_45 [1] : vector<8x128xf32> to vector<8xf32>
    %152 = vector.shape_cast %151 : vector<8xf32> to vector<8x1xf32>
    %cst_46 = arith.constant 0.00787401571 : f32
    %153 = vector.broadcast %cst_46 : f32 to vector<8x1xf32>
    %154 = arith.mulf %152, %153 : vector<8x1xf32>
    %155 = math.sqrt %154 : vector<8x1xf32>
    %cst_47 = arith.constant 9.99999997E-7 : f32
    %156 = vector.broadcast %cst_47 : f32 to vector<8x1xf32>
    %157 = arith.addf %155, %156 : vector<8x1xf32>
    %158 = tpu.reciprocal %157 : vector<8x1xf32> -> vector<8x1xf32>
    %159 = vector.broadcast %2 : f32 to vector<8x128xf32>
    %160 = arith.mulf %159, %149 : vector<8x128xf32>
    %161 = vector.broadcast %158 : vector<8x1xf32> to vector<8x128xf32>
    %162 = arith.mulf %160, %161 : vector<8x128xf32>
    %163 = vector.broadcast %3 : f32 to vector<8x128xf32>
    %164 = arith.addf %162, %163 : vector<8x128xf32>
    %165 = arith.truncf %164 : vector<8x128xf32> to vector<8x128xbf16>
    %c0_48 = arith.constant 0 : index
    %c0_49 = arith.constant 0 : index
    %166 = vector.load %arg7[%c0_48, %c0_49] : memref<128x256xbf16, #tpu.memory_space<vmem>>, vector<128x256xbf16>
    %cst_50 = arith.constant dense<0.000000e+00> : vector<8x256xf32>
    %167 = tpu.matmul %165, %166, %cst_50 {dimension_numbers = #tpu.dot_dimension_numbers<[1], [0], [0], [1], [0, 0, 1, 1], [], []>} : vector<8x128xbf16>, vector<128x256xbf16>, vector<8x256xf32> -> vector<8x256xf32>
    %c0_51 = arith.constant 0 : index
    %c0_52 = arith.constant 0 : index
    %168 = vector.load %arg8[%c0_51, %c0_52] : memref<1x256xf32, #tpu.memory_space<vmem>>, vector<1x256xf32>
    %169 = vector.shape_cast %168 : vector<1x256xf32> to vector<256xf32>
    %170 = vector.shape_cast %169 : vector<256xf32> to vector<1x256xf32>
    %171 = vector.broadcast %170 : vector<1x256xf32> to vector<8x256xf32>
    %172 = arith.addf %167, %171 : vector<8x256xf32>
    %cst_53 = arith.constant 0.000000e+00 : f32
    %173 = vector.broadcast %cst_53 : f32 to vector<8x256xf32>
    %174 = arith.maximumf %172, %173 : vector<8x256xf32>
    %175 = arith.truncf %174 : vector<8x256xf32> to vector<8x256xbf16>
    %c0_54 = arith.constant 0 : index
    %c0_55 = arith.constant 0 : index
    %176 = vector.load %arg9[%c0_54, %c0_55] : memref<256x128xbf16, #tpu.memory_space<vmem>>, vector<256x128xbf16>
    %cst_56 = arith.constant dense<0.000000e+00> : vector<8x128xf32>
    %177 = tpu.matmul %175, %176, %cst_56 {dimension_numbers = #tpu.dot_dimension_numbers<[1], [0], [0], [1], [0, 0, 1, 1], [], []>} : vector<8x256xbf16>, vector<256x128xbf16>, vector<8x128xf32> -> vector<8x128xf32>
    %c0_57 = arith.constant 0 : index
    %c0_58 = arith.constant 0 : index
    %178 = vector.load %arg10[%c0_57, %c0_58] : memref<1x128xf32, #tpu.memory_space<vmem>>, vector<1x128xf32>
    %179 = vector.shape_cast %178 : vector<1x128xf32> to vector<128xf32>
    %180 = vector.shape_cast %179 : vector<128xf32> to vector<1x128xf32>
    %181 = vector.broadcast %180 : vector<1x128xf32> to vector<8x128xf32>
    %182 = arith.addf %177, %181 : vector<8x128xf32>
    %183 = arith.addf %143, %182 : vector<8x128xf32>
    %184 = vector.shape_cast %183 : vector<8x128xf32> to vector<1x8x128xf32>
    %c0_59 = arith.constant 0 : index
    %c0_60 = arith.constant 0 : index
    %c0_61 = arith.constant 0 : index
    %185 = vector.load %arg11[%c0_59, %c0_60, %c0_61] : memref<1x8x128xf32, #tpu.memory_space<vmem>>, vector<1x8x128xf32>
    tpu.vector_store %arg11[%c0_59, %c0_60, %c0_61], %184 {strides = array<i32>} : memref<1x8x128xf32, #tpu.memory_space<vmem>>, vector<1x8x128xf32>,
    return
  }
  func.func @transform_0(%arg0: i32) -> i32 {
    %c0_i32 = arith.constant 0 : i32
    %c0_i32_0 = arith.constant 0 : i32
    return %c0_i32 : i32
  }
  func.func @transform_1(%arg0: i32) -> (i32, i32, i32) {
    %c0_i32 = arith.constant 0 : i32
    %c0_i32_0 = arith.constant 0 : i32
    %c0_i32_1 = arith.constant 0 : i32
    return %arg0, %c0_i32, %c0_i32_0 : i32, i32, i32
  }
  func.func @transform_2(%arg0: i32) -> (i32, i32, i32) {
    %c0_i32 = arith.constant 0 : i32
    %c0_i32_0 = arith.constant 0 : i32
    %c0_i32_1 = arith.constant 0 : i32
    return %arg0, %c0_i32, %c0_i32_0 : i32, i32, i32
  }
  func.func @transform_3(%arg0: i32) -> (i32, i32) {
    %c0_i32 = arith.constant 0 : i32
    %c0_i32_0 = arith.constant 0 : i32
    %c0_i32_1 = arith.constant 0 : i32
    return %c0_i32, %c0_i32_0 : i32, i32
  }
  func.func @transform_4(%arg0: i32) -> (i32, i32) {
    %c0_i32 = arith.constant 0 : i32
    %c0_i32_0 = arith.constant 0 : i32
    %c0_i32_1 = arith.constant 0 : i32
    return %c0_i32, %c0_i32_0 : i32, i32
  }
  func.func @transform_5(%arg0: i32) -> (i32, i32) {
    %c0_i32 = arith.constant 0 : i32
    %c0_i32_0 = arith.constant 0 : i32
    %c0_i32_1 = arith.constant 0 : i32
    return %c0_i32, %c0_i32_0 : i32, i32
  }
  func.func @transform_6(%arg0: i32) -> (i32, i32) {
    %c0_i32 = arith.constant 0 : i32
    %c0_i32_0 = arith.constant 0 : i32
    %c0_i32_1 = arith.constant 0 : i32
    return %c0_i32, %c0_i32_0 : i32, i32
  }
  func.func @transform_7(%arg0: i32) -> (i32, i32) {
    %c0_i32 = arith.constant 0 : i32
    %c0_i32_0 = arith.constant 0 : i32
    %c0_i32_1 = arith.constant 0 : i32
    return %c0_i32, %c0_i32_0 : i32, i32
  }
  func.func @transform_8(%arg0: i32) -> (i32, i32) {
    %c0_i32 = arith.constant 0 : i32
    %c0_i32_0 = arith.constant 0 : i32
    %c0_i32_1 = arith.constant 0 : i32
    return %c0_i32, %c0_i32_0 : i32, i32
  }
  func.func @transform_9(%arg0: i32) -> (i32, i32) {
    %c0_i32 = arith.constant 0 : i32
    %c0_i32_0 = arith.constant 0 : i32
    %c0_i32_1 = arith.constant 0 : i32
    return %c0_i32, %c0_i32_0 : i32, i32
  }
  func.func @transform_10(%arg0: i32) -> (i32, i32, i32) {
    %c0_i32 = arith.constant 0 : i32
    %c0_i32_0 = arith.constant 0 : i32
    %c0_i32_1 = arith.constant 0 : i32
    return %arg0, %c0_i32, %c0_i32_0 : i32, i32, i32
  }
}

</mosaic_0001>

<llo_original>
// kernel: tpu_custom_call.1
$region0: #{tpu_custom_call.1}
  #allocation0 [shape = 'u32[]', space=smem, size = 0x4, offset = 0x4, fixed_abs, tag = 'smem constant byte address 0x4 - core index']
  #allocation1 [shape = 'u32[144,128]{1,0:T(1,128)}', space=vmem, size = 0x12000, scoped, tag = 'internal scratch']
  #allocation2 [shape = 'bf16[8,128]{1,0:T(8,128)(2,1)}', space=vmem, size = 0x800, scoped, tag = 'scratch operand']
  %s0 = inlined_call_operand.hbm [shape: f32[4], index: 0, kind: input, shape index: {}]
  %s1 = inlined_call_operand.hbm [shape: f32[2,8,128], index: 1, kind: input, shape index: {}]
  %s2 = inlined_call_operand.vmem [shape: f32[2,1,8], index: 2, kind: input, shape index: {}]
  %s3 = inlined_call_operand.hbm [shape: bf16[128,384], index: 3, kind: input, shape index: {}]
  %s4 = inlined_call_operand.hbm [shape: bf16[128,128], index: 4, kind: input, shape index: {}]
  %s5 = inlined_call_operand.vmem [shape: f32[1,128], index: 5, kind: input, shape index: {}]
  %s6 = inlined_call_operand.hbm [shape: bf16[128,256], index: 6, kind: input, shape index: {}]
  %s7 = inlined_call_operand.vmem [shape: f32[1,256], index: 7, kind: input, shape index: {}]
  %s8 = inlined_call_operand.hbm [shape: bf16[256,128], index: 8, kind: input, shape index: {}]
  %s9 = inlined_call_operand.vmem [shape: f32[1,128], index: 9, kind: input, shape index: {}]
  %s10 = inlined_call_operand.hbm [shape: f32[2,8,128], index: 10, kind: output, shape index: {}]
  %s11 = sld [smem:[#allocation0]]
  $region97: #{tpu_custom_call.1} parent=0
    _
  %s13 = ssub.s32 1, %s11
  %s14 = scalar_select 0, %s13, %s11
  $region1: #{tpu_custom_call.1} parent=0
    #allocation3 [shape = 'u8[512]{0}', space=smem, size = 0x200, scoped, tag = 'input window, operand 0, single buffered']
    #allocation4 [shape = 's32[2]{0}', space=sflag, size = 0x8, scoped, tag = 'scoped memory for tpu_custom_call.1']
    #allocation5 [shape = 's32[2]{0}', space=sflag, size = 0x8, scoped, tag = 'scoped memory for tpu_custom_call.1']
    #allocation6 [shape = 's32[2]{0}', space=sflag, size = 0x8, scoped, tag = 'scoped memory for tpu_custom_call.1']
    #allocation7 [shape = 'u8[8192]{0}', space=vmem, size = 0x2000, scoped, tag = 'input window, operand 1']
    #allocation8 [shape = 'u8[98304]{0}', space=vmem, size = 0x18000, scoped, tag = 'input window, operand 3, single buffered']
    #allocation9 [shape = 's32[1]{0}', space=sflag, size = 0x4, scoped, tag = 'scoped memory for tpu_custom_call.1']
    #allocation10 [shape = 'u8[32768]{0}', space=vmem, size = 0x8000, scoped, tag = 'input window, operand 4, single buffered']
    #allocation11 [shape = 'u8[65536]{0}', space=vmem, size = 0x10000, scoped, tag = 'input window, operand 6, single buffered']
    #allocation12 [shape = 's32[1]{0}', space=sflag, size = 0x4, scoped, tag = 'scoped memory for tpu_custom_call.1']
    #allocation13 [shape = 'u8[65536]{0}', space=vmem, size = 0x10000, scoped, tag = 'input window, operand 8, single buffered']
    #allocation14 [shape = 'u8[8192]{0}', space=vmem, size = 0x2000, scoped, tag = 'output window, operand 0']
    %15 = vsyncpa [#allocation6], 0
    %16 = vsyncpa [#allocation4], 0
    %s17 = scalar_lea.sflag [#allocation4], 1
    %18 = vsyncpa %s17, 0
    %19 = vsyncpa [#allocation9], 0
    %20 = vsyncpa [#allocation12], 0
    %21 = vsyncpa [#allocation5], 0
    %s22 = scalar_lea.sflag [#allocation5], 1
    %23 = vsyncpa %s22, 0
    loop: start=0, step=1, limit=4
    $region2: #{tpu_custom_call.1} parent=1 // loop_pre_header
      _
    $region3: #{tpu_custom_call.1} parent=1 // loop_header
      %s25 = sphi 0, %s29
      %p26 = scmp.ge.s32.totalorder %s25, 4
      %s33 = sphi 0, %s33
      %s35 = sphi 0, %s33
      %s36 = sphi 0, %s35
      %s50 = sphi 0, %s36
      %s56 = sphi 0, %s58
      %s59 = sphi 0, %s56
      %s60 = sphi 0, %s59
      %s76 = sphi 0, %s60
      %s82 = sphi 0, %s84
      %s85 = sphi 0, %s82
      %s86 = sphi 0, %s85
      %s102 = sphi 0, %s86
      %s106 = sphi 0, %s106
      %s108 = sphi 0, %s106
      %s109 = sphi 0, %s108
      %s123 = sphi 0, %s109
      %s127 = sphi 0, %s127
      %s129 = sphi 0, %s127
      %s130 = sphi 0, %s129
      %s144 = sphi 0, %s130
      %s148 = sphi 0, %s148
      %s150 = sphi 0, %s148
      %s151 = sphi 0, %s150
      %s165 = sphi 0, %s151
      %s169 = sphi 0, %s169
      %s171 = sphi 0, %s169
      %s172 = sphi 0, %s171
      %s186 = sphi 0, %s172
      %s190 = sphi 0, %s190
      %s192 = sphi 0, %s190
      %s193 = sphi 0, %s192
      %s207 = sphi 0, %s193
      %s211 = sphi 0, %s211
      %s213 = sphi 0, %s211
      %s214 = sphi 0, %s213
      %s228 = sphi 0, %s214
      %s232 = sphi 0, %s232
      %s234 = sphi 0, %s232
      %s235 = sphi 0, %s234
      %s249 = sphi 0, %s235
      %s255 = sphi 0, %s257
      %s258 = sphi 0, %s255
      %s259 = sphi 0, %s258
      %s275 = sphi 0, %s259
    $region4: #{tpu_custom_call.1} parent=1 // loop_header_branch
      %28 = sbr.rel (%p26) target = $region8
    $region5: #{tpu_custom_call.1} parent=1 // loop_body
      %s30 = ssub.s32 %s25, 1
      %s31 = ssub.s32 %s25, 2
      %s32 = sadd.s32 %s25, 1
      %s34 = sadd.s32 %s33, 1
      %p37 = scmp.eq.s32.totalorder %s25, 1
      %p38 = scmp.ne.s32.totalorder %s33, %s35
      %p39 = scmp.eq.s32.totalorder %s25, 0
      %p40 = por %p38, %p39
      %p41 = scmp.ne.s32.totalorder %s33, %s35
      %p42 = scmp.eq.s32.totalorder %s30, 1
      %p43 = por %p41, %p42
      %p44 = scmp.ne.s32.totalorder %s35, %s36
      %p45 = scmp.eq.s32.totalorder %s30, 0
      %p46 = por %p44, %p45
      %p47 = scmp.ne.s32.totalorder %s35, %s36
      %p48 = scmp.eq.s32.totalorder %s31, 1
      %p49 = por %p47, %p48
      %p51 = scmp.ne.s32.totalorder %s36, %s50
      %p52 = scmp.eq.s32.totalorder %s31, 0
      %p53 = por %p51, %p52
      %s54 = ssub.s32 %s25, %s32
      %p55 = scmp.eq.s32.totalorder %s54, 0
      %s57 = sadd.s32 %s56, 1
      %s58 = scalar_select %p55, %s56, %s57
      %p61 = pneg %p55
      %p62 = scmp.eq.s32.totalorder %s25, 1
      %p63 = por %p61, %p62
      %p64 = scmp.ne.s32.totalorder %s56, %s59
      %p65 = scmp.eq.s32.totalorder %s25, 0
      %p66 = por %p64, %p65
      %p67 = scmp.ne.s32.totalorder %s56, %s59
      %p68 = scmp.eq.s32.totalorder %s30, 1
      %p69 = por %p67, %p68
      %p70 = scmp.ne.s32.totalorder %s59, %s60
      %p71 = scmp.eq.s32.totalorder %s30, 0
      %p72 = por %p70, %p71
      %p73 = scmp.ne.s32.totalorder %s59, %s60
      %p74 = scmp.eq.s32.totalorder %s31, 1
      %p75 = por %p73, %p74
      %p77 = scmp.ne.s32.totalorder %s60, %s76
      %p78 = scmp.eq.s32.totalorder %s31, 0
      %p79 = por %p77, %p78
      %s80 = ssub.s32 %s25, %s32
      %p81 = scmp.eq.s32.totalorder %s80, 0
      %s83 = sadd.s32 %s82, 1
      %s84 = scalar_select %p81, %s82, %s83
      %p87 = pneg %p81
      %p88 = scmp.eq.s32.totalorder %s25, 1
      %p89 = por %p87, %p88
      %p90 = scmp.ne.s32.totalorder %s82, %s85
      %p91 = scmp.eq.s32.totalorder %s25, 0
      %p92 = por %p90, %p91
      %p93 = scmp.ne.s32.totalorder %s82, %s85
      %p94 = scmp.eq.s32.totalorder %s30, 1
      %p95 = por %p93, %p94
      %p96 = scmp.ne.s32.totalorder %s85, %s86
      %p97 = scmp.eq.s32.totalorder %s30, 0
      %p98 = por %p96, %p97
      %p99 = scmp.ne.s32.totalorder %s85, %s86
      %p100 = scmp.eq.s32.totalorder %s31, 1
      %p101 = por %p99, %p100
      %p103 = scmp.ne.s32.totalorder %s86, %s102
      %p104 = scmp.eq.s32.totalorder %s31, 0
      %p105 = por %p103, %p104
      %s107 = sadd.s32 %s106, 1
      %p110 = scmp.eq.s32.totalorder %s25, 1
      %p111 = scmp.ne.s32.totalorder %s106, %s108
      %p112 = scmp.eq.s32.totalorder %s25, 0
      %p113 = por %p111, %p112
      %p114 = scmp.ne.s32.totalorder %s106, %s108
      %p115 = scmp.eq.s32.totalorder %s30, 1
      %p116 = por %p114, %p115
      %p117 = scmp.ne.s32.totalorder %s108, %s109
      %p118 = scmp.eq.s32.totalorder %s30, 0
      %p119 = por %p117, %p118
      %p120 = scmp.ne.s32.totalorder %s108, %s109
      %p121 = scmp.eq.s32.totalorder %s31, 1
      %p122 = por %p120, %p121
      %p124 = scmp.ne.s32.totalorder %s109, %s123
      %p125 = scmp.eq.s32.totalorder %s31, 0
      %p126 = por %p124, %p125
      %s128 = sadd.s32 %s127, 1
      %p131 = scmp.eq.s32.totalorder %s25, 1
      %p132 = scmp.ne.s32.totalorder %s127, %s129
      %p133 = scmp.eq.s32.totalorder %s25, 0
      %p134 = por %p132, %p133
      %p135 = scmp.ne.s32.totalorder %s127, %s129
      %p136 = scmp.eq.s32.totalorder %s30, 1
      %p137 = por %p135, %p136
      %p138 = scmp.ne.s32.totalorder %s129, %s130
      %p139 = scmp.eq.s32.totalorder %s30, 0
      %p140 = por %p138, %p139
      %p141 = scmp.ne.s32.totalorder %s129, %s130
      %p142 = scmp.eq.s32.totalorder %s31, 1
      %p143 = por %p141, %p142
      %p145 = scmp.ne.s32.totalorder %s130, %s144
      %p146 = scmp.eq.s32.totalorder %s31, 0
      %p147 = por %p145, %p146
      %s149 = sadd.s32 %s148, 1
      %p152 = scmp.eq.s32.totalorder %s25, 1
      %p153 = scmp.ne.s32.totalorder %s148, %s150
      %p154 = scmp.eq.s32.totalorder %s25, 0
      %p155 = por %p153, %p154
      %p156 = scmp.ne.s32.totalorder %s148, %s150
      %p157 = scmp.eq.s32.totalorder %s30, 1
      %p158 = por %p156, %p157
      %p159 = scmp.ne.s32.totalorder %s150, %s151
      %p160 = scmp.eq.s32.totalorder %s30, 0
      %p161 = por %p159, %p160
      %p162 = scmp.ne.s32.totalorder %s150, %s151
      %p163 = scmp.eq.s32.totalorder %s31, 1
      %p164 = por %p162, %p163
      %p166 = scmp.ne.s32.totalorder %s151, %s165
      %p167 = scmp.eq.s32.totalorder %s31, 0
      %p168 = por %p166, %p167
      %s170 = sadd.s32 %s169, 1
      %p173 = scmp.eq.s32.totalorder %s25, 1
      %p174 = scmp.ne.s32.totalorder %s169, %s171
      %p175 = scmp.eq.s32.totalorder %s25, 0
      %p176 = por %p174, %p175
      %p177 = scmp.ne.s32.totalorder %s169, %s171
      %p178 = scmp.eq.s32.totalorder %s30, 1
      %p179 = por %p177, %p178
      %p180 = scmp.ne.s32.totalorder %s171, %s172
      %p181 = scmp.eq.s32.totalorder %s30, 0
      %p182 = por %p180, %p181
      %p183 = scmp.ne.s32.totalorder %s171, %s172
      %p184 = scmp.eq.s32.totalorder %s31, 1
      %p185 = por %p183, %p184
      %p187 = scmp.ne.s32.totalorder %s172, %s186
      %p188 = scmp.eq.s32.totalorder %s31, 0
      %p189 = por %p187, %p188
      %s191 = sadd.s32 %s190, 1
      %p194 = scmp.eq.s32.totalorder %s25, 1
      %p195 = scmp.ne.s32.totalorder %s190, %s192
      %p196 = scmp.eq.s32.totalorder %s25, 0
      %p197 = por %p195, %p196
      %p198 = scmp.ne.s32.totalorder %s190, %s192
      %p199 = scmp.eq.s32.totalorder %s30, 1
      %p200 = por %p198, %p199
      %p201 = scmp.ne.s32.totalorder %s192, %s193
      %p202 = scmp.eq.s32.totalorder %s30, 0
      %p203 = por %p201, %p202
      %p204 = scmp.ne.s32.totalorder %s192, %s193
      %p205 = scmp.eq.s32.totalorder %s31, 1
      %p206 = por %p204, %p205
      %p208 = scmp.ne.s32.totalorder %s193, %s207
      %p209 = scmp.eq.s32.totalorder %s31, 0
      %p210 = por %p208, %p209
      %s212 = sadd.s32 %s211, 1
      %p215 = scmp.eq.s32.totalorder %s25, 1
      %p216 = scmp.ne.s32.totalorder %s211, %s213
      %p217 = scmp.eq.s32.totalorder %s25, 0
      %p218 = por %p216, %p217
      %p219 = scmp.ne.s32.totalorder %s211, %s213
      %p220 = scmp.eq.s32.totalorder %s30, 1
      %p221 = por %p219, %p220
      %p222 = scmp.ne.s32.totalorder %s213, %s214
      %p223 = scmp.eq.s32.totalorder %s30, 0
      %p224 = por %p222, %p223
      %p225 = scmp.ne.s32.totalorder %s213, %s214
      %p226 = scmp.eq.s32.totalorder %s31, 1
      %p227 = por %p225, %p226
      %p229 = scmp.ne.s32.totalorder %s214, %s228
      %p230 = scmp.eq.s32.totalorder %s31, 0
      %p231 = por %p229, %p230
      %s233 = sadd.s32 %s232, 1
      %p236 = scmp.eq.s32.totalorder %s25, 1
      %p237 = scmp.ne.s32.totalorder %s232, %s234
      %p238 = scmp.eq.s32.totalorder %s25, 0
      %p239 = por %p237, %p238
      %p240 = scmp.ne.s32.totalorder %s232, %s234
      %p241 = scmp.eq.s32.totalorder %s30, 1
      %p242 = por %p240, %p241
      %p243 = scmp.ne.s32.totalorder %s234, %s235
      %p244 = scmp.eq.s32.totalorder %s30, 0
      %p245 = por %p243, %p244
      %p246 = scmp.ne.s32.totalorder %s234, %s235
      %p247 = scmp.eq.s32.totalorder %s31, 1
      %p248 = por %p246, %p247
      %p250 = scmp.ne.s32.totalorder %s235, %s249
      %p251 = scmp.eq.s32.totalorder %s31, 0
      %p252 = por %p250, %p251
      %s253 = ssub.s32 %s25, %s32
      %p254 = scmp.eq.s32.totalorder %s253, 0
      %s256 = sadd.s32 %s255, 1
      %s257 = scalar_select %p254, %s255, %s256
      %p260 = pneg %p254
      %p261 = scmp.eq.s32.totalorder %s25, 1
      %p262 = por %p260, %p261
      %p263 = scmp.ne.s32.totalorder %s255, %s258
      %p264 = scmp.eq.s32.totalorder %s25, 0
      %p265 = por %p263, %p264
      %p266 = scmp.ne.s32.totalorder %s255, %s258
      %p267 = scmp.eq.s32.totalorder %s30, 1
      %p268 = por %p266, %p267
      %p269 = scmp.ne.s32.totalorder %s258, %s259
      %p270 = scmp.eq.s32.totalorder %s30, 0
      %p271 = por %p269, %p270
      %p272 = scmp.ne.s32.totalorder %s258, %s259
      %p273 = scmp.eq.s32.totalorder %s31, 1
      %p274 = por %p272, %p273
      %p276 = scmp.ne.s32.totalorder %s259, %s275
      %p277 = scmp.eq.s32.totalorder %s31, 0
      %p278 = por %p276, %p277
      %p279 = scmp.le.s32.totalorder 1, %s25
      %p280 = scmp.lt.s32.totalorder %s25, 3
      %p281 = pnand %p279, %p280
      %p282 = pneg %p281
      // Predicated region
      $region9: #{tpu_custom_call.1} parent=5 // pred_check
        _
      $region10: #{tpu_custom_call.1} parent=5 // pred_check_branch
        %284 = sbr.rel (%p281) target = $region12
      $region11: #{tpu_custom_call.1} parent=5 // pred_region
        %s285 = ssub.s32 %s25, 1
        // Predicated region
        $region13: #{tpu_custom_call.1} parent=11 // pred_check
          %p286 = pneg %p46
        $region14: #{tpu_custom_call.1} parent=11 // pred_check_branch
          %288 = sbr.rel (%p286) target = $region16
        $region15: #{tpu_custom_call.1} parent=11 // pred_region
          %s290 = ssub.s32 16, 16
          %291 = vsyncadd [#allocation6], %s290
          %294 = dma.hbm_to_smem %s0, 16, [#allocation3], [#allocation6]
        $region16: #{tpu_custom_call.1} parent=11 // pred_fallthru
          _
        // Predicated region
        $region17: #{tpu_custom_call.1} parent=11 // pred_check
          %p295 = pneg %p119
        $region18: #{tpu_custom_call.1} parent=11 // pred_check_branch
          %297 = sbr.rel (%p295) target = $region20
        $region19: #{tpu_custom_call.1} parent=11 // pred_region
          %s299 = ssub.s32 3072, 3072
          %300 = vsyncadd [#allocation9], %s299
          %s301 = sshll.u32 [#allocation8], 4
          %s302 = int_to_ptr.vmem [resolvable:$true] %s301
          %307 = dma.hbm_to_vmem [thread:$0]  %s3, 3072, %s302, [#allocation9], 192, 192, 12
        $region20: #{tpu_custom_call.1} parent=11 // pred_fallthru
          _
        // Predicated region
        $region21: #{tpu_custom_call.1} parent=11 // pred_check
          %p308 = pneg %p140
        $region22: #{tpu_custom_call.1} parent=11 // pred_check_branch
          %310 = sbr.rel (%p308) target = $region24
        $region23: #{tpu_custom_call.1} parent=11 // pred_region
          %s312 = ssub.s32 1024, 1024
          %313 = vsyncadd [#allocation9], %s312
          %s314 = sshll.u32 [#allocation10], 4
          %s315 = int_to_ptr.vmem [resolvable:$true] %s314
          %320 = dma.hbm_to_vmem [thread:$0]  %s4, 1024, %s315, [#allocation9], 64, 64, 4
        $region24: #{tpu_custom_call.1} parent=11 // pred_fallthru
          _
        // Predicated region
        $region25: #{tpu_custom_call.1} parent=11 // pred_check
          %p321 = pneg %p161
        $region26: #{tpu_custom_call.1} parent=11 // pred_check_branch
          %323 = sbr.rel (%p321) target = $region28
        $region27: #{tpu_custom_call.1} parent=11 // pred_region
          _
        $region28: #{tpu_custom_call.1} parent=11 // pred_fallthru
          _
        // Predicated region
        $region29: #{tpu_custom_call.1} parent=11 // pred_check
          %p324 = pneg %p182
        $region30: #{tpu_custom_call.1} parent=11 // pred_check_branch
          %326 = sbr.rel (%p324) target = $region32
        $region31: #{tpu_custom_call.1} parent=11 // pred_region
          %s328 = ssub.s32 2048, 2048
          %329 = vsyncadd [#allocation12], %s328
          %s330 = sshll.u32 [#allocation11], 4
          %s331 = int_to_ptr.vmem [resolvable:$true] %s330
          %336 = dma.hbm_to_vmem [thread:$0]  %s6, 2048, %s331, [#allocation12], 128, 128, 8
        $region32: #{tpu_custom_call.1} parent=11 // pred_fallthru
          _
        // Predicated region
        $region33: #{tpu_custom_call.1} parent=11 // pred_check
          %p337 = pneg %p203
        $region34: #{tpu_custom_call.1} parent=11 // pred_check_branch
          %339 = sbr.rel (%p337) target = $region36
        $region35: #{tpu_custom_call.1} parent=11 // pred_region
          _
        $region36: #{tpu_custom_call.1} parent=11 // pred_fallthru
          _
        // Predicated region
        $region37: #{tpu_custom_call.1} parent=11 // pred_check
          %p340 = pneg %p224
        $region38: #{tpu_custom_call.1} parent=11 // pred_check_branch
          %342 = sbr.rel (%p340) target = $region40
        $region39: #{tpu_custom_call.1} parent=11 // pred_region
          %s344 = ssub.s32 2048, 2048
          %345 = vsyncadd [#allocation12], %s344
          %s346 = sshll.u32 [#allocation13], 4
          %s347 = int_to_ptr.vmem [resolvable:$true] %s346
          %352 = dma.hbm_to_vmem [thread:$0]  %s8, 2048, %s347, [#allocation12], 64, 64, 4
        $region40: #{tpu_custom_call.1} parent=11 // pred_fallthru
          _
        // Predicated region
        $region41: #{tpu_custom_call.1} parent=11 // pred_check
          %p353 = pneg %p245
        $region42: #{tpu_custom_call.1} parent=11 // pred_check_branch
          %355 = sbr.rel (%p353) target = $region44
        $region43: #{tpu_custom_call.1} parent=11 // pred_region
          _
        $region44: #{tpu_custom_call.1} parent=11 // pred_fallthru
          _
      $region12: #{tpu_custom_call.1} parent=5 // pred_fallthru
        _
      %p356 = scmp.lt.s32.totalorder %s25, 2
      // Predicated region
      $region45: #{tpu_custom_call.1} parent=5 // pred_check
        %p357 = pneg %p356
      $region46: #{tpu_custom_call.1} parent=5 // pred_check_branch
        %359 = sbr.rel (%p357) target = $region48
      $region47: #{tpu_custom_call.1} parent=5 // pred_region
        // Predicated region
        $region49: #{tpu_custom_call.1} parent=47 // pred_check
          %p360 = pneg %p66
        $region50: #{tpu_custom_call.1} parent=47 // pred_check_branch
          %362 = sbr.rel (%p360) target = $region52
        $region51: #{tpu_custom_call.1} parent=47 // pred_region
          %s363 = sand.u32 %s56, 1
          %s364 = scalar_lea.sflag [#allocation4], %s363
          %s365 = sand.u32 %s56, 1
          %s366 = smul.addr %s365, 8
          %s367 = scalar_lea.vmem [#allocation7], %s366
          %s369 = ssub.s32 128, 128
          %370 = vsyncadd %s364, %s369
          %s371 = smul.addr %s25, 128
          %s372 = scalar_lea.hbm %s1, %s371
          %s374 = sshll.u32 %s367, 4
          %s375 = int_to_ptr.vmem [resolvable:$true] %s374
          %377 = dma.hbm_to_vmem [thread:$0]  %s372, 128, %s375, %s364
        $region52: #{tpu_custom_call.1} parent=47 // pred_fallthru
          _
        // Predicated region
        $region53: #{tpu_custom_call.1} parent=47 // pred_check
          %p378 = pneg %p92
        $region54: #{tpu_custom_call.1} parent=47 // pred_check_branch
          %380 = sbr.rel (%p378) target = $region56
        $region55: #{tpu_custom_call.1} parent=47 // pred_region
          %p381 = scmp.lt.s32.totalorder %s25, 1
          %s382 = scalar_select %p381, %s25, 1
          %s383 = scalar_lea.vmem %s2, %s382
        $region56: #{tpu_custom_call.1} parent=47 // pred_fallthru
          _
      $region48: #{tpu_custom_call.1} parent=5 // pred_fallthru
        _
      %p384 = scmp.le.s32.totalorder 1, %s25
      %p385 = scmp.lt.s32.totalorder %s25, 3
      %p386 = pnand %p384, %p385
      %p387 = pneg %p386
      // Predicated region
      $region57: #{tpu_custom_call.1} parent=5 // pred_check
        _
      $region58: #{tpu_custom_call.1} parent=5 // pred_check_branch
        %389 = sbr.rel (%p386) target = $region60
      $region59: #{tpu_custom_call.1} parent=5 // pred_region
        %s390 = ssub.s32 %s25, 1
        // Predicated region
        $region61: #{tpu_custom_call.1} parent=59 // pred_check
          %p391 = pneg %p46
        $region62: #{tpu_custom_call.1} parent=59 // pred_check_branch
          %393 = sbr.rel (%p391) target = $region64
        $region63: #{tpu_custom_call.1} parent=59 // pred_region
          %394 = dma.done [#allocation6], 16
        $region64: #{tpu_custom_call.1} parent=59 // pred_fallthru
          _
        %s395 = sand.u32 %s59, 1
        %s396 = scalar_lea.sflag [#allocation4], %s395
        %s397 = sand.u32 %s59, 1
        %s398 = smul.addr %s397, 8
        %s399 = scalar_lea.vmem [#allocation7], %s398
        // Predicated region
        $region65: #{tpu_custom_call.1} parent=59 // pred_check
          %p400 = pneg %p72
        $region66: #{tpu_custom_call.1} parent=59 // pred_check_branch
          %402 = sbr.rel (%p400) target = $region68
        $region67: #{tpu_custom_call.1} parent=59 // pred_region
          %403 = dma.done %s396, 128
        $region68: #{tpu_custom_call.1} parent=59 // pred_fallthru
          _
        // Predicated region
        $region69: #{tpu_custom_call.1} parent=59 // pred_check
          %p404 = pneg %p119
        $region70: #{tpu_custom_call.1} parent=59 // pred_check_branch
          %406 = sbr.rel (%p404) target = $region72
        $region71: #{tpu_custom_call.1} parent=59 // pred_region
          %407 = dma.done [#allocation9], 3072
        $region72: #{tpu_custom_call.1} parent=59 // pred_fallthru
          _
        // Predicated region
        $region73: #{tpu_custom_call.1} parent=59 // pred_check
          %p408 = pneg %p140
        $region74: #{tpu_custom_call.1} parent=59 // pred_check_branch
          %410 = sbr.rel (%p408) target = $region76
        $region75: #{tpu_custom_call.1} parent=59 // pred_region
          %411 = dma.done [#allocation9], 1024
        $region76: #{tpu_custom_call.1} parent=59 // pred_fallthru
          _
        // Predicated region
        $region77: #{tpu_custom_call.1} parent=59 // pred_check
          %p412 = pneg %p182
        $region78: #{tpu_custom_call.1} parent=59 // pred_check_branch
          %414 = sbr.rel (%p412) target = $region80
        $region79: #{tpu_custom_call.1} parent=59 // pred_region
          %415 = dma.done [#allocation12], 2048
        $region80: #{tpu_custom_call.1} parent=59 // pred_fallthru
          _
        // Predicated region
        $region81: #{tpu_custom_call.1} parent=59 // pred_check
          %p416 = pneg %p224
        $region82: #{tpu_custom_call.1} parent=59 // pred_check_branch
          %418 = sbr.rel (%p416) target = $region84
        $region83: #{tpu_custom_call.1} parent=59 // pred_region
          %419 = dma.done [#allocation12], 2048
        $region84: #{tpu_custom_call.1} parent=59 // pred_fallthru
          _
        %420 = sfence
        %p421 = pneg %p46
        %p422 = pneg %p43
        %s423 = sand.u32 %s59, 1
        %s424 = scalar_lea.sflag [#allocation4], %s423
        %s425 = sand.u32 %s59, 1
        %s426 = smul.addr %s425, 8
        %s427 = scalar_lea.vmem [#allocation7], %s426
        %p428 = pneg %p72
        %p429 = pneg %p69
        %p430 = scmp.lt.s32.totalorder %s30, 1
        %s431 = scalar_select %p430, %s30, 1
        %s432 = scalar_lea.vmem %s2, %s431
        %p433 = pneg %p98
        %p434 = pneg %p95
        %p435 = pneg %p119
        %p436 = pneg %p116
        %p437 = pneg %p140
        %p438 = pneg %p137
        %p439 = pneg %p161
        %p440 = pneg %p158
        %p441 = pneg %p182
        %p442 = pneg %p179
        %p443 = pneg %p203
        %p444 = pneg %p200
        %p445 = pneg %p224
        %p446 = pneg %p221
        %p447 = pneg %p245
        %p448 = pneg %p242
        %p449 = pneg %p271
        %p450 = pneg %p268
        %s451 = sand.u32 %s258, 1
        %s452 = scalar_lea.sflag [#allocation5], %s451
        %s453 = sand.u32 %s258, 1
        %s454 = smul.addr %s453, 8
        %s455 = scalar_lea.vmem [#allocation14], %s454
        %p456 = scmp.lt.s32.totalorder %s30, 1
        %s457 = scalar_select %p456, %s30, 1
        %s458 = scalar_lea.vmem %s2, %s457
        %s460 = sld [smem:[#allocation3]]
        %s461 = sld [smem:[#allocation3 + $0x1]]
        %s462 = sld [smem:[#allocation3 + $0x2]]
        %s463 = sld [smem:[#allocation3 + $0x3]]
        %v464 = vld [vmem:[%s399] sm:$0xff]
        %465 = vadd.xlane.f32.xlu0 %v464
        %v466 = vpop.xlane.xlu0 %465
        %v467 = vmul.f32 %v466, 0.0078125
        %v468 = vsub.f32 %v464, %v467
        %v469 = vmul.f32 %v468, %v468
        %470 = vadd.xlane.f32.xlu0 %v469
        %v471 = vpop.xlane.xlu0 %470
        %v472 = vmul.f32 %v471, 0.007874016
        %v473 = vrsqrt.pop %v472
        %v474 = vmul.f32 %v472, %v473
        %vm475 = vcmp.eq.f32.partialorder %v472, inf
        %v476 = vsel %vm475, %v472, %v474
        %vm477 = vcmp.eq.f32.partialorder %v472, 0.0
        %v478 = vand.u32 %v472, 2147483648
        %v479 = vsel %vm477, %v478, %v476
        %v480 = vadd.f32 %v479, 1e-06
        %v481 = vrcp.pop %v480
        %v482 = vstv %s460
        %v483 = vmul.f32 %v482, %v468
        %v484 = vmul.f32 %v483, %v481
        %v485 = vstv %s461
        %v486 = vadd.f32 %v484, %v485
        %v487 = vpack.c.bf16 %v486, %v486
        %v488 = vld [vmem:[#allocation8] sm:$0xff]
        %v489 = vld [vmem:[#allocation8 + $0x8] sm:$0xf]
        %v490 = vld [vmem:[#allocation8 + $0xc] sm:$0xff]
        %v491 = vld [vmem:[#allocation8 + $0x14] sm:$0xf]
        %v492 = vld [vmem:[#allocation8 + $0x18] sm:$0xff]
        %v493 = vld [vmem:[#allocation8 + $0x20] sm:$0xf]
        %v494 = vld [vmem:[#allocation8 + $0x24] sm:$0xff]
        %v495 = vld [vmem:[#allocation8 + $0x2c] sm:$0xf]
        %v496 = vld [vmem:[#allocation8 + $0x30] sm:$0xff]
        %v497 = vld [vmem:[#allocation8 + $0x38] sm:$0xf]
        %v498 = vld [vmem:[#allocation8 + $0x3c] sm:$0xff]
        %v499 = vld [vmem:[#allocation8 + $0x44] sm:$0xf]
        %v500 = vld [vmem:[#allocation8 + $0x48] sm:$0xff]
        %v501 = vld [vmem:[#allocation8 + $0x50] sm:$0xf]
        %v502 = vld [vmem:[#allocation8 + $0x54] sm:$0xff]
        %v503 = vld [vmem:[#allocation8 + $0x5c] sm:$0xf]
        %v504 = vld [vmem:[#allocation8 + $0x60] sm:$0xff]
        %v505 = vld [vmem:[#allocation8 + $0x68] sm:$0xf]
        %v506 = vld [vmem:[#allocation8 + $0x6c] sm:$0xff]
        %v507 = vld [vmem:[#allocation8 + $0x74] sm:$0xf]
        %v508 = vld [vmem:[#allocation8 + $0x78] sm:$0xff]
        %v509 = vld [vmem:[#allocation8 + $0x80] sm:$0xf]
        %v510 = vld [vmem:[#allocation8 + $0x84] sm:$0xff]
        %v511 = vld [vmem:[#allocation8 + $0x8c] sm:$0xf]
        %v512 = vld [vmem:[#allocation8 + $0x90] sm:$0xff]
        %v513 = vld [vmem:[#allocation8 + $0x98] sm:$0xf]
        %v514 = vld [vmem:[#allocation8 + $0x9c] sm:$0xff]
        %v515 = vld [vmem:[#allocation8 + $0xa4] sm:$0xf]
        %v516 = vld [vmem:[#allocation8 + $0xa8] sm:$0xff]
        %v517 = vld [vmem:[#allocation8 + $0xb0] sm:$0xf]
        %v518 = vld [vmem:[#allocation8 + $0xb4] sm:$0xff]
        %v519 = vld [vmem:[#allocation8 + $0xbc] sm:$0xf]
        %v552 = vunpack.c.l.b16 %v488
        %v553 = vunpack.c.h.b16 %v488
        %v554 = vunpack.c.l.b16 %v489
        %v555 = vunpack.c.l.b16 %v490
        %v556 = vunpack.c.h.b16 %v490
        %v557 = vunpack.c.l.b16 %v491
        %v558 = vunpack.c.l.b16 %v492
        %v559 = vunpack.c.h.b16 %v492
        %v560 = vunpack.c.l.b16 %v493
        %v561 = vunpack.c.l.b16 %v494
        %v562 = vunpack.c.h.b16 %v494
        %v563 = vunpack.c.l.b16 %v495
        %v564 = vunpack.c.l.b16 %v496
        %v565 = vunpack.c.h.b16 %v496
        %v566 = vunpack.c.l.b16 %v497
        %v567 = vunpack.c.l.b16 %v498
        %v568 = vunpack.c.h.b16 %v498
        %v569 = vunpack.c.l.b16 %v499
        %v570 = vunpack.c.l.b16 %v500
        %v571 = vunpack.c.h.b16 %v500
        %v572 = vunpack.c.l.b16 %v501
        %v573 = vunpack.c.l.b16 %v502
        %v574 = vunpack.c.h.b16 %v502
        %v575 = vunpack.c.l.b16 %v503
        %v576 = vunpack.c.l.b16 %v504
        %v577 = vunpack.c.h.b16 %v504
        %v578 = vunpack.c.l.b16 %v505
        %v579 = vunpack.c.l.b16 %v506
        %v580 = vunpack.c.h.b16 %v506
        %v581 = vunpack.c.l.b16 %v507
        %v582 = vunpack.c.l.b16 %v508
        %v583 = vunpack.c.h.b16 %v508
        %v584 = vunpack.c.l.b16 %v509
        %v585 = vunpack.c.l.b16 %v510
        %v586 = vunpack.c.h.b16 %v510
        %v587 = vunpack.c.l.b16 %v511
        %v588 = vunpack.c.l.b16 %v512
        %v589 = vunpack.c.h.b16 %v512
        %v590 = vunpack.c.l.b16 %v513
        %v591 = vunpack.c.l.b16 %v514
        %v592 = vunpack.c.h.b16 %v514
        %v593 = vunpack.c.l.b16 %v515
        %v594 = vunpack.c.l.b16 %v516
        %v595 = vunpack.c.h.b16 %v516
        %v596 = vunpack.c.l.b16 %v517
        %v597 = vunpack.c.l.b16 %v518
        %v598 = vunpack.c.h.b16 %v518
        %v599 = vunpack.c.l.b16 %v519
        %v600 = vpack.c.b16 %v555, %v552
        %v601 = vpack.c.b16 %v556, %v553
        %v602 = vpack.c.b16 %v557, %v554
        %v603 = vpack.c.b16 %v561, %v558
        %v604 = vpack.c.b16 %v562, %v559
        %v605 = vpack.c.b16 %v563, %v560
        %v606 = vpack.c.b16 %v567, %v564
        %v607 = vpack.c.b16 %v568, %v565
        %v608 = vpack.c.b16 %v569, %v566
        %v609 = vpack.c.b16 %v573, %v570
        %v610 = vpack.c.b16 %v574, %v571
        %v611 = vpack.c.b16 %v575, %v572
        %v612 = vpack.c.b16 %v579, %v576
        %v613 = vpack.c.b16 %v580, %v577
        %v614 = vpack.c.b16 %v581, %v578
        %v615 = vpack.c.b16 %v585, %v582
        %v616 = vpack.c.b16 %v586, %v583
        %v617 = vpack.c.b16 %v587, %v584
        %v618 = vpack.c.b16 %v591, %v588
        %v619 = vpack.c.b16 %v592, %v589
        %v620 = vpack.c.b16 %v593, %v590
        %v621 = vpack.c.b16 %v597, %v594
        %v622 = vpack.c.b16 %v598, %v595
        %v623 = vpack.c.b16 %v599, %v596
        %648 = vmatprep.subr.bf16.mxu0 %v601
        %649 = vmatpush1.bf16.msra.mxu0 %v600
        %650 = vmatprep.subr.bf16.mxu0 %v604
        %651 = vmatpush1.bf16.msra.mxu0 %v603
        %652 = vmatprep.subr.bf16.mxu0 %v607
        %653 = vmatpush1.bf16.msra.mxu0 %v606
        %654 = vmatprep.subr.bf16.mxu0 %v610
        %655 = vmatpush1.bf16.msra.mxu0 %v609
        %656 = vmatprep.subr.bf16.mxu0 %v613
        %657 = vmatpush1.bf16.msra.mxu0 %v612
        %658 = vmatprep.subr.bf16.mxu0 %v616
        %659 = vmatpush1.bf16.msra.mxu0 %v615
        %660 = vmatprep.subr.bf16.mxu0 %v619
        %661 = vmatpush1.bf16.msra.mxu0 %v618
        %662 = vmatprep.subr.bf16.mxu0 %v622
        %663 = vmatpush1.bf16.msra.mxu0 %v621
        %664 = vmatprep.subr.bf16.mxu0 0
        %665 = vmatpush1.bf16.msra.mxu0 0
        %666 = vmatprep.subr.bf16.mxu0 0
        %667 = vmatpush1.bf16.msra.mxu0 0
        %668 = vmatprep.subr.bf16.mxu0 0
        %669 = vmatpush1.bf16.msra.mxu0 0
        %670 = vmatprep.subr.bf16.mxu0 0
        %671 = vmatpush1.bf16.msra.mxu0 0
        %672 = vmatprep.subr.bf16.mxu0 0
        %673 = vmatpush1.bf16.msra.mxu0 0
        %674 = vmatprep.subr.bf16.mxu0 0
        %675 = vmatpush1.bf16.msra.mxu0 0
        %676 = vmatprep.subr.bf16.mxu0 0
        %677 = vmatpush1.bf16.msra.mxu0 0
        %678 = vmatprep.subr.bf16.mxu0 0
        %679 = vmatpush1.bf16.msra.mxu0 0
        %680 = vmatprep.mubr.bf16.mxu0 0
        %681 = vmatmul.mubr.bf16.gmra.mrb[0].mxu0 %v487
        %v682 = vpop.f32.mrb[0].mxu0
        %v683 = vadd.f32 0.0, %v682
        %v684 = vpop.f32.mrb[0].mxu0
        %v685 = vadd.f32 0.0, %v684
        %v686 = vpop.f32.mrb[0].mxu0
        %v687 = vpop.f32.mrb[0].mxu0
        %688 = vdwg.mxu0
        %689 = vmatprep.subr.bf16.mxu0 0
        %690 = vmatpush1.bf16.msra.mxu0 %v602
        %691 = vmatprep.subr.bf16.mxu0 0
        %692 = vmatpush1.bf16.msra.mxu0 %v605
        %693 = vmatprep.subr.bf16.mxu0 0
        %694 = vmatpush1.bf16.msra.mxu0 %v608
        %695 = vmatprep.subr.bf16.mxu0 0
        %696 = vmatpush1.bf16.msra.mxu0 %v611
        %697 = vmatprep.subr.bf16.mxu0 0
        %698 = vmatpush1.bf16.msra.mxu0 %v614
        %699 = vmatprep.subr.bf16.mxu0 0
        %700 = vmatpush1.bf16.msra.mxu0 %v617
        %701 = vmatprep.subr.bf16.mxu0 0
        %702 = vmatpush1.bf16.msra.mxu0 %v620
        %703 = vmatprep.subr.bf16.mxu0 0
        %704 = vmatpush1.bf16.msra.mxu0 %v623
        %705 = vmatprep.subr.bf16.mxu0 0
        %706 = vmatpush1.bf16.msra.mxu0 0
        %707 = vmatprep.subr.bf16.mxu0 0
        %708 = vmatpush1.bf16.msra.mxu0 0
        %709 = vmatprep.subr.bf16.mxu0 0
        %710 = vmatpush1.bf16.msra.mxu0 0
        %711 = vmatprep.subr.bf16.mxu0 0
        %712 = vmatpush1.bf16.msra.mxu0 0
        %713 = vmatprep.subr.bf16.mxu0 0
        %714 = vmatpush1.bf16.msra.mxu0 0
        %715 = vmatprep.subr.bf16.mxu0 0
        %716 = vmatpush1.bf16.msra.mxu0 0
        %717 = vmatprep.subr.bf16.mxu0 0
        %718 = vmatpush1.bf16.msra.mxu0 0
        %719 = vmatprep.subr.bf16.mxu0 0
        %720 = vmatpush1.bf16.msra.mxu0 0
        %721 = vmatprep.mubr.bf16.mxu0 0
        %722 = vmatmul.mubr.bf16.gmra.mrb[0].mxu0 %v487
        %v723 = vpop.f32.mrb[0].mxu0
        %v724 = vadd.f32 0.0, %v723
        %v725 = vpop.f32.mrb[0].mxu0
        %v726 = vpop.f32.mrb[0].mxu0
        %v727 = vpop.f32.mrb[0].mxu0
        %728 = vdwg.mxu0
        %v729 = vpack.c.bf16 %v683, %v683
        %v730 = vpack.c.bf16 %v685, %v685
        %v731 = vpack.c.bf16 %v724, %v724
        %v732 = vld [vmem:[%s458] sm:$0x1]
        %v733 = vsub.f32 %v732, 1.0
        %v734 = vmul.f32 %v733, 1e+09
        %v736 = vlaneseq
        %v737 = vshrl.u32 %v736, 7
        %v738 = vsub.s32 0, %v737
        %v739 = vrot.slane %v734, %v738
        %vm741 = vcmask 261120
        %v743 = vsel %vm741, %v729, 0
        %v746 = vsel %vm741, %v730, 0
        %748 = vmatprep.subr.bf16.mxu0 0
        %749 = vmatpush1.bf16.xpose.msra.mxu0 %v746
        %750 = vmatprep.subr.bf16.mxu0 0
        %751 = vmatpush1.bf16.xpose.msra.mxu0 0
        %752 = vmatprep.subr.bf16.mxu0 0
        %753 = vmatpush1.bf16.xpose.msra.mxu0 0
        %754 = vmatprep.subr.bf16.mxu0 0
        %755 = vmatpush1.bf16.xpose.msra.mxu0 0
        %756 = vmatprep.subr.bf16.mxu0 0
        %757 = vmatpush1.bf16.xpose.msra.mxu0 0
        %758 = vmatprep.subr.bf16.mxu0 0
        %759 = vmatpush1.bf16.xpose.msra.mxu0 0
        %760 = vmatprep.subr.bf16.mxu0 0
        %761 = vmatpush1.bf16.xpose.msra.mxu0 0
        %762 = vmatprep.subr.bf16.mxu0 0
        %763 = vmatpush1.bf16.xpose.msra.mxu0 0
        %764 = vmatprep.subr.bf16.mxu0 0
        %765 = vmatpush1.bf16.xpose.msra.mxu0 0
        %766 = vmatprep.subr.bf16.mxu0 0
        %767 = vmatpush1.bf16.xpose.msra.mxu0 0
        %768 = vmatprep.subr.bf16.mxu0 0
        %769 = vmatpush1.bf16.xpose.msra.mxu0 0
        %770 = vmatprep.subr.bf16.mxu0 0
        %771 = vmatpush1.bf16.xpose.msra.mxu0 0
        %772 = vmatprep.subr.bf16.mxu0 0
        %773 = vmatpush1.bf16.xpose.msra.mxu0 0
        %774 = vmatprep.subr.bf16.mxu0 0
        %775 = vmatpush1.bf16.xpose.msra.mxu0 0
        %776 = vmatprep.subr.bf16.mxu0 0
        %777 = vmatpush1.bf16.xpose.msra.mxu0 0
        %778 = vmatprep.subr.bf16.mxu0 0
        %779 = vmatpush1.bf16.xpose.msra.mxu0 0
        %780 = vmatprep.mubr.bf16.mxu0 0
        %781 = vmatmul.mubr.bf16.gmra.mrb[0].mxu0 %v743
        %v782 = vpop.f32.mrb[0].mxu0
        %v783 = vadd.f32 %v739, %v782
        %v784 = vpop.f32.mrb[0].mxu0
        %v785 = vpop.f32.mrb[0].mxu0
        %v786 = vpop.f32.mrb[0].mxu0
        %787 = vdwg.mxu0
        %vm788 = vcmask 64512
        %v789 = vsel %vm788, %v783, -inf
        %790 = vmax.xlane.f32.xlu0 %v789
        %v791 = vpop.xlane.xlu0 %790
        %v792 = vsub.f32 %v783, %v791
        %v793 = vmul.f32 %v792, 1.442695
        %v794 = vpow.pop %v793
        %v795 = vsel %vm788, %v794, 0.0
        %796 = vadd.xlane.f32.xlu0 %v795
        %v797 = vpop.xlane.xlu0 %796
        %v798 = vrcp.pop %v797
        %v799 = vmul.f32 %v794, %v798
        %v800 = vpack.c.bf16 %v799, %v799
        %v802 = vsel %vm788, %v800, 0
        %vm804 = vcmask 1043456
        %v806 = vsel %vm804, %v731, 0
        %808 = vmatprep.subr.bf16.mxu0 0
        %809 = vmatpush1.bf16.msra.mxu0 %v806
        %810 = vmatprep.subr.bf16.mxu0 0
        %811 = vmatpush1.bf16.msra.mxu0 0
        %812 = vmatprep.subr.bf16.mxu0 0
        %813 = vmatpush1.bf16.msra.mxu0 0
        %814 = vmatprep.subr.bf16.mxu0 0
        %815 = vmatpush1.bf16.msra.mxu0 0
        %816 = vmatprep.subr.bf16.mxu0 0
        %817 = vmatpush1.bf16.msra.mxu0 0
        %818 = vmatprep.subr.bf16.mxu0 0
        %819 = vmatpush1.bf16.msra.mxu0 0
        %820 = vmatprep.subr.bf16.mxu0 0
        %821 = vmatpush1.bf16.msra.mxu0 0
        %822 = vmatprep.subr.bf16.mxu0 0
        %823 = vmatpush1.bf16.msra.mxu0 0
        %824 = vmatprep.subr.bf16.mxu0 0
        %825 = vmatpush1.bf16.msra.mxu0 0
        %826 = vmatprep.subr.bf16.mxu0 0
        %827 = vmatpush1.bf16.msra.mxu0 0
        %828 = vmatprep.subr.bf16.mxu0 0
        %829 = vmatpush1.bf16.msra.mxu0 0
        %830 = vmatprep.subr.bf16.mxu0 0
        %831 = vmatpush1.bf16.msra.mxu0 0
        %832 = vmatprep.subr.bf16.mxu0 0
        %833 = vmatpush1.bf16.msra.mxu0 0
        %834 = vmatprep.subr.bf16.mxu0 0
        %835 = vmatpush1.bf16.msra.mxu0 0
        %836 = vmatprep.subr.bf16.mxu0 0
        %837 = vmatpush1.bf16.msra.mxu0 0
        %838 = vmatprep.subr.bf16.mxu0 0
        %839 = vmatpush1.bf16.msra.mxu0 0
        %840 = vmatprep.mubr.bf16.mxu0 0
        %841 = vmatmul.mubr.bf16.gmra.mrb[0].mxu0 %v802
        %v842 = vpop.f32.mrb[0].mxu0
        %v843 = vadd.f32 0.0, %v842
        %v844 = vpop.f32.mrb[0].mxu0
        %v845 = vpop.f32.mrb[0].mxu0
        %v846 = vpop.f32.mrb[0].mxu0
        %847 = vdwg.mxu0
        %v848 = vpack.c.bf16 %v843, %v843
        %vm849 = vcmask 257024
        %850 = vst.msk [vmem:[#allocation2] sm:$0xf] %vm849, %v848
        %852 = vrot.lane.b32.xlu0 %v729, 96
        %v853 = vpop.permute.xlu0 %852
        %855 = vrot.lane.b32.xlu0 %v730, 96
        %v856 = vpop.permute.xlu0 %855
        %v858 = vsel %vm741, %v853, 0
        %v861 = vsel %vm741, %v856, 0
        %863 = vmatprep.subr.bf16.mxu0 0
        %864 = vmatpush1.bf16.xpose.msra.mxu0 %v861
        %865 = vmatprep.subr.bf16.mxu0 0
        %866 = vmatpush1.bf16.xpose.msra.mxu0 0
        %867 = vmatprep.subr.bf16.mxu0 0
        %868 = vmatpush1.bf16.xpose.msra.mxu0 0
        %869 = vmatprep.subr.bf16.mxu0 0
        %870 = vmatpush1.bf16.xpose.msra.mxu0 0
        %871 = vmatprep.subr.bf16.mxu0 0
        %872 = vmatpush1.bf16.xpose.msra.mxu0 0
        %873 = vmatprep.subr.bf16.mxu0 0
        %874 = vmatpush1.bf16.xpose.msra.mxu0 0
        %875 = vmatprep.subr.bf16.mxu0 0
        %876 = vmatpush1.bf16.xpose.msra.mxu0 0
        %877 = vmatprep.subr.bf16.mxu0 0
        %878 = vmatpush1.bf16.xpose.msra.mxu0 0
        %879 = vmatprep.subr.bf16.mxu0 0
        %880 = vmatpush1.bf16.xpose.msra.mxu0 0
        %881 = vmatprep.subr.bf16.mxu0 0
        %882 = vmatpush1.bf16.xpose.msra.mxu0 0
        %883 = vmatprep.subr.bf16.mxu0 0
        %884 = vmatpush1.bf16.xpose.msra.mxu0 0
        %885 = vmatprep.subr.bf16.mxu0 0
        %886 = vmatpush1.bf16.xpose.msra.mxu0 0
        %887 = vmatprep.subr.bf16.mxu0 0
        %888 = vmatpush1.bf16.xpose.msra.mxu0 0
        %889 = vmatprep.subr.bf16.mxu0 0
        %890 = vmatpush1.bf16.xpose.msra.mxu0 0
        %891 = vmatprep.subr.bf16.mxu0 0
        %892 = vmatpush1.bf16.xpose.msra.mxu0 0
        %893 = vmatprep.subr.bf16.mxu0 0
        %894 = vmatpush1.bf16.xpose.msra.mxu0 0
        %895 = vmatprep.mubr.bf16.mxu0 0
        %896 = vmatmul.mubr.bf16.gmra.mrb[0].mxu0 %v858
        %v897 = vpop.f32.mrb[0].mxu0
        %v898 = vadd.f32 %v739, %v897
        %v899 = vpop.f32.mrb[0].mxu0
        %v900 = vpop.f32.mrb[0].mxu0
        %v901 = vpop.f32.mrb[0].mxu0
        %902 = vdwg.mxu0
        %v903 = vsel %vm788, %v898, -inf
        %904 = vmax.xlane.f32.xlu0 %v903
        %v905 = vpop.xlane.xlu0 %904
        %v906 = vsub.f32 %v898, %v905
        %v907 = vmul.f32 %v906, 1.442695
        %v908 = vpow.pop %v907
        %v909 = vsel %vm788, %v908, 0.0
        %910 = vadd.xlane.f32.xlu0 %v909
        %v911 = vpop.xlane.xlu0 %910
        %v912 = vrcp.pop %v911
        %v913 = vmul.f32 %v908, %v912
        %v914 = vpack.c.bf16 %v913, %v913
        %916 = vrot.lane.b32.xlu0 %v731, 96
        %v917 = vpop.permute.xlu0 %916
        %v919 = vsel %vm788, %v914, 0
        %v922 = vsel %vm804, %v917, 0
        %924 = vmatprep.subr.bf16.mxu0 0
        %925 = vmatpush1.bf16.msra.mxu0 %v922
        %926 = vmatprep.subr.bf16.mxu0 0
        %927 = vmatpush1.bf16.msra.mxu0 0
        %928 = vmatprep.subr.bf16.mxu0 0
        %929 = vmatpush1.bf16.msra.mxu0 0
        %930 = vmatprep.subr.bf16.mxu0 0
        %931 = vmatpush1.bf16.msra.mxu0 0
        %932 = vmatprep.subr.bf16.mxu0 0
        %933 = vmatpush1.bf16.msra.mxu0 0
        %934 = vmatprep.subr.bf16.mxu0 0
        %935 = vmatpush1.bf16.msra.mxu0 0
        %936 = vmatprep.subr.bf16.mxu0 0
        %937 = vmatpush1.bf16.msra.mxu0 0
        %938 = vmatprep.subr.bf16.mxu0 0
        %939 = vmatpush1.bf16.msra.mxu0 0
        %940 = vmatprep.subr.bf16.mxu0 0
        %941 = vmatpush1.bf16.msra.mxu0 0
        %942 = vmatprep.subr.bf16.mxu0 0
        %943 = vmatpush1.bf16.msra.mxu0 0
        %944 = vmatprep.subr.bf16.mxu0 0
        %945 = vmatpush1.bf16.msra.mxu0 0
        %946 = vmatprep.subr.bf16.mxu0 0
        %947 = vmatpush1.bf16.msra.mxu0 0
        %948 = vmatprep.subr.bf16.mxu0 0
        %949 = vmatpush1.bf16.msra.mxu0 0
        %950 = vmatprep.subr.bf16.mxu0 0
        %951 = vmatpush1.bf16.msra.mxu0 0
        %952 = vmatprep.subr.bf16.mxu0 0
        %953 = vmatpush1.bf16.msra.mxu0 0
        %954 = vmatprep.subr.bf16.mxu0 0
        %955 = vmatpush1.bf16.msra.mxu0 0
        %956 = vmatprep.mubr.bf16.mxu0 0
        %957 = vmatmul.mubr.bf16.gmra.mrb[0].mxu0 %v919
        %v958 = vpop.f32.mrb[0].mxu0
        %v959 = vadd.f32 0.0, %v958
        %v960 = vpop.f32.mrb[0].mxu0
        %v961 = vpop.f32.mrb[0].mxu0
        %v962 = vpop.f32.mrb[0].mxu0
        %963 = vdwg.mxu0
        %v964 = vpack.c.bf16 %v959, %v959
        %v966 = vunpack.c.l.b16 %v964
        %v967 = vpack.c.b16 %v966, %v966
        %968 = vrot.lane.b32.xlu0 %v967, 32
        %v969 = vpop.permute.xlu0 %968
        %vm971 = vcmask 519424
        %972 = vst.msk [vmem:[#allocation2] sm:$0xf] %vm971, %v969
        %973 = vrot.lane.b32.xlu0 %v729, 64
        %v974 = vpop.permute.xlu0 %973
        %975 = vrot.lane.b32.xlu0 %v730, 64
        %v976 = vpop.permute.xlu0 %975
        %v978 = vsel %vm741, %v974, 0
        %v981 = vsel %vm741, %v976, 0
        %983 = vmatprep.subr.bf16.mxu0 0
        %984 = vmatpush1.bf16.xpose.msra.mxu0 %v981
        %985 = vmatprep.subr.bf16.mxu0 0
        %986 = vmatpush1.bf16.xpose.msra.mxu0 0
        %987 = vmatprep.subr.bf16.mxu0 0
        %988 = vmatpush1.bf16.xpose.msra.mxu0 0
        %989 = vmatprep.subr.bf16.mxu0 0
        %990 = vmatpush1.bf16.xpose.msra.mxu0 0
        %991 = vmatprep.subr.bf16.mxu0 0
        %992 = vmatpush1.bf16.xpose.msra.mxu0 0
        %993 = vmatprep.subr.bf16.mxu0 0
        %994 = vmatpush1.bf16.xpose.msra.mxu0 0
        %995 = vmatprep.subr.bf16.mxu0 0
        %996 = vmatpush1.bf16.xpose.msra.mxu0 0
        %997 = vmatprep.subr.bf16.mxu0 0
        %998 = vmatpush1.bf16.xpose.msra.mxu0 0
        %999 = vmatprep.subr.bf16.mxu0 0
        %1000 = vmatpush1.bf16.xpose.msra.mxu0 0
        %1001 = vmatprep.subr.bf16.mxu0 0
        %1002 = vmatpush1.bf16.xpose.msra.mxu0 0
        %1003 = vmatprep.subr.bf16.mxu0 0
        %1004 = vmatpush1.bf16.xpose.msra.mxu0 0
        %1005 = vmatprep.subr.bf16.mxu0 0
        %1006 = vmatpush1.bf16.xpose.msra.mxu0 0
        %1007 = vmatprep.subr.bf16.mxu0 0
        %1008 = vmatpush1.bf16.xpose.msra.mxu0 0
        %1009 = vmatprep.subr.bf16.mxu0 0
        %1010 = vmatpush1.bf16.xpose.msra.mxu0 0
        %1011 = vmatprep.subr.bf16.mxu0 0
        %1012 = vmatpush1.bf16.xpose.msra.mxu0 0
        %1013 = vmatprep.subr.bf16.mxu0 0
        %1014 = vmatpush1.bf16.xpose.msra.mxu0 0
        %1015 = vmatprep.mubr.bf16.mxu0 0
        %1016 = vmatmul.mubr.bf16.gmra.mrb[0].mxu0 %v978
        %v1017 = vpop.f32.mrb[0].mxu0
        %v1018 = vadd.f32 %v739, %v1017
        %v1019 = vpop.f32.mrb[0].mxu0
        %v1020 = vpop.f32.mrb[0].mxu0
        %v1021 = vpop.f32.mrb[0].mxu0
        %1022 = vdwg.mxu0
        %v1023 = vsel %vm788, %v1018, -inf
        %1024 = vmax.xlane.f32.xlu0 %v1023
        %v1025 = vpop.xlane.xlu0 %1024
        %v1026 = vsub.f32 %v1018, %v1025
        %v1027 = vmul.f32 %v1026, 1.442695
        %v1028 = vpow.pop %v1027
        %v1029 = vsel %vm788, %v1028, 0.0
        %1030 = vadd.xlane.f32.xlu0 %v1029
        %v1031 = vpop.xlane.xlu0 %1030
        %v1032 = vrcp.pop %v1031
        %v1033 = vmul.f32 %v1028, %v1032
        %v1034 = vpack.c.bf16 %v1033, %v1033
        %1035 = vrot.lane.b32.xlu0 %v731, 64
        %v1036 = vpop.permute.xlu0 %1035
        %v1038 = vsel %vm788, %v1034, 0
        %v1041 = vsel %vm804, %v1036, 0
        %1043 = vmatprep.subr.bf16.mxu0 0
        %1044 = vmatpush1.bf16.msra.mxu0 %v1041
        %1045 = vmatprep.subr.bf16.mxu0 0
        %1046 = vmatpush1.bf16.msra.mxu0 0
        %1047 = vmatprep.subr.bf16.mxu0 0
        %1048 = vmatpush1.bf16.msra.mxu0 0
        %1049 = vmatprep.subr.bf16.mxu0 0
        %1050 = vmatpush1.bf16.msra.mxu0 0
        %1051 = vmatprep.subr.bf16.mxu0 0
        %1052 = vmatpush1.bf16.msra.mxu0 0
        %1053 = vmatprep.subr.bf16.mxu0 0
        %1054 = vmatpush1.bf16.msra.mxu0 0
        %1055 = vmatprep.subr.bf16.mxu0 0
        %1056 = vmatpush1.bf16.msra.mxu0 0
        %1057 = vmatprep.subr.bf16.mxu0 0
        %1058 = vmatpush1.bf16.msra.mxu0 0
        %1059 = vmatprep.subr.bf16.mxu0 0
        %1060 = vmatpush1.bf16.msra.mxu0 0
        %1061 = vmatprep.subr.bf16.mxu0 0
        %1062 = vmatpush1.bf16.msra.mxu0 0
        %1063 = vmatprep.subr.bf16.mxu0 0
        %1064 = vmatpush1.bf16.msra.mxu0 0
        %1065 = vmatprep.subr.bf16.mxu0 0
        %1066 = vmatpush1.bf16.msra.mxu0 0
        %1067 = vmatprep.subr.bf16.mxu0 0
        %1068 = vmatpush1.bf16.msra.mxu0 0
        %1069 = vmatprep.subr.bf16.mxu0 0
        %1070 = vmatpush1.bf16.msra.mxu0 0
        %1071 = vmatprep.subr.bf16.mxu0 0
        %1072 = vmatpush1.bf16.msra.mxu0 0
        %1073 = vmatprep.subr.bf16.mxu0 0
        %1074 = vmatpush1.bf16.msra.mxu0 0
        %1075 = vmatprep.mubr.bf16.mxu0 0
        %1076 = vmatmul.mubr.bf16.gmra.mrb[0].mxu0 %v1038
        %v1077 = vpop.f32.mrb[0].mxu0
        %v1078 = vadd.f32 0.0, %v1077
        %v1079 = vpop.f32.mrb[0].mxu0
        %v1080 = vpop.f32.mrb[0].mxu0
        %v1081 = vpop.f32.mrb[0].mxu0
        %1082 = vdwg.mxu0
        %v1083 = vpack.c.bf16 %v1078, %v1078
        %v1085 = vunpack.c.l.b16 %v1083
        %v1086 = vpack.c.b16 %v1085, %v1085
        %1087 = vrot.lane.b32.xlu0 %v1086, 64
        %v1088 = vpop.permute.xlu0 %1087
        %vm1090 = vcmask 781824
        %1091 = vst.msk [vmem:[#allocation2] sm:$0xf] %vm1090, %v1088
        %1092 = vrot.lane.b32.xlu0 %v729, 32
        %v1093 = vpop.permute.xlu0 %1092
        %1094 = vrot.lane.b32.xlu0 %v730, 32
        %v1095 = vpop.permute.xlu0 %1094
        %v1097 = vsel %vm741, %v1093, 0
        %v1100 = vsel %vm741, %v1095, 0
        %1102 = vmatprep.subr.bf16.mxu0 0
        %1103 = vmatpush1.bf16.xpose.msra.mxu0 %v1100
        %1104 = vmatprep.subr.bf16.mxu0 0
        %1105 = vmatpush1.bf16.xpose.msra.mxu0 0
        %1106 = vmatprep.subr.bf16.mxu0 0
        %1107 = vmatpush1.bf16.xpose.msra.mxu0 0
        %1108 = vmatprep.subr.bf16.mxu0 0
        %1109 = vmatpush1.bf16.xpose.msra.mxu0 0
        %1110 = vmatprep.subr.bf16.mxu0 0
        %1111 = vmatpush1.bf16.xpose.msra.mxu0 0
        %1112 = vmatprep.subr.bf16.mxu0 0
        %1113 = vmatpush1.bf16.xpose.msra.mxu0 0
        %1114 = vmatprep.subr.bf16.mxu0 0
        %1115 = vmatpush1.bf16.xpose.msra.mxu0 0
        %1116 = vmatprep.subr.bf16.mxu0 0
        %1117 = vmatpush1.bf16.xpose.msra.mxu0 0
        %1118 = vmatprep.subr.bf16.mxu0 0
        %1119 = vmatpush1.bf16.xpose.msra.mxu0 0
        %1120 = vmatprep.subr.bf16.mxu0 0
        %1121 = vmatpush1.bf16.xpose.msra.mxu0 0
        %1122 = vmatprep.subr.bf16.mxu0 0
        %1123 = vmatpush1.bf16.xpose.msra.mxu0 0
        %1124 = vmatprep.subr.bf16.mxu0 0
        %1125 = vmatpush1.bf16.xpose.msra.mxu0 0
        %1126 = vmatprep.subr.bf16.mxu0 0
        %1127 = vmatpush1.bf16.xpose.msra.mxu0 0
        %1128 = vmatprep.subr.bf16.mxu0 0
        %1129 = vmatpush1.bf16.xpose.msra.mxu0 0
        %1130 = vmatprep.subr.bf16.mxu0 0
        %1131 = vmatpush1.bf16.xpose.msra.mxu0 0
        %1132 = vmatprep.subr.bf16.mxu0 0
        %1133 = vmatpush1.bf16.xpose.msra.mxu0 0
        %1134 = vmatprep.mubr.bf16.mxu0 0
        %1135 = vmatmul.mubr.bf16.gmra.mrb[0].mxu0 %v1097
        %v1136 = vpop.f32.mrb[0].mxu0
        %v1137 = vadd.f32 %v739, %v1136
        %v1138 = vpop.f32.mrb[0].mxu0
        %v1139 = vpop.f32.mrb[0].mxu0
        %v1140 = vpop.f32.mrb[0].mxu0
        %1141 = vdwg.mxu0
        %v1142 = vsel %vm788, %v1137, -inf
        %1143 = vmax.xlane.f32.xlu0 %v1142
        %v1144 = vpop.xlane.xlu0 %1143
        %v1145 = vsub.f32 %v1137, %v1144
        %v1146 = vmul.f32 %v1145, 1.442695
        %v1147 = vpow.pop %v1146
        %v1148 = vsel %vm788, %v1147, 0.0
        %1149 = vadd.xlane.f32.xlu0 %v1148
        %v1150 = vpop.xlane.xlu0 %1149
        %v1151 = vrcp.pop %v1150
        %v1152 = vmul.f32 %v1147, %v1151
        %v1153 = vpack.c.bf16 %v1152, %v1152
        %1154 = vrot.lane.b32.xlu0 %v731, 32
        %v1155 = vpop.permute.xlu0 %1154
        %v1157 = vsel %vm788, %v1153, 0
        %v1160 = vsel %vm804, %v1155, 0
        %1162 = vmatprep.subr.bf16.mxu0 0
        %1163 = vmatpush1.bf16.msra.mxu0 %v1160
        %1164 = vmatprep.subr.bf16.mxu0 0
        %1165 = vmatpush1.bf16.msra.mxu0 0
        %1166 = vmatprep.subr.bf16.mxu0 0
        %1167 = vmatpush1.bf16.msra.mxu0 0
        %1168 = vmatprep.subr.bf16.mxu0 0
        %1169 = vmatpush1.bf16.msra.mxu0 0
        %1170 = vmatprep.subr.bf16.mxu0 0
        %1171 = vmatpush1.bf16.msra.mxu0 0
        %1172 = vmatprep.subr.bf16.mxu0 0
        %1173 = vmatpush1.bf16.msra.mxu0 0
        %1174 = vmatprep.subr.bf16.mxu0 0
        %1175 = vmatpush1.bf16.msra.mxu0 0
        %1176 = vmatprep.subr.bf16.mxu0 0
        %1177 = vmatpush1.bf16.msra.mxu0 0
        %1178 = vmatprep.subr.bf16.mxu0 0
        %1179 = vmatpush1.bf16.msra.mxu0 0
        %1180 = vmatprep.subr.bf16.mxu0 0
        %1181 = vmatpush1.bf16.msra.mxu0 0
        %1182 = vmatprep.subr.bf16.mxu0 0
        %1183 = vmatpush1.bf16.msra.mxu0 0
        %1184 = vmatprep.subr.bf16.mxu0 0
        %1185 = vmatpush1.bf16.msra.mxu0 0
        %1186 = vmatprep.subr.bf16.mxu0 0
        %1187 = vmatpush1.bf16.msra.mxu0 0
        %1188 = vmatprep.subr.bf16.mxu0 0
        %1189 = vmatpush1.bf16.msra.mxu0 0
        %1190 = vmatprep.subr.bf16.mxu0 0
        %1191 = vmatpush1.bf16.msra.mxu0 0
        %1192 = vmatprep.subr.bf16.mxu0 0
        %1193 = vmatpush1.bf16.msra.mxu0 0
        %1194 = vmatprep.mubr.bf16.mxu0 0
        %1195 = vmatmul.mubr.bf16.gmra.mrb[0].mxu0 %v1157
        %v1196 = vpop.f32.mrb[0].mxu0
        %v1197 = vadd.f32 0.0, %v1196
        %v1198 = vpop.f32.mrb[0].mxu0
        %v1199 = vpop.f32.mrb[0].mxu0
        %v1200 = vpop.f32.mrb[0].mxu0
        %1201 = vdwg.mxu0
        %v1202 = vpack.c.bf16 %v1197, %v1197
        %v1204 = vunpack.c.l.b16 %v1202
        %v1205 = vpack.c.b16 %v1204, %v1204
        %1206 = vrot.lane.b32.xlu0 %v1205, 96
        %v1207 = vpop.permute.xlu0 %1206
        %vm1209 = vcmask 1044224
        %1210 = vst.msk [vmem:[#allocation2] sm:$0xf] %vm1209, %v1207
        %v1211 = vld [vmem:[#allocation2] sm:$0xf]
        %v1212 = vld [vmem:[#allocation10] sm:$0xf]
        %v1213 = vld [vmem:[#allocation10 + $0x4] sm:$0xf]
        %v1214 = vld [vmem:[#allocation10 + $0x8] sm:$0xf]
        %v1215 = vld [vmem:[#allocation10 + $0xc] sm:$0xf]
        %v1216 = vld [vmem:[#allocation10 + $0x10] sm:$0xf]
        %v1217 = vld [vmem:[#allocation10 + $0x14] sm:$0xf]
        %v1218 = vld [vmem:[#allocation10 + $0x18] sm:$0xf]
        %v1219 = vld [vmem:[#allocation10 + $0x1c] sm:$0xf]
        %v1220 = vld [vmem:[#allocation10 + $0x20] sm:$0xf]
        %v1221 = vld [vmem:[#allocation10 + $0x24] sm:$0xf]
        %v1222 = vld [vmem:[#allocation10 + $0x28] sm:$0xf]
        %v1223 = vld [vmem:[#allocation10 + $0x2c] sm:$0xf]
        %v1224 = vld [vmem:[#allocation10 + $0x30] sm:$0xf]
        %v1225 = vld [vmem:[#allocation10 + $0x34] sm:$0xf]
        %v1226 = vld [vmem:[#allocation10 + $0x38] sm:$0xf]
        %v1227 = vld [vmem:[#allocation10 + $0x3c] sm:$0xf]
        %v1244 = vunpack.c.l.b16 %v1212
        %v1245 = vunpack.c.l.b16 %v1213
        %v1246 = vunpack.c.l.b16 %v1214
        %v1247 = vunpack.c.l.b16 %v1215
        %v1248 = vunpack.c.l.b16 %v1216
        %v1249 = vunpack.c.l.b16 %v1217
        %v1250 = vunpack.c.l.b16 %v1218
        %v1251 = vunpack.c.l.b16 %v1219
        %v1252 = vunpack.c.l.b16 %v1220
        %v1253 = vunpack.c.l.b16 %v1221
        %v1254 = vunpack.c.l.b16 %v1222
        %v1255 = vunpack.c.l.b16 %v1223
        %v1256 = vunpack.c.l.b16 %v1224
        %v1257 = vunpack.c.l.b16 %v1225
        %v1258 = vunpack.c.l.b16 %v1226
        %v1259 = vunpack.c.l.b16 %v1227
        %v1260 = vpack.c.b16 %v1245, %v1244
        %v1261 = vpack.c.b16 %v1247, %v1246
        %v1262 = vpack.c.b16 %v1249, %v1248
        %v1263 = vpack.c.b16 %v1251, %v1250
        %v1264 = vpack.c.b16 %v1253, %v1252
        %v1265 = vpack.c.b16 %v1255, %v1254
        %v1266 = vpack.c.b16 %v1257, %v1256
        %v1267 = vpack.c.b16 %v1259, %v1258
        %1276 = vmatprep.subr.bf16.mxu0 0
        %1277 = vmatpush1.bf16.msra.mxu0 %v1260
        %1278 = vmatprep.subr.bf16.mxu0 0
        %1279 = vmatpush1.bf16.msra.mxu0 %v1261
        %1280 = vmatprep.subr.bf16.mxu0 0
        %1281 = vmatpush1.bf16.msra.mxu0 %v1262
        %1282 = vmatprep.subr.bf16.mxu0 0
        %1283 = vmatpush1.bf16.msra.mxu0 %v1263
        %1284 = vmatprep.subr.bf16.mxu0 0
        %1285 = vmatpush1.bf16.msra.mxu0 %v1264
        %1286 = vmatprep.subr.bf16.mxu0 0
        %1287 = vmatpush1.bf16.msra.mxu0 %v1265
        %1288 = vmatprep.subr.bf16.mxu0 0
        %1289 = vmatpush1.bf16.msra.mxu0 %v1266
        %1290 = vmatprep.subr.bf16.mxu0 0
        %1291 = vmatpush1.bf16.msra.mxu0 %v1267
        %1292 = vmatprep.subr.bf16.mxu0 0
        %1293 = vmatpush1.bf16.msra.mxu0 0
        %1294 = vmatprep.subr.bf16.mxu0 0
        %1295 = vmatpush1.bf16.msra.mxu0 0
        %1296 = vmatprep.subr.bf16.mxu0 0
        %1297 = vmatpush1.bf16.msra.mxu0 0
        %1298 = vmatprep.subr.bf16.mxu0 0
        %1299 = vmatpush1.bf16.msra.mxu0 0
        %1300 = vmatprep.subr.bf16.mxu0 0
        %1301 = vmatpush1.bf16.msra.mxu0 0
        %1302 = vmatprep.subr.bf16.mxu0 0
        %1303 = vmatpush1.bf16.msra.mxu0 0
        %1304 = vmatprep.subr.bf16.mxu0 0
        %1305 = vmatpush1.bf16.msra.mxu0 0
        %1306 = vmatprep.subr.bf16.mxu0 0
        %1307 = vmatpush1.bf16.msra.mxu0 0
        %1308 = vmatprep.mubr.bf16.mxu0 0
        %1309 = vmatmul.mubr.bf16.gmra.mrb[0].mxu0 %v1211
        %v1310 = vpop.f32.mrb[0].mxu0
        %v1311 = vadd.f32 0.0, %v1310
        %v1312 = vpop.f32.mrb[0].mxu0
        %v1313 = vpop.f32.mrb[0].mxu0
        %v1314 = vpop.f32.mrb[0].mxu0
        %1315 = vdwg.mxu0
        %v1316 = vadd.f32 %v464, %v1311
        %v1317 = vld [vmem:[%s5] sm:$0x1]
        %v1319 = vlaneseq
        %v1320 = vshrl.u32 %v1319, 7
        %v1321 = vsub.s32 0, %v1320
        %v1322 = vrot.slane %v1317, %v1321
        %v1324 = vadd.f32 %v1316, %v1322
        %1325 = vadd.xlane.f32.xlu0 %v1324
        %v1326 = vpop.xlane.xlu0 %1325
        %v1327 = vmul.f32 %v1326, 0.0078125
        %v1328 = vsub.f32 %v1324, %v1327
        %v1329 = vmul.f32 %v1328, %v1328
        %1330 = vadd.xlane.f32.xlu0 %v1329
        %v1331 = vpop.xlane.xlu0 %1330
        %v1332 = vmul.f32 %v1331, 0.007874016
        %v1333 = vrsqrt.pop %v1332
        %v1334 = vmul.f32 %v1332, %v1333
        %vm1335 = vcmp.eq.f32.partialorder %v1332, inf
        %v1336 = vsel %vm1335, %v1332, %v1334
        %vm1337 = vcmp.eq.f32.partialorder %v1332, 0.0
        %v1338 = vand.u32 %v1332, 2147483648
        %v1339 = vsel %vm1337, %v1338, %v1336
        %v1340 = vadd.f32 %v1339, 1e-06
        %v1341 = vrcp.pop %v1340
        %v1342 = vstv %s462
        %v1343 = vmul.f32 %v1342, %v1328
        %v1344 = vmul.f32 %v1343, %v1341
        %v1345 = vstv %s463
        %v1346 = vadd.f32 %v1344, %v1345
        %v1347 = vpack.c.bf16 %v1346, %v1346
        %v1348 = vld [vmem:[#allocation11] sm:$0xff]
        %v1349 = vld [vmem:[#allocation11 + $0x8] sm:$0xff]
        %v1350 = vld [vmem:[#allocation11 + $0x10] sm:$0xff]
        %v1351 = vld [vmem:[#allocation11 + $0x18] sm:$0xff]
        %v1352 = vld [vmem:[#allocation11 + $0x20] sm:$0xff]
        %v1353 = vld [vmem:[#allocation11 + $0x28] sm:$0xff]
        %v1354 = vld [vmem:[#allocation11 + $0x30] sm:$0xff]
        %v1355 = vld [vmem:[#allocation11 + $0x38] sm:$0xff]
        %v1356 = vld [vmem:[#allocation11 + $0x40] sm:$0xff]
        %v1357 = vld [vmem:[#allocation11 + $0x48] sm:$0xff]
        %v1358 = vld [vmem:[#allocation11 + $0x50] sm:$0xff]
        %v1359 = vld [vmem:[#allocation11 + $0x58] sm:$0xff]
        %v1360 = vld [vmem:[#allocation11 + $0x60] sm:$0xff]
        %v1361 = vld [vmem:[#allocation11 + $0x68] sm:$0xff]
        %v1362 = vld [vmem:[#allocation11 + $0x70] sm:$0xff]
        %v1363 = vld [vmem:[#allocation11 + $0x78] sm:$0xff]
        %v1364 = vld [vmem:[%s7] sm:$0x3]
        %v1366 = vlaneseq
        %v1367 = vshrl.u32 %v1366, 7
        %v1368 = vsub.s32 0, %v1367
        %v1369 = vrot.slane %v1364, %v1368
        %v1370 = vlaneseq
        %v1371 = vshrl.u32 %v1370, 7
        %v1372 = vsub.s32 1, %v1371
        %v1373 = vrot.slane %v1364, %v1372
        %v1392 = vunpack.c.l.b16 %v1348
        %v1393 = vunpack.c.h.b16 %v1348
        %v1394 = vunpack.c.l.b16 %v1349
        %v1395 = vunpack.c.h.b16 %v1349
        %v1396 = vunpack.c.l.b16 %v1350
        %v1397 = vunpack.c.h.b16 %v1350
        %v1398 = vunpack.c.l.b16 %v1351
        %v1399 = vunpack.c.h.b16 %v1351
        %v1400 = vunpack.c.l.b16 %v1352
        %v1401 = vunpack.c.h.b16 %v1352
        %v1402 = vunpack.c.l.b16 %v1353
        %v1403 = vunpack.c.h.b16 %v1353
        %v1404 = vunpack.c.l.b16 %v1354
        %v1405 = vunpack.c.h.b16 %v1354
        %v1406 = vunpack.c.l.b16 %v1355
        %v1407 = vunpack.c.h.b16 %v1355
        %v1408 = vunpack.c.l.b16 %v1356
        %v1409 = vunpack.c.h.b16 %v1356
        %v1410 = vunpack.c.l.b16 %v1357
        %v1411 = vunpack.c.h.b16 %v1357
        %v1412 = vunpack.c.l.b16 %v1358
        %v1413 = vunpack.c.h.b16 %v1358
        %v1414 = vunpack.c.l.b16 %v1359
        %v1415 = vunpack.c.h.b16 %v1359
        %v1416 = vunpack.c.l.b16 %v1360
        %v1417 = vunpack.c.h.b16 %v1360
        %v1418 = vunpack.c.l.b16 %v1361
        %v1419 = vunpack.c.h.b16 %v1361
        %v1420 = vunpack.c.l.b16 %v1362
        %v1421 = vunpack.c.h.b16 %v1362
        %v1422 = vunpack.c.l.b16 %v1363
        %v1423 = vunpack.c.h.b16 %v1363
        %v1424 = vpack.c.b16 %v1394, %v1392
        %v1425 = vpack.c.b16 %v1395, %v1393
        %v1426 = vpack.c.b16 %v1398, %v1396
        %v1427 = vpack.c.b16 %v1399, %v1397
        %v1428 = vpack.c.b16 %v1402, %v1400
        %v1429 = vpack.c.b16 %v1403, %v1401
        %v1430 = vpack.c.b16 %v1406, %v1404
        %v1431 = vpack.c.b16 %v1407, %v1405
        %v1432 = vpack.c.b16 %v1410, %v1408
        %v1433 = vpack.c.b16 %v1411, %v1409
        %v1434 = vpack.c.b16 %v1414, %v1412
        %v1435 = vpack.c.b16 %v1415, %v1413
        %v1436 = vpack.c.b16 %v1418, %v1416
        %v1437 = vpack.c.b16 %v1419, %v1417
        %v1438 = vpack.c.b16 %v1422, %v1420
        %v1439 = vpack.c.b16 %v1423, %v1421
        %1456 = vmatprep.subr.bf16.mxu0 %v1425
        %1457 = vmatpush1.bf16.msra.mxu0 %v1424
        %1458 = vmatprep.subr.bf16.mxu0 %v1427
        %1459 = vmatpush1.bf16.msra.mxu0 %v1426
        %1460 = vmatprep.subr.bf16.mxu0 %v1429
        %1461 = vmatpush1.bf16.msra.mxu0 %v1428
        %1462 = vmatprep.subr.bf16.mxu0 %v1431
        %1463 = vmatpush1.bf16.msra.mxu0 %v1430
        %1464 = vmatprep.subr.bf16.mxu0 %v1433
        %1465 = vmatpush1.bf16.msra.mxu0 %v1432
        %1466 = vmatprep.subr.bf16.mxu0 %v1435
        %1467 = vmatpush1.bf16.msra.mxu0 %v1434
        %1468 = vmatprep.subr.bf16.mxu0 %v1437
        %1469 = vmatpush1.bf16.msra.mxu0 %v1436
        %1470 = vmatprep.subr.bf16.mxu0 %v1439
        %1471 = vmatpush1.bf16.msra.mxu0 %v1438
        %1472 = vmatprep.subr.bf16.mxu0 0
        %1473 = vmatpush1.bf16.msra.mxu0 0
        %1474 = vmatprep.subr.bf16.mxu0 0
        %1475 = vmatpush1.bf16.msra.mxu0 0
        %1476 = vmatprep.subr.bf16.mxu0 0
        %1477 = vmatpush1.bf16.msra.mxu0 0
        %1478 = vmatprep.subr.bf16.mxu0 0
        %1479 = vmatpush1.bf16.msra.mxu0 0
        %1480 = vmatprep.subr.bf16.mxu0 0
        %1481 = vmatpush1.bf16.msra.mxu0 0
        %1482 = vmatprep.subr.bf16.mxu0 0
        %1483 = vmatpush1.bf16.msra.mxu0 0
        %1484 = vmatprep.subr.bf16.mxu0 0
        %1485 = vmatpush1.bf16.msra.mxu0 0
        %1486 = vmatprep.subr.bf16.mxu0 0
        %1487 = vmatpush1.bf16.msra.mxu0 0
        %1488 = vmatprep.mubr.bf16.mxu0 0
        %1489 = vmatmul.mubr.bf16.gmra.mrb[0].mxu0 %v1347
        %v1490 = vpop.f32.mrb[0].mxu0
        %v1491 = vadd.f32 %v1369, %v1490
        %v1492 = vpop.f32.mrb[0].mxu0
        %v1493 = vadd.f32 %v1373, %v1492
        %v1494 = vpop.f32.mrb[0].mxu0
        %v1495 = vpop.f32.mrb[0].mxu0
        %1496 = vdwg.mxu0
        %v1497 = vmax.f32 %v1491, 0.0
        %v1498 = vmax.f32 %v1493, 0.0
        %v1499 = vpack.c.bf16 %v1497, %v1497
        %v1500 = vpack.c.bf16 %v1498, %v1498
        %v1501 = vld [vmem:[#allocation13] sm:$0xf]
        %v1502 = vld [vmem:[#allocation13 + $0x4] sm:$0xf]
        %v1503 = vld [vmem:[#allocation13 + $0x8] sm:$0xf]
        %v1504 = vld [vmem:[#allocation13 + $0xc] sm:$0xf]
        %v1505 = vld [vmem:[#allocation13 + $0x10] sm:$0xf]
        %v1506 = vld [vmem:[#allocation13 + $0x14] sm:$0xf]
        %v1507 = vld [vmem:[#allocation13 + $0x18] sm:$0xf]
        %v1508 = vld [vmem:[#allocation13 + $0x1c] sm:$0xf]
        %v1509 = vld [vmem:[#allocation13 + $0x20] sm:$0xf]
        %v1510 = vld [vmem:[#allocation13 + $0x24] sm:$0xf]
        %v1511 = vld [vmem:[#allocation13 + $0x28] sm:$0xf]
        %v1512 = vld [vmem:[#allocation13 + $0x2c] sm:$0xf]
        %v1513 = vld [vmem:[#allocation13 + $0x30] sm:$0xf]
        %v1514 = vld [vmem:[#allocation13 + $0x34] sm:$0xf]
        %v1515 = vld [vmem:[#allocation13 + $0x38] sm:$0xf]
        %v1516 = vld [vmem:[#allocation13 + $0x3c] sm:$0xf]
        %v1517 = vld [vmem:[#allocation13 + $0x40] sm:$0xf]
        %v1518 = vld [vmem:[#allocation13 + $0x44] sm:$0xf]
        %v1519 = vld [vmem:[#allocation13 + $0x48] sm:$0xf]
        %v1520 = vld [vmem:[#allocation13 + $0x4c] sm:$0xf]
        %v1521 = vld [vmem:[#allocation13 + $0x50] sm:$0xf]
        %v1522 = vld [vmem:[#allocation13 + $0x54] sm:$0xf]
        %v1523 = vld [vmem:[#allocation13 + $0x58] sm:$0xf]
        %v1524 = vld [vmem:[#allocation13 + $0x5c] sm:$0xf]
        %v1525 = vld [vmem:[#allocation13 + $0x60] sm:$0xf]
        %v1526 = vld [vmem:[#allocation13 + $0x64] sm:$0xf]
        %v1527 = vld [vmem:[#allocation13 + $0x68] sm:$0xf]
        %v1528 = vld [vmem:[#allocation13 + $0x6c] sm:$0xf]
        %v1529 = vld [vmem:[#allocation13 + $0x70] sm:$0xf]
        %v1530 = vld [vmem:[#allocation13 + $0x74] sm:$0xf]
        %v1531 = vld [vmem:[#allocation13 + $0x78] sm:$0xf]
        %v1532 = vld [vmem:[#allocation13 + $0x7c] sm:$0xf]
        %v1533 = vld [vmem:[%s9] sm:$0x1]
        %v1535 = vlaneseq
        %v1536 = vshrl.u32 %v1535, 7
        %v1537 = vsub.s32 0, %v1536
        %v1538 = vrot.slane %v1533, %v1537
        %v1572 = vunpack.c.l.b16 %v1501
        %v1573 = vunpack.c.l.b16 %v1502
        %v1574 = vunpack.c.l.b16 %v1503
        %v1575 = vunpack.c.l.b16 %v1504
        %v1576 = vunpack.c.l.b16 %v1505
        %v1577 = vunpack.c.l.b16 %v1506
        %v1578 = vunpack.c.l.b16 %v1507
        %v1579 = vunpack.c.l.b16 %v1508
        %v1580 = vunpack.c.l.b16 %v1509
        %v1581 = vunpack.c.l.b16 %v1510
        %v1582 = vunpack.c.l.b16 %v1511
        %v1583 = vunpack.c.l.b16 %v1512
        %v1584 = vunpack.c.l.b16 %v1513
        %v1585 = vunpack.c.l.b16 %v1514
        %v1586 = vunpack.c.l.b16 %v1515
        %v1587 = vunpack.c.l.b16 %v1516
        %v1588 = vunpack.c.l.b16 %v1517
        %v1589 = vunpack.c.l.b16 %v1518
        %v1590 = vunpack.c.l.b16 %v1519
        %v1591 = vunpack.c.l.b16 %v1520
        %v1592 = vunpack.c.l.b16 %v1521
        %v1593 = vunpack.c.l.b16 %v1522
        %v1594 = vunpack.c.l.b16 %v1523
        %v1595 = vunpack.c.l.b16 %v1524
        %v1596 = vunpack.c.l.b16 %v1525
        %v1597 = vunpack.c.l.b16 %v1526
        %v1598 = vunpack.c.l.b16 %v1527
        %v1599 = vunpack.c.l.b16 %v1528
        %v1600 = vunpack.c.l.b16 %v1529
        %v1601 = vunpack.c.l.b16 %v1530
        %v1602 = vunpack.c.l.b16 %v1531
        %v1603 = vunpack.c.l.b16 %v1532
        %v1604 = vpack.c.b16 %v1573, %v1572
        %v1605 = vpack.c.b16 %v1575, %v1574
        %v1606 = vpack.c.b16 %v1577, %v1576
        %v1607 = vpack.c.b16 %v1579, %v1578
        %v1608 = vpack.c.b16 %v1581, %v1580
        %v1609 = vpack.c.b16 %v1583, %v1582
        %v1610 = vpack.c.b16 %v1585, %v1584
        %v1611 = vpack.c.b16 %v1587, %v1586
        %v1612 = vpack.c.b16 %v1589, %v1588
        %v1613 = vpack.c.b16 %v1591, %v1590
        %v1614 = vpack.c.b16 %v1593, %v1592
        %v1615 = vpack.c.b16 %v1595, %v1594
        %v1616 = vpack.c.b16 %v1597, %v1596
        %v1617 = vpack.c.b16 %v1599, %v1598
        %v1618 = vpack.c.b16 %v1601, %v1600
        %v1619 = vpack.c.b16 %v1603, %v1602
        %1636 = vmatprep.subr.bf16.mxu0 0
        %1637 = vmatpush1.bf16.msra.mxu0 %v1604
        %1638 = vmatprep.subr.bf16.mxu0 0
        %1639 = vmatpush1.bf16.msra.mxu0 %v1605
        %1640 = vmatprep.subr.bf16.mxu0 0
        %1641 = vmatpush1.bf16.msra.mxu0 %v1606
        %1642 = vmatprep.subr.bf16.mxu0 0
        %1643 = vmatpush1.bf16.msra.mxu0 %v1607
        %1644 = vmatprep.subr.bf16.mxu0 0
        %1645 = vmatpush1.bf16.msra.mxu0 %v1608
        %1646 = vmatprep.subr.bf16.mxu0 0
        %1647 = vmatpush1.bf16.msra.mxu0 %v1609
        %1648 = vmatprep.subr.bf16.mxu0 0
        %1649 = vmatpush1.bf16.msra.mxu0 %v1610
        %1650 = vmatprep.subr.bf16.mxu0 0
        %1651 = vmatpush1.bf16.msra.mxu0 %v1611
        %1652 = vmatprep.subr.bf16.mxu0 0
        %1653 = vmatpush1.bf16.msra.mxu0 %v1612
        %1654 = vmatprep.subr.bf16.mxu0 0
        %1655 = vmatpush1.bf16.msra.mxu0 %v1613
        %1656 = vmatprep.subr.bf16.mxu0 0
        %1657 = vmatpush1.bf16.msra.mxu0 %v1614
        %1658 = vmatprep.subr.bf16.mxu0 0
        %1659 = vmatpush1.bf16.msra.mxu0 %v1615
        %1660 = vmatprep.subr.bf16.mxu0 0
        %1661 = vmatpush1.bf16.msra.mxu0 %v1616
        %1662 = vmatprep.subr.bf16.mxu0 0
        %1663 = vmatpush1.bf16.msra.mxu0 %v1617
        %1664 = vmatprep.subr.bf16.mxu0 0
        %1665 = vmatpush1.bf16.msra.mxu0 %v1618
        %1666 = vmatprep.subr.bf16.mxu0 0
        %1667 = vmatpush1.bf16.msra.mxu0 %v1619
        %1668 = vmatprep.mubr.bf16.mxu0 %v1500
        %1669 = vmatmul.mubr.bf16.gmra.mrb[0].mxu0 %v1499
        %v1670 = vpop.f32.mrb[0].mxu0
        %v1671 = vadd.f32 %v1538, %v1670
        %v1672 = vpop.f32.mrb[0].mxu0
        %v1673 = vpop.f32.mrb[0].mxu0
        %v1674 = vpop.f32.mrb[0].mxu0
        %1675 = vdwg.mxu0
        %v1676 = vadd.f32 %v1324, %v1671
        %1677 = vst [vmem:[%s455] sm:$0xff] %v1676
        %s1678 = sand.u32 %s258, 1
        %s1679 = scalar_lea.sflag [#allocation5], %s1678
        %s1680 = sand.u32 %s258, 1
        %s1681 = smul.addr %s1680, 8
        %s1682 = scalar_lea.vmem [#allocation14], %s1681
        // Predicated region
        $region85: #{tpu_custom_call.1} parent=59 // pred_check
          %p1683 = pneg %p268
        $region86: #{tpu_custom_call.1} parent=59 // pred_check_branch
          %1685 = sbr.rel (%p1683) target = $region88
        $region87: #{tpu_custom_call.1} parent=59 // pred_region
          %s1687 = ssub.s32 128, 128
          %1688 = vsyncadd %s1679, %s1687
          %s1689 = smul.addr %s30, 128
          %s1690 = scalar_lea.hbm %s10, %s1689
          %s1692 = sshll.u32 %s1682, 4
          %s1693 = int_to_ptr.vmem [resolvable:$true] %s1692
          %1695 = dma.vmem_to_hbm [thread:$0]  %s1693, 128, %s1690, %s1679
        $region88: #{tpu_custom_call.1} parent=59 // pred_fallthru
          _
      $region60: #{tpu_custom_call.1} parent=5 // pred_fallthru
        _
      %p1696 = scmp.le.s32.totalorder 2, %s25
      // Predicated region
      $region89: #{tpu_custom_call.1} parent=5 // pred_check
        %p1697 = pneg %p1696
      $region90: #{tpu_custom_call.1} parent=5 // pred_check_branch
        %1699 = sbr.rel (%p1697) target = $region92
      $region91: #{tpu_custom_call.1} parent=5 // pred_region
        %s1700 = ssub.s32 %s25, 2
        // Predicated region
        $region93: #{tpu_custom_call.1} parent=91 // pred_check
          %p1701 = pneg %p274
        $region94: #{tpu_custom_call.1} parent=91 // pred_check_branch
          %1703 = sbr.rel (%p1701) target = $region96
        $region95: #{tpu_custom_call.1} parent=91 // pred_region
          %s1704 = sand.u32 %s259, 1
          %s1705 = scalar_lea.sflag [#allocation5], %s1704
          %s1706 = sand.u32 %s259, 1
          %s1707 = smul.addr %s1706, 8
          %s1708 = scalar_lea.vmem [#allocation14], %s1707
          %1709 = dma.done %s1705, 128
        $region96: #{tpu_custom_call.1} parent=91 // pred_fallthru
          _
      $region92: #{tpu_custom_call.1} parent=5 // pred_fallthru
        _
    $region6: #{tpu_custom_call.1} parent=1 // loop_footer
      %s29 = sadd.s32 1, %s25
    $region7: #{tpu_custom_call.1} parent=1 // loop_footer_branch
      %24 = sbr.rel target = $region3
    $region8: #{tpu_custom_call.1} parent=1 // loop_exit
      _
    %1710 = vsyncpa [#allocation4], 1
    %s1711 = scalar_lea.sflag [#allocation4], 1
    %1712 = vsyncpa %s1711, 1
    %1713 = vsyncpa [#allocation9], 1
    %1714 = vsyncpa [#allocation12], 1
    %1715 = vsyncpa [#allocation5], 1
    %s1716 = scalar_lea.sflag [#allocation5], 1
    %1717 = vsyncpa %s1716, 1
    %1718 = vsyncpa [#allocation6], 1
    %s1719 = scalar_lea.sflag [#allocation6], 1
    %1720 = vsyncpa %s1719, 1

// kernel: tpu_custom_call.1
$region0: #{tpu_custom_call.1}
  #allocation0 [shape = 'u32[]', space=smem, size = 0x4, offset = 0x4, fixed_abs, tag = 'smem constant byte address 0x4 - core index']
  #allocation1 [shape = 'u32[144,128]{1,0:T(1,128)}', space=vmem, size = 0x12000, scoped, tag = 'internal scratch']
  #allocation2 [shape = 'bf16[8,128]{1,0:T(8,128)(2,1)}', space=vmem, size = 0x800, scoped, tag = 'scratch operand']
  %s0 = inlined_call_operand.hbm [shape: f32[4], index: 0, kind: input, shape index: {}]
  %s1 = inlined_call_operand.hbm [shape: f32[2,8,128], index: 1, kind: input, shape index: {}]
  %s2 = inlined_call_operand.vmem [shape: f32[2,1,8], index: 2, kind: input, shape index: {}]
  %s3 = inlined_call_operand.hbm [shape: bf16[128,384], index: 3, kind: input, shape index: {}]
  %s4 = inlined_call_operand.hbm [shape: bf16[128,128], index: 4, kind: input, shape index: {}]
  %s5 = inlined_call_operand.vmem [shape: f32[1,128], index: 5, kind: input, shape index: {}]
  %s6 = inlined_call_operand.hbm [shape: bf16[128,256], index: 6, kind: input, shape index: {}]
  %s7 = inlined_call_operand.vmem [shape: f32[1,256], index: 7, kind: input, shape index: {}]
  %s8 = inlined_call_operand.hbm [shape: bf16[256,128], index: 8, kind: input, shape index: {}]
  %s9 = inlined_call_operand.vmem [shape: f32[1,128], index: 9, kind: input, shape index: {}]
  %s10 = inlined_call_operand.hbm [shape: f32[2,8,128], index: 10, kind: output, shape index: {}]
  %s11 = sld [smem:[#allocation0]]
  $region97: #{tpu_custom_call.1} parent=0
    _
  %s13 = ssub.s32 1, %s11
  %s14 = scalar_select 0, %s13, %s11
  $region1: #{tpu_custom_call.1} parent=0
    #allocation3 [shape = 'u8[512]{0}', space=smem, size = 0x200, scoped, tag = 'input window, operand 0, single buffered']
    #allocation4 [shape = 's32[2]{0}', space=sflag, size = 0x8, scoped, tag = 'scoped memory for tpu_custom_call.1']
    #allocation5 [shape = 's32[2]{0}', space=sflag, size = 0x8, scoped, tag = 'scoped memory for tpu_custom_call.1']
    #allocation6 [shape = 's32[2]{0}', space=sflag, size = 0x8, scoped, tag = 'scoped memory for tpu_custom_call.1']
    #allocation7 [shape = 'u8[8192]{0}', space=vmem, size = 0x2000, scoped, tag = 'input window, operand 1']
    #allocation8 [shape = 'u8[98304]{0}', space=vmem, size = 0x18000, scoped, tag = 'input window, operand 3, single buffered']
    #allocation9 [shape = 's32[1]{0}', space=sflag, size = 0x4, scoped, tag = 'scoped memory for tpu_custom_call.1']
    #allocation10 [shape = 'u8[32768]{0}', space=vmem, size = 0x8000, scoped, tag = 'input window, operand 4, single buffered']
    #allocation11 [shape = 'u8[65536]{0}', space=vmem, size = 0x10000, scoped, tag = 'input window, operand 6, single buffered']
    #allocation12 [shape = 's32[1]{0}', space=sflag, size = 0x4, scoped, tag = 'scoped memory for tpu_custom_call.1']
    #allocation13 [shape = 'u8[65536]{0}', space=vmem, size = 0x10000, scoped, tag = 'input window, operand 8, single buffered']
    #allocation14 [shape = 'u8[8192]{0}', space=vmem, size = 0x2000, scoped, tag = 'output window, operand 0']
    %15 = vsyncpa [#allocation6], 0
    %16 = vsyncpa [#allocation4], 0
    %s17 = scalar_lea.sflag [#allocation4], 1
    %18 = vsyncpa %s17, 0
    %19 = vsyncpa [#allocation9], 0
    %20 = vsyncpa [#allocation12], 0
    %21 = vsyncpa [#allocation5], 0
    %s22 = scalar_lea.sflag [#allocation5], 1
    %23 = vsyncpa %s22, 0
    loop: start=0, step=1, limit=4
    $region2: #{tpu_custom_call.1} parent=1 // loop_pre_header
      _
    $region3: #{tpu_custom_call.1} parent=1 // loop_header
      %s25 = sphi 0, %s29
      %p26 = scmp.ge.s32.totalorder %s25, 4
      %s33 = sphi 0, %s33
      %s35 = sphi 0, %s33
      %s36 = sphi 0, %s35
      %s50 = sphi 0, %s36
      %s56 = sphi 0, %s58
      %s59 = sphi 0, %s56
      %s60 = sphi 0, %s59
      %s76 = sphi 0, %s60
      %s82 = sphi 0, %s84
      %s85 = sphi 0, %s82
      %s86 = sphi 0, %s85
      %s102 = sphi 0, %s86
      %s106 = sphi 0, %s106
      %s108 = sphi 0, %s106
      %s109 = sphi 0, %s108
      %s123 = sphi 0, %s109
      %s127 = sphi 0, %s127
      %s129 = sphi 0, %s127
      %s130 = sphi 0, %s129
      %s144 = sphi 0, %s130
      %s148 = sphi 0, %s148
      %s150 = sphi 0, %s148
      %s151 = sphi 0, %s150
      %s165 = sphi 0, %s151
      %s169 = sphi 0, %s169
      %s171 = sphi 0, %s169
      %s172 = sphi 0, %s171
      %s186 = sphi 0, %s172
      %s190 = sphi 0, %s190
      %s192 = sphi 0, %s190
      %s193 = sphi 0, %s192
      %s207 = sphi 0, %s193
      %s211 = sphi 0, %s211
      %s213 = sphi 0, %s211
      %s214 = sphi 0, %s213
      %s228 = sphi 0, %s214
      %s232 = sphi 0, %s232
      %s234 = sphi 0, %s232
      %s235 = sphi 0, %s234
      %s249 = sphi 0, %s235
      %s255 = sphi 0, %s257
      %s258 = sphi 0, %s255
      %s259 = sphi 0, %s258
      %s275 = sphi 0, %s259
    $region4: #{tpu_custom_call.1} parent=1 // loop_header_branch
      %28 = sbr.rel (%p26) target = $region8
    $region5: #{tpu_custom_call.1} parent=1 // loop_body
      %s30 = ssub.s32 %s25, 1
      %s31 = ssub.s32 %s25, 2
      %s32 = sadd.s32 %s25, 1
      %s34 = sadd.s32 %s33, 1
      %p37 = scmp.eq.s32.totalorder %s25, 1
      %p38 = scmp.ne.s32.totalorder %s33, %s35
      %p39 = scmp.eq.s32.totalorder %s25, 0
      %p40 = por %p38, %p39
      %p41 = scmp.ne.s32.totalorder %s33, %s35
      %p42 = scmp.eq.s32.totalorder %s30, 1
      %p43 = por %p41, %p42
      %p44 = scmp.ne.s32.totalorder %s35, %s36
      %p45 = scmp.eq.s32.totalorder %s30, 0
      %p46 = por %p44, %p45
      %p47 = scmp.ne.s32.totalorder %s35, %s36
      %p48 = scmp.eq.s32.totalorder %s31, 1
      %p49 = por %p47, %p48
      %p51 = scmp.ne.s32.totalorder %s36, %s50
      %p52 = scmp.eq.s32.totalorder %s31, 0
      %p53 = por %p51, %p52
      %s54 = ssub.s32 %s25, %s32
      %p55 = scmp.eq.s32.totalorder %s54, 0
      %s57 = sadd.s32 %s56, 1
      %s58 = scalar_select %p55, %s56, %s57
      %p61 = pneg %p55
      %p62 = scmp.eq.s32.totalorder %s25, 1
      %p63 = por %p61, %p62
      %p64 = scmp.ne.s32.totalorder %s56, %s59
      %p65 = scmp.eq.s32.totalorder %s25, 0
      %p66 = por %p64, %p65
      %p67 = scmp.ne.s32.totalorder %s56, %s59
      %p68 = scmp.eq.s32.totalorder %s30, 1
      %p69 = por %p67, %p68
      %p70 = scmp.ne.s32.totalorder %s59, %s60
      %p71 = scmp.eq.s32.totalorder %s30, 0
      %p72 = por %p70, %p71
      %p73 = scmp.ne.s32.totalorder %s59, %s60
      %p74 = scmp.eq.s32.totalorder %s31, 1
      %p75 = por %p73, %p74
      %p77 = scmp.ne.s32.totalorder %s60, %s76
      %p78 = scmp.eq.s32.totalorder %s31, 0
      %p79 = por %p77, %p78
      %s80 = ssub.s32 %s25, %s32
      %p81 = scmp.eq.s32.totalorder %s80, 0
      %s83 = sadd.s32 %s82, 1
      %s84 = scalar_select %p81, %s82, %s83
      %p87 = pneg %p81
      %p88 = scmp.eq.s32.totalorder %s25, 1
      %p89 = por %p87, %p88
      %p90 = scmp.ne.s32.totalorder %s82, %s85
      %p91 = scmp.eq.s32.totalorder %s25, 0
      %p92 = por %p90, %p91
      %p93 = scmp.ne.s32.totalorder %s82, %s85
      %p94 = scmp.eq.s32.totalorder %s30, 1
      %p95 = por %p93, %p94
      %p96 = scmp.ne.s32.totalorder %s85, %s86
      %p97 = scmp.eq.s32.totalorder %s30, 0
      %p98 = por %p96, %p97
      %p99 = scmp.ne.s32.totalorder %s85, %s86
      %p100 = scmp.eq.s32.totalorder %s31, 1
      %p101 = por %p99, %p100
      %p103 = scmp.ne.s32.totalorder %s86, %s102
      %p104 = scmp.eq.s32.totalorder %s31, 0
      %p105 = por %p103, %p104
      %s107 = sadd.s32 %s106, 1
      %p110 = scmp.eq.s32.totalorder %s25, 1
      %p111 = scmp.ne.s32.totalorder %s106, %s108
      %p112 = scmp.eq.s32.totalorder %s25, 0
      %p113 = por %p111, %p112
      %p114 = scmp.ne.s32.totalorder %s106, %s108
      %p115 = scmp.eq.s32.totalorder %s30, 1
      %p116 = por %p114, %p115
      %p117 = scmp.ne.s32.totalorder %s108, %s109
      %p118 = scmp.eq.s32.totalorder %s30, 0
      %p119 = por %p117, %p118
      %p120 = scmp.ne.s32.totalorder %s108, %s109
      %p121 = scmp.eq.s32.totalorder %s31, 1
      %p122 = por %p120, %p121
      %p124 = scmp.ne.s32.totalorder %s109, %s123
      %p125 = scmp.eq.s32.totalorder %s31, 0
      %p126 = por %p124, %p125
      %s128 = sadd.s32 %s127, 1
      %p131 = scmp.eq.s32.totalorder %s25, 1
      %p132 = scmp.ne.s32.totalorder %s127, %s129
      %p133 = scmp.eq.s32.totalorder %s25, 0
      %p134 = por %p132, %p133
      %p135 = scmp.ne.s32.totalorder %s127, %s129
      %p136 = scmp.eq.s32.totalorder %s30, 1
      %p137 = por %p135, %p136
      %p138 = scmp.ne.s32.totalorder %s129, %s130
      %p139 = scmp.eq.s32.totalorder %s30, 0
      %p140 = por %p138, %p139
      %p141 = scmp.ne.s32.totalorder %s129, %s130
      %p142 = scmp.eq.s32.totalorder %s31, 1
      %p143 = por %p141, %p142
      %p145 = scmp.ne.s32.totalorder %s130, %s144
      %p146 = scmp.eq.s32.totalorder %s31, 0
      %p147 = por %p145, %p146
      %s149 = sadd.s32 %s148, 1
      %p152 = scmp.eq.s32.totalorder %s25, 1
      %p153 = scmp.ne.s32.totalorder %s148, %s150
      %p154 = scmp.eq.s32.totalorder %s25, 0
      %p155 = por %p153, %p154
      %p156 = scmp.ne.s32.totalorder %s148, %s150
      %p157 = scmp.eq.s32.totalorder %s30, 1
      %p158 = por %p156, %p157
      %p159 = scmp.ne.s32.totalorder %s150, %s151
      %p160 = scmp.eq.s32.totalorder %s30, 0
      %p161 = por %p159, %p160
      %p162 = scmp.ne.s32.totalorder %s150, %s151
      %p163 = scmp.eq.s32.totalorder %s31, 1
      %p164 = por %p162, %p163
      %p166 = scmp.ne.s32.totalorder %s151, %s165
      %p167 = scmp.eq.s32.totalorder %s31, 0
      %p168 = por %p166, %p167
      %s170 = sadd.s32 %s169, 1
      %p173 = scmp.eq.s32.totalorder %s25, 1
      %p174 = scmp.ne.s32.totalorder %s169, %s171
      %p175 = scmp.eq.s32.totalorder %s25, 0
      %p176 = por %p174, %p175
      %p177 = scmp.ne.s32.totalorder %s169, %s171
      %p178 = scmp.eq.s32.totalorder %s30, 1
      %p179 = por %p177, %p178
      %p180 = scmp.ne.s32.totalorder %s171, %s172
      %p181 = scmp.eq.s32.totalorder %s30, 0
      %p182 = por %p180, %p181
      %p183 = scmp.ne.s32.totalorder %s171, %s172
      %p184 = scmp.eq.s32.totalorder %s31, 1
      %p185 = por %p183, %p184
      %p187 = scmp.ne.s32.totalorder %s172, %s186
      %p188 = scmp.eq.s32.totalorder %s31, 0
      %p189 = por %p187, %p188
      %s191 = sadd.s32 %s190, 1
      %p194 = scmp.eq.s32.totalorder %s25, 1
      %p195 = scmp.ne.s32.totalorder %s190, %s192
      %p196 = scmp.eq.s32.totalorder %s25, 0
      %p197 = por %p195, %p196
      %p198 = scmp.ne.s32.totalorder %s190, %s192
      %p199 = scmp.eq.s32.totalorder %s30, 1
      %p200 = por %p198, %p199
      %p201 = scmp.ne.s32.totalorder %s192, %s193
      %p202 = scmp.eq.s32.totalorder %s30, 0
      %p203 = por %p201, %p202
      %p204 = scmp.ne.s32.totalorder %s192, %s193
      %p205 = scmp.eq.s32.totalorder %s31, 1
      %p206 = por %p204, %p205
      %p208 = scmp.ne.s32.totalorder %s193, %s207
      %p209 = scmp.eq.s32.totalorder %s31, 0
      %p210 = por %p208, %p209
      %s212 = sadd.s32 %s211, 1
      %p215 = scmp.eq.s32.totalorder %s25, 1
      %p216 = scmp.ne.s32.totalorder %s211, %s213
      %p217 = scmp.eq.s32.totalorder %s25, 0
      %p218 = por %p216, %p217
      %p219 = scmp.ne.s32.totalorder %s211, %s213
      %p220 = scmp.eq.s32.totalorder %s30, 1
      %p221 = por %p219, %p220
      %p222 = scmp.ne.s32.totalorder %s213, %s214
      %p223 = scmp.eq.s32.totalorder %s30, 0
      %p224 = por %p222, %p223
      %p225 = scmp.ne.s32.totalorder %s213, %s214
      %p226 = scmp.eq.s32.totalorder %s31, 1
      %p227 = por %p225, %p226
      %p229 = scmp.ne.s32.totalorder %s214, %s228
      %p230 = scmp.eq.s32.totalorder %s31, 0
      %p231 = por %p229, %p230
      %s233 = sadd.s32 %s232, 1
      %p236 = scmp.eq.s32.totalorder %s25, 1
      %p237 = scmp.ne.s32.totalorder %s232, %s234
      %p238 = scmp.eq.s32.totalorder %s25, 0
      %p239 = por %p237, %p238
      %p240 = scmp.ne.s32.totalorder %s232, %s234
      %p241 = scmp.eq.s32.totalorder %s30, 1
      %p242 = por %p240, %p241
      %p243 = scmp.ne.s32.totalorder %s234, %s235
      %p244 = scmp.eq.s32.totalorder %s30, 0
      %p245 = por %p243, %p244
      %p246 = scmp.ne.s32.totalorder %s234, %s235
      %p247 = scmp.eq.s32.totalorder %s31, 1
      %p248 = por %p246, %p247
      %p250 = scmp.ne.s32.totalorder %s235, %s249
      %p251 = scmp.eq.s32.totalorder %s31, 0
      %p252 = por %p250, %p251
      %s253 = ssub.s32 %s25, %s32
      %p254 = scmp.eq.s32.totalorder %s253, 0
      %s256 = sadd.s32 %s255, 1
      %s257 = scalar_select %p254, %s255, %s256
      %p260 = pneg %p254
      %p261 = scmp.eq.s32.totalorder %s25, 1
      %p262 = por %p260, %p261
      %p263 = scmp.ne.s32.totalorder %s255, %s258
      %p264 = scmp.eq.s32.totalorder %s25, 0
      %p265 = por %p263, %p264
      %p266 = scmp.ne.s32.totalorder %s255, %s258
      %p267 = scmp.eq.s32.totalorder %s30, 1
      %p268 = por %p266, %p267
      %p269 = scmp.ne.s32.totalorder %s258, %s259
      %p270 = scmp.eq.s32.totalorder %s30, 0
      %p271 = por %p269, %p270
      %p272 = scmp.ne.s32.totalorder %s258, %s259
      %p273 = scmp.eq.s32.totalorder %s31, 1
      %p274 = por %p272, %p273
      %p276 = scmp.ne.s32.totalorder %s259, %s275
      %p277 = scmp.eq.s32.totalorder %s31, 0
      %p278 = por %p276, %p277
      %p279 = scmp.le.s32.totalorder 1, %s25
      %p280 = scmp.lt.s32.totalorder %s25, 3
      %p281 = pnand %p279, %p280
      %p282 = pneg %p281
      // Predicated region
      $region9: #{tpu_custom_call.1} parent=5 // pred_check
        _
      $region10: #{tpu_custom_call.1} parent=5 // pred_check_branch
        %284 = sbr.rel (%p281) target = $region12
      $region11: #{tpu_custom_call.1} parent=5 // pred_region
        %s285 = ssub.s32 %s25, 1
        // Predicated region
        $region13: #{tpu_custom_call.1} parent=11 // pred_check
          %p286 = pneg %p46
        $region14: #{tpu_custom_call.1} parent=11 // pred_check_branch
          %288 = sbr.rel (%p286) target = $region16
        $region15: #{tpu_custom_call.1} parent=11 // pred_region
          %s290 = ssub.s32 16, 16
          %291 = vsyncadd [#allocation6], %s290
          %294 = dma.hbm_to_smem %s0, 16, [#allocation3], [#allocation6]
        $region16: #{tpu_custom_call.1} parent=11 // pred_fallthru
          _
        // Predicated region
        $region17: #{tpu_custom_call.1} parent=11 // pred_check
          %p295 = pneg %p119
        $region18: #{tpu_custom_call.1} parent=11 // pred_check_branch
          %297 = sbr.rel (%p295) target = $region20
        $region19: #{tpu_custom_call.1} parent=11 // pred_region
          %s299 = ssub.s32 3072, 3072
          %300 = vsyncadd [#allocation9], %s299
          %s301 = sshll.u32 [#allocation8], 4
          %s302 = int_to_ptr.vmem [resolvable:$true] %s301
          %307 = dma.hbm_to_vmem [thread:$0]  %s3, 3072, %s302, [#allocation9], 192, 192, 12
        $region20: #{tpu_custom_call.1} parent=11 // pred_fallthru
          _
        // Predicated region
        $region21: #{tpu_custom_call.1} parent=11 // pred_check
          %p308 = pneg %p140
        $region22: #{tpu_custom_call.1} parent=11 // pred_check_branch
          %310 = sbr.rel (%p308) target = $region24
        $region23: #{tpu_custom_call.1} parent=11 // pred_region
          %s312 = ssub.s32 1024, 1024
          %313 = vsyncadd [#allocation9], %s312
          %s314 = sshll.u32 [#allocation10], 4
          %s315 = int_to_ptr.vmem [resolvable:$true] %s314
          %320 = dma.hbm_to_vmem [thread:$0]  %s4, 1024, %s315, [#allocation9], 64, 64, 4
        $region24: #{tpu_custom_call.1} parent=11 // pred_fallthru
          _
        // Predicated region
        $region25: #{tpu_custom_call.1} parent=11 // pred_check
          %p321 = pneg %p161
        $region26: #{tpu_custom_call.1} parent=11 // pred_check_branch
          %323 = sbr.rel (%p321) target = $region28
        $region27: #{tpu_custom_call.1} parent=11 // pred_region
          _
        $region28: #{tpu_custom_call.1} parent=11 // pred_fallthru
          _
        // Predicated region
        $region29: #{tpu_custom_call.1} parent=11 // pred_check
          %p324 = pneg %p182
        $region30: #{tpu_custom_call.1} parent=11 // pred_check_branch
          %326 = sbr.rel (%p324) target = $region32
        $region31: #{tpu_custom_call.1} parent=11 // pred_region
          %s328 = ssub.s32 2048, 2048
          %329 = vsyncadd [#allocation12], %s328
          %s330 = sshll.u32 [#allocation11], 4
          %s331 = int_to_ptr.vmem [resolvable:$true] %s330
          %336 = dma.hbm_to_vmem [thread:$0]  %s6, 2048, %s331, [#allocation12], 128, 128, 8
        $region32: #{tpu_custom_call.1} parent=11 // pred_fallthru
          _
        // Predicated region
        $region33: #{tpu_custom_call.1} parent=11 // pred_check
          %p337 = pneg %p203
        $region34: #{tpu_custom_call.1} parent=11 // pred_check_branch
          %339 = sbr.rel (%p337) target = $region36
        $region35: #{tpu_custom_call.1} parent=11 // pred_region
          _
        $region36: #{tpu_custom_call.1} parent=11 // pred_fallthru
          _
        // Predicated region
        $region37: #{tpu_custom_call.1} parent=11 // pred_check
          %p340 = pneg %p224
        $region38: #{tpu_custom_call.1} parent=11 // pred_check_branch
          %342 = sbr.rel (%p340) target = $region40
        $region39: #{tpu_custom_call.1} parent=11 // pred_region
          %s344 = ssub.s32 2048, 2048
          %345 = vsyncadd [#allocation12], %s344
          %s346 = sshll.u32 [#allocation13], 4
          %s347 = int_to_ptr.vmem [resolvable:$true] %s346
          %352 = dma.hbm_to_vmem [thread:$0]  %s8, 2048, %s347, [#allocation12], 64, 64, 4
        $region40: #{tpu_custom_call.1} parent=11 // pred_fallthru
          _
        // Predicated region
        $region41: #{tpu_custom_call.1} parent=11 // pred_check
          %p353 = pneg %p245
        $region42: #{tpu_custom_call.1} parent=11 // pred_check_branch
          %355 = sbr.rel (%p353) target = $region44
        $region43: #{tpu_custom_call.1} parent=11 // pred_region
          _
        $region44: #{tpu_custom_call.1} parent=11 // pred_fallthru
          _
      $region12: #{tpu_custom_call.1} parent=5 // pred_fallthru
        _
      %p356 = scmp.lt.s32.totalorder %s25, 2
      // Predicated region
      $region45: #{tpu_custom_call.1} parent=5 // pred_check
        %p357 = pneg %p356
      $region46: #{tpu_custom_call.1} parent=5 // pred_check_branch
        %359 = sbr.rel (%p357) target = $region48
      $region47: #{tpu_custom_call.1} parent=5 // pred_region
        // Predicated region
        $region49: #{tpu_custom_call.1} parent=47 // pred_check
          %p360 = pneg %p66
        $region50: #{tpu_custom_call.1} parent=47 // pred_check_branch
          %362 = sbr.rel (%p360) target = $region52
        $region51: #{tpu_custom_call.1} parent=47 // pred_region
          %s363 = sand.u32 %s56, 1
          %s364 = scalar_lea.sflag [#allocation4], %s363
          %s365 = sand.u32 %s56, 1
          %s366 = smul.addr %s365, 8
          %s367 = scalar_lea.vmem [#allocation7], %s366
          %s369 = ssub.s32 128, 128
          %370 = vsyncadd %s364, %s369
          %s371 = smul.addr %s25, 128
          %s372 = scalar_lea.hbm %s1, %s371
          %s374 = sshll.u32 %s367, 4
          %s375 = int_to_ptr.vmem [resolvable:$true] %s374
          %377 = dma.hbm_to_vmem [thread:$0]  %s372, 128, %s375, %s364
        $region52: #{tpu_custom_call.1} parent=47 // pred_fallthru
          _
        // Predicated region
        $region53: #{tpu_custom_call.1} parent=47 // pred_check
          %p378 = pneg %p92
        $region54: #{tpu_custom_call.1} parent=47 // pred_check_branch
          %380 = sbr.rel (%p378) target = $region56
        $region55: #{tpu_custom_call.1} parent=47 // pred_region
          %p381 = scmp.lt.s32.totalorder %s25, 1
          %s382 = scalar_select %p381, %s25, 1
          %s383 = scalar_lea.vmem %s2, %s382
        $region56: #{tpu_custom_call.1} parent=47 // pred_fallthru
          _
      $region48: #{tpu_custom_call.1} parent=5 // pred_fallthru
        _
      %p384 = scmp.le.s32.totalorder 1, %s25
      %p385 = scmp.lt.s32.totalorder %s25, 3
      %p386 = pnand %p384, %p385
      %p387 = pneg %p386
      // Predicated region
      $region57: #{tpu_custom_call.1} parent=5 // pred_check
        _
      $region58: #{tpu_custom_call.1} parent=5 // pred_check_branch
        %389 = sbr.rel (%p386) target = $region60
      $region59: #{tpu_custom_call.1} parent=5 // pred_region
        %s390 = ssub.s32 %s25, 1
        // Predicated region
        $region61: #{tpu_custom_call.1} parent=59 // pred_check
          %p391 = pneg %p46
        $region62: #{tpu_custom_call.1} parent=59 // pred_check_branch
          %393 = sbr.rel (%p391) target = $region64
        $region63: #{tpu_custom_call.1} parent=59 // pred_region
          %394 = dma.done [#allocation6], 16
        $region64: #{tpu_custom_call.1} parent=59 // pred_fallthru
          _
        %s395 = sand.u32 %s59, 1
        %s396 = scalar_lea.sflag [#allocation4], %s395
        %s397 = sand.u32 %s59, 1
        %s398 = smul.addr %s397, 8
        %s399 = scalar_lea.vmem [#allocation7], %s398
        // Predicated region
        $region65: #{tpu_custom_call.1} parent=59 // pred_check
          %p400 = pneg %p72
        $region66: #{tpu_custom_call.1} parent=59 // pred_check_branch
          %402 = sbr.rel (%p400) target = $region68
        $region67: #{tpu_custom_call.1} parent=59 // pred_region
          %403 = dma.done %s396, 128
        $region68: #{tpu_custom_call.1} parent=59 // pred_fallthru
          _
        // Predicated region
        $region69: #{tpu_custom_call.1} parent=59 // pred_check
          %p404 = pneg %p119
        $region70: #{tpu_custom_call.1} parent=59 // pred_check_branch
          %406 = sbr.rel (%p404) target = $region72
        $region71: #{tpu_custom_call.1} parent=59 // pred_region
          %407 = dma.done [#allocation9], 3072
        $region72: #{tpu_custom_call.1} parent=59 // pred_fallthru
          _
        // Predicated region
        $region73: #{tpu_custom_call.1} parent=59 // pred_check
          %p408 = pneg %p140
        $region74: #{tpu_custom_call.1} parent=59 // pred_check_branch
          %410 = sbr.rel (%p408) target = $region76
        $region75: #{tpu_custom_call.1} parent=59 // pred_region
          %411 = dma.done [#allocation9], 1024
        $region76: #{tpu_custom_call.1} parent=59 // pred_fallthru
          _
        // Predicated region
        $region77: #{tpu_custom_call.1} parent=59 // pred_check
          %p412 = pneg %p182
        $region78: #{tpu_custom_call.1} parent=59 // pred_check_branch
          %414 = sbr.rel (%p412) target = $region80
        $region79: #{tpu_custom_call.1} parent=59 // pred_region
          %415 = dma.done [#allocation12], 2048
        $region80: #{tpu_custom_call.1} parent=59 // pred_fallthru
          _
        // Predicated region
        $region81: #{tpu_custom_call.1} parent=59 // pred_check
          %p416 = pneg %p224
        $region82: #{tpu_custom_call.1} parent=59 // pred_check_branch
          %418 = sbr.rel (%p416) target = $region84
        $region83: #{tpu_custom_call.1} parent=59 // pred_region
          %419 = dma.done [#allocation12], 2048
        $region84: #{tpu_custom_call.1} parent=59 // pred_fallthru
          _
        %420 = sfence
        %p421 = pneg %p46
        %p422 = pneg %p43
        %s423 = sand.u32 %s59, 1
        %s424 = scalar_lea.sflag [#allocation4], %s423
        %s425 = sand.u32 %s59, 1
        %s426 = smul.addr %s425, 8
        %s427 = scalar_lea.vmem [#allocation7], %s426
        %p428 = pneg %p72
        %p429 = pneg %p69
        %p430 = scmp.lt.s32.totalorder %s30, 1
        %s431 = scalar_select %p430, %s30, 1
        %s432 = scalar_lea.vmem %s2, %s431
        %p433 = pneg %p98
        %p434 = pneg %p95
        %p435 = pneg %p119
        %p436 = pneg %p116
        %p437 = pneg %p140
        %p438 = pneg %p137
        %p439 = pneg %p161
        %p440 = pneg %p158
        %p441 = pneg %p182
        %p442 = pneg %p179
        %p443 = pneg %p203
        %p444 = pneg %p200
        %p445 = pneg %p224
        %p446 = pneg %p221
        %p447 = pneg %p245
        %p448 = pneg %p242
        %p449 = pneg %p271
        %p450 = pneg %p268
        %s451 = sand.u32 %s258, 1
        %s452 = scalar_lea.sflag [#allocation5], %s451
        %s453 = sand.u32 %s258, 1
        %s454 = smul.addr %s453, 8
        %s455 = scalar_lea.vmem [#allocation14], %s454
        %p456 = scmp.lt.s32.totalorder %s30, 1
        %s457 = scalar_select %p456, %s30, 1
        %s458 = scalar_lea.vmem %s2, %s457
        %s460 = sld [smem:[#allocation3]]
        %s461 = sld [smem:[#allocation3 + $0x1]]
        %s462 = sld [smem:[#allocation3 + $0x2]]
        %s463 = sld [smem:[#allocation3 + $0x3]]
        %v464 = vld [vmem:[%s399] sm:$0xff]
        %465 = vadd.xlane.f32.xlu0 %v464
        %v466 = vpop.xlane.xlu0 %465
        %v467 = vmul.f32 %v466, 0.0078125
        %v468 = vsub.f32 %v464, %v467
        %v469 = vmul.f32 %v468, %v468
        %470 = vadd.xlane.f32.xlu0 %v469
        %v471 = vpop.xlane.xlu0 %470
        %v472 = vmul.f32 %v471, 0.007874016
        %v473 = vrsqrt.pop %v472
        %v474 = vmul.f32 %v472, %v473
        %vm475 = vcmp.eq.f32.partialorder %v472, inf
        %v476 = vsel %vm475, %v472, %v474
        %vm477 = vcmp.eq.f32.partialorder %v472, 0.0
        %v478 = vand.u32 %v472, 2147483648
        %v479 = vsel %vm477, %v478, %v476
        %v480 = vadd.f32 %v479, 1e-06
        %v481 = vrcp.pop %v480
        %v482 = vstv %s460
        %v483 = vmul.f32 %v482, %v468
        %v484 = vmul.f32 %v483, %v481
        %v485 = vstv %s461
        %v486 = vadd.f32 %v484, %v485
        %v487 = vpack.c.bf16 %v486, %v486
        %v488 = vld [vmem:[#allocation8] sm:$0xff]
        %v489 = vld [vmem:[#allocation8 + $0x8] sm:$0xf]
        %v490 = vld [vmem:[#allocation8 + $0xc] sm:$0xff]
        %v491 = vld [vmem:[#allocation8 + $0x14] sm:$0xf]
        %v492 = vld [vmem:[#allocation8 + $0x18] sm:$0xff]
        %v493 = vld [vmem:[#allocation8 + $0x20] sm:$0xf]
        %v494 = vld [vmem:[#allocation8 + $0x24] sm:$0xff]
        %v495 = vld [vmem:[#allocation8 + $0x2c] sm:$0xf]
        %v496 = vld [vmem:[#allocation8 + $0x30] sm:$0xff]
        %v497 = vld [vmem:[#allocation8 + $0x38] sm:$0xf]
        %v498 = vld [vmem:[#allocation8 + $0x3c] sm:$0xff]
        %v499 = vld [vmem:[#allocation8 + $0x44] sm:$0xf]
        %v500 = vld [vmem:[#allocation8 + $0x48] sm:$0xff]
        %v501 = vld [vmem:[#allocation8 + $0x50] sm:$0xf]
        %v502 = vld [vmem:[#allocation8 + $0x54] sm:$0xff]
        %v503 = vld [vmem:[#allocation8 + $0x5c] sm:$0xf]
        %v504 = vld [vmem:[#allocation8 + $0x60] sm:$0xff]
        %v505 = vld [vmem:[#allocation8 + $0x68] sm:$0xf]
        %v506 = vld [vmem:[#allocation8 + $0x6c] sm:$0xff]
        %v507 = vld [vmem:[#allocation8 + $0x74] sm:$0xf]
        %v508 = vld [vmem:[#allocation8 + $0x78] sm:$0xff]
        %v509 = vld [vmem:[#allocation8 + $0x80] sm:$0xf]
        %v510 = vld [vmem:[#allocation8 + $0x84] sm:$0xff]
        %v511 = vld [vmem:[#allocation8 + $0x8c] sm:$0xf]
        %v512 = vld [vmem:[#allocation8 + $0x90] sm:$0xff]
        %v513 = vld [vmem:[#allocation8 + $0x98] sm:$0xf]
        %v514 = vld [vmem:[#allocation8 + $0x9c] sm:$0xff]
        %v515 = vld [vmem:[#allocation8 + $0xa4] sm:$0xf]
        %v516 = vld [vmem:[#allocation8 + $0xa8] sm:$0xff]
        %v517 = vld [vmem:[#allocation8 + $0xb0] sm:$0xf]
        %v518 = vld [vmem:[#allocation8 + $0xb4] sm:$0xff]
        %v519 = vld [vmem:[#allocation8 + $0xbc] sm:$0xf]
        %v552 = vunpack.c.l.b16 %v488
        %v553 = vunpack.c.h.b16 %v488
        %v554 = vunpack.c.l.b16 %v489
        %v555 = vunpack.c.l.b16 %v490
        %v556 = vunpack.c.h.b16 %v490
        %v557 = vunpack.c.l.b16 %v491
        %v558 = vunpack.c.l.b16 %v492
        %v559 = vunpack.c.h.b16 %v492
        %v560 = vunpack.c.l.b16 %v493
        %v561 = vunpack.c.l.b16 %v494
        %v562 = vunpack.c.h.b16 %v494
        %v563 = vunpack.c.l.b16 %v495
        %v564 = vunpack.c.l.b16 %v496
        %v565 = vunpack.c.h.b16 %v496
        %v566 = vunpack.c.l.b16 %v497
        %v567 = vunpack.c.l.b16 %v498
        %v568 = vunpack.c.h.b16 %v498
        %v569 = vunpack.c.l.b16 %v499
        %v570 = vunpack.c.l.b16 %v500
        %v571 = vunpack.c.h.b16 %v500
        %v572 = vunpack.c.l.b16 %v501
        %v573 = vunpack.c.l.b16 %v502
        %v574 = vunpack.c.h.b16 %v502
        %v575 = vunpack.c.l.b16 %v503
        %v576 = vunpack.c.l.b16 %v504
        %v577 = vunpack.c.h.b16 %v504
        %v578 = vunpack.c.l.b16 %v505
        %v579 = vunpack.c.l.b16 %v506
        %v580 = vunpack.c.h.b16 %v506
        %v581 = vunpack.c.l.b16 %v507
        %v582 = vunpack.c.l.b16 %v508
        %v583 = vunpack.c.h.b16 %v508
        %v584 = vunpack.c.l.b16 %v509
        %v585 = vunpack.c.l.b16 %v510
        %v586 = vunpack.c.h.b16 %v510
        %v587 = vunpack.c.l.b16 %v511
        %v588 = vunpack.c.l.b16 %v512
        %v589 = vunpack.c.h.b16 %v512
        %v590 = vunpack.c.l.b16 %v513
        %v591 = vunpack.c.l.b16 %v514
        %v592 = vunpack.c.h.b16 %v514
        %v593 = vunpack.c.l.b16 %v515
        %v594 = vunpack.c.l.b16 %v516
        %v595 = vunpack.c.h.b16 %v516
        %v596 = vunpack.c.l.b16 %v517
        %v597 = vunpack.c.l.b16 %v518
        %v598 = vunpack.c.h.b16 %v518
        %v599 = vunpack.c.l.b16 %v519
        %v600 = vpack.c.b16 %v555, %v552
        %v601 = vpack.c.b16 %v556, %v553
        %v602 = vpack.c.b16 %v557, %v554
        %v603 = vpack.c.b16 %v561, %v558
        %v604 = vpack.c.b16 %v562, %v559
        %v605 = vpack.c.b16 %v563, %v560
        %v606 = vpack.c.b16 %v567, %v564
        %v607 = vpack.c.b16 %v568, %v565
        %v608 = vpack.c.b16 %v569, %v566
        %v609 = vpack.c.b16 %v573, %v570
        %v610 = vpack.c.b16 %v574, %v571
        %v611 = vpack.c.b16 %v575, %v572
        %v612 = vpack.c.b16 %v579, %v576
        %v613 = vpack.c.b16 %v580, %v577
        %v614 = vpack.c.b16 %v581, %v578
        %v615 = vpack.c.b16 %v585, %v582
        %v616 = vpack.c.b16 %v586, %v583
        %v617 = vpack.c.b16 %v587, %v584
        %v618 = vpack.c.b16 %v591, %v588
        %v619 = vpack.c.b16 %v592, %v589
        %v620 = vpack.c.b16 %v593, %v590
        %v621 = vpack.c.b16 %v597, %v594
        %v622 = vpack.c.b16 %v598, %v595
        %v623 = vpack.c.b16 %v599, %v596
        %648 = vmatprep.subr.bf16.mxu0 %v601
        %649 = vmatpush1.bf16.msra.mxu0 %v600
        %650 = vmatprep.subr.bf16.mxu0 %v604
        %651 = vmatpush1.bf16.msra.mxu0 %v603
        %652 = vmatprep.subr.bf16.mxu0 %v607
        %653 = vmatpush1.bf16.msra.mxu0 %v606
        %654 = vmatprep.subr.bf16.mxu0 %v610
        %655 = vmatpush1.bf16.msra.mxu0 %v609
        %656 = vmatprep.subr.bf16.mxu0 %v613
        %657 = vmatpush1.bf16.msra.mxu0 %v612
        %658 = vmatprep.subr.bf16.mxu0 %v616
        %659 = vmatpush1.bf16.msra.mxu0 %v615
        %660 = vmatprep.subr.bf16.mxu0 %v619
        %661 = vmatpush1.bf16.msra.mxu0 %v618
        %662 = vmatprep.subr.bf16.mxu0 %v622
        %663 = vmatpush1.bf16.msra.mxu0 %v621
        %664 = vmatprep.subr.bf16.mxu0 0
        %665 = vmatpush1.bf16.msra.mxu0 0
        %666 = vmatprep.subr.bf16.mxu0 0
        %667 = vmatpush1.bf16.msra.mxu0 0
        %668 = vmatprep.subr.bf16.mxu0 0
        %669 = vmatpush1.bf16.msra.mxu0 0
        %670 = vmatprep.subr.bf16.mxu0 0
        %671 = vmatpush1.bf16.msra.mxu0 0
        %672 = vmatprep.subr.bf16.mxu0 0
        %673 = vmatpush1.bf16.msra.mxu0 0
        %674 = vmatprep.subr.bf16.mxu0 0
        %675 = vmatpush1.bf16.msra.mxu0 0
        %676 = vmatprep.subr.bf16.mxu0 0
        %677 = vmatpush1.bf16.msra.mxu0 0
        %678 = vmatprep.subr.bf16.mxu0 0
        %679 = vmatpush1.bf16.msra.mxu0 0
        %680 = vmatprep.mubr.bf16.mxu0 0
        %681 = vmatmul.mubr.bf16.gmra.mrb[0].mxu0 %v487
        %v682 = vpop.f32.mrb[0].mxu0
        %v683 = vadd.f32 0.0, %v682
        %v684 = vpop.f32.mrb[0].mxu0
        %v685 = vadd.f32 0.0, %v684
        %v686 = vpop.f32.mrb[0].mxu0
        %v687 = vpop.f32.mrb[0].mxu0
        %688 = vdwg.mxu0
        %689 = vmatprep.subr.bf16.mxu0 0
        %690 = vmatpush1.bf16.msra.mxu0 %v602
        %691 = vmatprep.subr.bf16.mxu0 0
        %692 = vmatpush1.bf16.msra.mxu0 %v605
        %693 = vmatprep.subr.bf16.mxu0 0
        %694 = vmatpush1.bf16.msra.mxu0 %v608
        %695 = vmatprep.subr.bf16.mxu0 0
        %696 = vmatpush1.bf16.msra.mxu0 %v611
        %697 = vmatprep.subr.bf16.mxu0 0
        %698 = vmatpush1.bf16.msra.mxu0 %v614
        %699 = vmatprep.subr.bf16.mxu0 0
        %700 = vmatpush1.bf16.msra.mxu0 %v617
        %701 = vmatprep.subr.bf16.mxu0 0
        %702 = vmatpush1.bf16.msra.mxu0 %v620
        %703 = vmatprep.subr.bf16.mxu0 0
        %704 = vmatpush1.bf16.msra.mxu0 %v623
        %705 = vmatprep.subr.bf16.mxu0 0
        %706 = vmatpush1.bf16.msra.mxu0 0
        %707 = vmatprep.subr.bf16.mxu0 0
        %708 = vmatpush1.bf16.msra.mxu0 0
        %709 = vmatprep.subr.bf16.mxu0 0
        %710 = vmatpush1.bf16.msra.mxu0 0
        %711 = vmatprep.subr.bf16.mxu0 0
        %712 = vmatpush1.bf16.msra.mxu0 0
        %713 = vmatprep.subr.bf16.mxu0 0
        %714 = vmatpush1.bf16.msra.mxu0 0
        %715 = vmatprep.subr.bf16.mxu0 0
        %716 = vmatpush1.bf16.msra.mxu0 0
        %717 = vmatprep.subr.bf16.mxu0 0
        %718 = vmatpush1.bf16.msra.mxu0 0
        %719 = vmatprep.subr.bf16.mxu0 0
        %720 = vmatpush1.bf16.msra.mxu0 0
        %721 = vmatprep.mubr.bf16.mxu0 0
        %722 = vmatmul.mubr.bf16.gmra.mrb[0].mxu0 %v487
        %v723 = vpop.f32.mrb[0].mxu0
        %v724 = vadd.f32 0.0, %v723
        %v725 = vpop.f32.mrb[0].mxu0
        %v726 = vpop.f32.mrb[0].mxu0
        %v727 = vpop.f32.mrb[0].mxu0
        %728 = vdwg.mxu0
        %v729 = vpack.c.bf16 %v683, %v683
        %v730 = vpack.c.bf16 %v685, %v685
        %v731 = vpack.c.bf16 %v724, %v724
        %v732 = vld [vmem:[%s458] sm:$0x1]
        %v733 = vsub.f32 %v732, 1.0
        %v734 = vmul.f32 %v733, 1e+09
        %v736 = vlaneseq
        %v737 = vshrl.u32 %v736, 7
        %v738 = vsub.s32 0, %v737
        %v739 = vrot.slane %v734, %v738
        %vm741 = vcmask 261120
        %v743 = vsel %vm741, %v729, 0
        %v746 = vsel %vm741, %v730, 0
        %748 = vmatprep.subr.bf16.mxu0 0
        %749 = vmatpush1.bf16.xpose.msra.mxu0 %v746
        %750 = vmatprep.subr.bf16.mxu0 0
        %751 = vmatpush1.bf16.xpose.msra.mxu0 0
        %752 = vmatprep.subr.bf16.mxu0 0
        %753 = vmatpush1.bf16.xpose.msra.mxu0 0
        %754 = vmatprep.subr.bf16.mxu0 0
        %755 = vmatpush1.bf16.xpose.msra.mxu0 0
        %756 = vmatprep.subr.bf16.mxu0 0
        %757 = vmatpush1.bf16.xpose.msra.mxu0 0
        %758 = vmatprep.subr.bf16.mxu0 0
        %759 = vmatpush1.bf16.xpose.msra.mxu0 0
        %760 = vmatprep.subr.bf16.mxu0 0
        %761 = vmatpush1.bf16.xpose.msra.mxu0 0
        %762 = vmatprep.subr.bf16.mxu0 0
        %763 = vmatpush1.bf16.xpose.msra.mxu0 0
        %764 = vmatprep.subr.bf16.mxu0 0
        %765 = vmatpush1.bf16.xpose.msra.mxu0 0
        %766 = vmatprep.subr.bf16.mxu0 0
        %767 = vmatpush1.bf16.xpose.msra.mxu0 0
        %768 = vmatprep.subr.bf16.mxu0 0
        %769 = vmatpush1.bf16.xpose.msra.mxu0 0
        %770 = vmatprep.subr.bf16.mxu0 0
        %771 = vmatpush1.bf16.xpose.msra.mxu0 0
        %772 = vmatprep.subr.bf16.mxu0 0
        %773 = vmatpush1.bf16.xpose.msra.mxu0 0
        %774 = vmatprep.subr.bf16.mxu0 0
        %775 = vmatpush1.bf16.xpose.msra.mxu0 0
        %776 = vmatprep.subr.bf16.mxu0 0
        %777 = vmatpush1.bf16.xpose.msra.mxu0 0
        %778 = vmatprep.subr.bf16.mxu0 0
        %779 = vmatpush1.bf16.xpose.msra.mxu0 0
        %780 = vmatprep.mubr.bf16.mxu0 0
        %781 = vmatmul.mubr.bf16.gmra.mrb[0].mxu0 %v743
        %v782 = vpop.f32.mrb[0].mxu0
        %v783 = vadd.f32 %v739, %v782
        %v784 = vpop.f32.mrb[0].mxu0
        %v785 = vpop.f32.mrb[0].mxu0
        %v786 = vpop.f32.mrb[0].mxu0
        %787 = vdwg.mxu0
        %vm788 = vcmask 64512
        %v789 = vsel %vm788, %v783, -inf
        %790 = vmax.xlane.f32.xlu0 %v789
        %v791 = vpop.xlane.xlu0 %790
        %v792 = vsub.f32 %v783, %v791
        %v793 = vmul.f32 %v792, 1.442695
        %v794 = vpow.pop %v793
        %v795 = vsel %vm788, %v794, 0.0
        %796 = vadd.xlane.f32.xlu0 %v795
        %v797 = vpop.xlane.xlu0 %796
        %v798 = vrcp.pop %v797
        %v799 = vmul.f32 %v794, %v798
        %v800 = vpack.c.bf16 %v799, %v799
        %v802 = vsel %vm788, %v800, 0
        %vm804 = vcmask 1043456
        %v806 = vsel %vm804, %v731, 0
        %808 = vmatprep.subr.bf16.mxu0 0
        %809 = vmatpush1.bf16.msra.mxu0 %v806
        %810 = vmatprep.subr.bf16.mxu0 0
        %811 = vmatpush1.bf16.msra.mxu0 0
        %812 = vmatprep.subr.bf16.mxu0 0
        %813 = vmatpush1.bf16.msra.mxu0 0
        %814 = vmatprep.subr.bf16.mxu0 0
        %815 = vmatpush1.bf16.msra.mxu0 0
        %816 = vmatprep.subr.bf16.mxu0 0
        %817 = vmatpush1.bf16.msra.mxu0 0
        %818 = vmatprep.subr.bf16.mxu0 0
        %819 = vmatpush1.bf16.msra.mxu0 0
        %820 = vmatprep.subr.bf16.mxu0 0
        %821 = vmatpush1.bf16.msra.mxu0 0
        %822 = vmatprep.subr.bf16.mxu0 0
        %823 = vmatpush1.bf16.msra.mxu0 0
        %824 = vmatprep.subr.bf16.mxu0 0
        %825 = vmatpush1.bf16.msra.mxu0 0
        %826 = vmatprep.subr.bf16.mxu0 0
        %827 = vmatpush1.bf16.msra.mxu0 0
        %828 = vmatprep.subr.bf16.mxu0 0
        %829 = vmatpush1.bf16.msra.mxu0 0
        %830 = vmatprep.subr.bf16.mxu0 0
        %831 = vmatpush1.bf16.msra.mxu0 0
        %832 = vmatprep.subr.bf16.mxu0 0
        %833 = vmatpush1.bf16.msra.mxu0 0
        %834 = vmatprep.subr.bf16.mxu0 0
        %835 = vmatpush1.bf16.msra.mxu0 0
        %836 = vmatprep.subr.bf16.mxu0 0
        %837 = vmatpush1.bf16.msra.mxu0 0
        %838 = vmatprep.subr.bf16.mxu0 0
        %839 = vmatpush1.bf16.msra.mxu0 0
        %840 = vmatprep.mubr.bf16.mxu0 0
        %841 = vmatmul.mubr.bf16.gmra.mrb[0].mxu0 %v802
        %v842 = vpop.f32.mrb[0].mxu0
        %v843 = vadd.f32 0.0, %v842
        %v844 = vpop.f32.mrb[0].mxu0
        %v845 = vpop.f32.mrb[0].mxu0
        %v846 = vpop.f32.mrb[0].mxu0
        %847 = vdwg.mxu0
        %v848 = vpack.c.bf16 %v843, %v843
        %vm849 = vcmask 257024
        %850 = vst.msk [vmem:[#allocation2] sm:$0xf] %vm849, %v848
        %852 = vrot.lane.b32.xlu0 %v729, 96
        %v853 = vpop.permute.xlu0 %852
        %855 = vrot.lane.b32.xlu0 %v730, 96
        %v856 = vpop.permute.xlu0 %855
        %v858 = vsel %vm741, %v853, 0
        %v861 = vsel %vm741, %v856, 0
        %863 = vmatprep.subr.bf16.mxu0 0
        %864 = vmatpush1.bf16.xpose.msra.mxu0 %v861
        %865 = vmatprep.subr.bf16.mxu0 0
        %866 = vmatpush1.bf16.xpose.msra.mxu0 0
        %867 = vmatprep.subr.bf16.mxu0 0
        %868 = vmatpush1.bf16.xpose.msra.mxu0 0
        %869 = vmatprep.subr.bf16.mxu0 0
        %870 = vmatpush1.bf16.xpose.msra.mxu0 0
        %871 = vmatprep.subr.bf16.mxu0 0
        %872 = vmatpush1.bf16.xpose.msra.mxu0 0
        %873 = vmatprep.subr.bf16.mxu0 0
        %874 = vmatpush1.bf16.xpose.msra.mxu0 0
        %875 = vmatprep.subr.bf16.mxu0 0
        %876 = vmatpush1.bf16.xpose.msra.mxu0 0
        %877 = vmatprep.subr.bf16.mxu0 0
        %878 = vmatpush1.bf16.xpose.msra.mxu0 0
        %879 = vmatprep.subr.bf16.mxu0 0
        %880 = vmatpush1.bf16.xpose.msra.mxu0 0
        %881 = vmatprep.subr.bf16.mxu0 0
        %882 = vmatpush1.bf16.xpose.msra.mxu0 0
        %883 = vmatprep.subr.bf16.mxu0 0
        %884 = vmatpush1.bf16.xpose.msra.mxu0 0
        %885 = vmatprep.subr.bf16.mxu0 0
        %886 = vmatpush1.bf16.xpose.msra.mxu0 0
        %887 = vmatprep.subr.bf16.mxu0 0
        %888 = vmatpush1.bf16.xpose.msra.mxu0 0
        %889 = vmatprep.subr.bf16.mxu0 0
        %890 = vmatpush1.bf16.xpose.msra.mxu0 0
        %891 = vmatprep.subr.bf16.mxu0 0
        %892 = vmatpush1.bf16.xpose.msra.mxu0 0
        %893 = vmatprep.subr.bf16.mxu0 0
        %894 = vmatpush1.bf16.xpose.msra.mxu0 0
        %895 = vmatprep.mubr.bf16.mxu0 0
        %896 = vmatmul.mubr.bf16.gmra.mrb[0].mxu0 %v858
        %v897 = vpop.f32.mrb[0].mxu0
        %v898 = vadd.f32 %v739, %v897
        %v899 = vpop.f32.mrb[0].mxu0
        %v900 = vpop.f32.mrb[0].mxu0
        %v901 = vpop.f32.mrb[0].mxu0
        %902 = vdwg.mxu0
        %v903 = vsel %vm788, %v898, -inf
        %904 = vmax.xlane.f32.xlu0 %v903
        %v905 = vpop.xlane.xlu0 %904
        %v906 = vsub.f32 %v898, %v905
        %v907 = vmul.f32 %v906, 1.442695
        %v908 = vpow.pop %v907
        %v909 = vsel %vm788, %v908, 0.0
        %910 = vadd.xlane.f32.xlu0 %v909
        %v911 = vpop.xlane.xlu0 %910
        %v912 = vrcp.pop %v911
        %v913 = vmul.f32 %v908, %v912
        %v914 = vpack.c.bf16 %v913, %v913
        %916 = vrot.lane.b32.xlu0 %v731, 96
        %v917 = vpop.permute.xlu0 %916
        %v919 = vsel %vm788, %v914, 0
        %v922 = vsel %vm804, %v917, 0
        %924 = vmatprep.subr.bf16.mxu0 0
        %925 = vmatpush1.bf16.msra.mxu0 %v922
        %926 = vmatprep.subr.bf16.mxu0 0
        %927 = vmatpush1.bf16.msra.mxu0 0
        %928 = vmatprep.subr.bf16.mxu0 0
        %929 = vmatpush1.bf16.msra.mxu0 0
        %930 = vmatprep.subr.bf16.mxu0 0
        %931 = vmatpush1.bf16.msra.mxu0 0
        %932 = vmatprep.subr.bf16.mxu0 0
        %933 = vmatpush1.bf16.msra.mxu0 0
        %934 = vmatprep.subr.bf16.mxu0 0
        %935 = vmatpush1.bf16.msra.mxu0 0
        %936 = vmatprep.subr.bf16.mxu0 0
        %937 = vmatpush1.bf16.msra.mxu0 0
        %938 = vmatprep.subr.bf16.mxu0 0
        %939 = vmatpush1.bf16.msra.mxu0 0
        %940 = vmatprep.subr.bf16.mxu0 0
        %941 = vmatpush1.bf16.msra.mxu0 0
        %942 = vmatprep.subr.bf16.mxu0 0
        %943 = vmatpush1.bf16.msra.mxu0 0
        %944 = vmatprep.subr.bf16.mxu0 0
        %945 = vmatpush1.bf16.msra.mxu0 0
        %946 = vmatprep.subr.bf16.mxu0 0
        %947 = vmatpush1.bf16.msra.mxu0 0
        %948 = vmatprep.subr.bf16.mxu0 0
        %949 = vmatpush1.bf16.msra.mxu0 0
        %950 = vmatprep.subr.bf16.mxu0 0
        %951 = vmatpush1.bf16.msra.mxu0 0
        %952 = vmatprep.subr.bf16.mxu0 0
        %953 = vmatpush1.bf16.msra.mxu0 0
        %954 = vmatprep.subr.bf16.mxu0 0
        %955 = vmatpush1.bf16.msra.mxu0 0
        %956 = vmatprep.mubr.bf16.mxu0 0
        %957 = vmatmul.mubr.bf16.gmra.mrb[0].mxu0 %v919
        %v958 = vpop.f32.mrb[0].mxu0
        %v959 = vadd.f32 0.0, %v958
        %v960 = vpop.f32.mrb[0].mxu0
        %v961 = vpop.f32.mrb[0].mxu0
        %v962 = vpop.f32.mrb[0].mxu0
        %963 = vdwg.mxu0
        %v964 = vpack.c.bf16 %v959, %v959
        %v966 = vunpack.c.l.b16 %v964
        %v967 = vpack.c.b16 %v966, %v966
        %968 = vrot.lane.b32.xlu0 %v967, 32
        %v969 = vpop.permute.xlu0 %968
        %vm971 = vcmask 519424
        %972 = vst.msk [vmem:[#allocation2] sm:$0xf] %vm971, %v969
        %973 = vrot.lane.b32.xlu0 %v729, 64
        %v974 = vpop.permute.xlu0 %973
        %975 = vrot.lane.b32.xlu0 %v730, 64
        %v976 = vpop.permute.xlu0 %975
        %v978 = vsel %vm741, %v974, 0
        %v981 = vsel %vm741, %v976, 0
        %983 = vmatprep.subr.bf16.mxu0 0
        %984 = vmatpush1.bf16.xpose.msra.mxu0 %v981
        %985 = vmatprep.subr.bf16.mxu0 0
        %986 = vmatpush1.bf16.xpose.msra.mxu0 0
        %987 = vmatprep.subr.bf16.mxu0 0
        %988 = vmatpush1.bf16.xpose.msra.mxu0 0
        %989 = vmatprep.subr.bf16.mxu0 0
        %990 = vmatpush1.bf16.xpose.msra.mxu0 0
        %991 = vmatprep.subr.bf16.mxu0 0
        %992 = vmatpush1.bf16.xpose.msra.mxu0 0
        %993 = vmatprep.subr.bf16.mxu0 0
        %994 = vmatpush1.bf16.xpose.msra.mxu0 0
        %995 = vmatprep.subr.bf16.mxu0 0
        %996 = vmatpush1.bf16.xpose.msra.mxu0 0
        %997 = vmatprep.subr.bf16.mxu0 0
        %998 = vmatpush1.bf16.xpose.msra.mxu0 0
        %999 = vmatprep.subr.bf16.mxu0 0
        %1000 = vmatpush1.bf16.xpose.msra.mxu0 0
        %1001 = vmatprep.subr.bf16.mxu0 0
        %1002 = vmatpush1.bf16.xpose.msra.mxu0 0
        %1003 = vmatprep.subr.bf16.mxu0 0
        %1004 = vmatpush1.bf16.xpose.msra.mxu0 0
        %1005 = vmatprep.subr.bf16.mxu0 0
        %1006 = vmatpush1.bf16.xpose.msra.mxu0 0
        %1007 = vmatprep.subr.bf16.mxu0 0
        %1008 = vmatpush1.bf16.xpose.msra.mxu0 0
        %1009 = vmatprep.subr.bf16.mxu0 0
        %1010 = vmatpush1.bf16.xpose.msra.mxu0 0
        %1011 = vmatprep.subr.bf16.mxu0 0
        %1012 = vmatpush1.bf16.xpose.msra.mxu0 0
        %1013 = vmatprep.subr.bf16.mxu0 0
        %1014 = vmatpush1.bf16.xpose.msra.mxu0 0
        %1015 = vmatprep.mubr.bf16.mxu0 0
        %1016 = vmatmul.mubr.bf16.gmra.mrb[0].mxu0 %v978
        %v1017 = vpop.f32.mrb[0].mxu0
        %v1018 = vadd.f32 %v739, %v1017
        %v1019 = vpop.f32.mrb[0].mxu0
        %v1020 = vpop.f32.mrb[0].mxu0
        %v1021 = vpop.f32.mrb[0].mxu0
        %1022 = vdwg.mxu0
        %v1023 = vsel %vm788, %v1018, -inf
        %1024 = vmax.xlane.f32.xlu0 %v1023
        %v1025 = vpop.xlane.xlu0 %1024
        %v1026 = vsub.f32 %v1018, %v1025
        %v1027 = vmul.f32 %v1026, 1.442695
        %v1028 = vpow.pop %v1027
        %v1029 = vsel %vm788, %v1028, 0.0
        %1030 = vadd.xlane.f32.xlu0 %v1029
        %v1031 = vpop.xlane.xlu0 %1030
        %v1032 = vrcp.pop %v1031
        %v1033 = vmul.f32 %v1028, %v1032
        %v1034 = vpack.c.bf16 %v1033, %v1033
        %1035 = vrot.lane.b32.xlu0 %v731, 64
        %v1036 = vpop.permute.xlu0 %1035
        %v1038 = vsel %vm788, %v1034, 0
        %v1041 = vsel %vm804, %v1036, 0
        %1043 = vmatprep.subr.bf16.mxu0 0
        %1044 = vmatpush1.bf16.msra.mxu0 %v1041
        %1045 = vmatprep.subr.bf16.mxu0 0
        %1046 = vmatpush1.bf16.msra.mxu0 0
        %1047 = vmatprep.subr.bf16.mxu0 0
        %1048 = vmatpush1.bf16.msra.mxu0 0
        %1049 = vmatprep.subr.bf16.mxu0 0
        %1050 = vmatpush1.bf16.msra.mxu0 0
        %1051 = vmatprep.subr.bf16.mxu0 0
        %1052 = vmatpush1.bf16.msra.mxu0 0
        %1053 = vmatprep.subr.bf16.mxu0 0
        %1054 = vmatpush1.bf16.msra.mxu0 0
        %1055 = vmatprep.subr.bf16.mxu0 0
        %1056 = vmatpush1.bf16.msra.mxu0 0
        %1057 = vmatprep.subr.bf16.mxu0 0
        %1058 = vmatpush1.bf16.msra.mxu0 0
        %1059 = vmatprep.subr.bf16.mxu0 0
        %1060 = vmatpush1.bf16.msra.mxu0 0
        %1061 = vmatprep.subr.bf16.mxu0 0
        %1062 = vmatpush1.bf16.msra.mxu0 0
        %1063 = vmatprep.subr.bf16.mxu0 0
        %1064 = vmatpush1.bf16.msra.mxu0 0
        %1065 = vmatprep.subr.bf16.mxu0 0
        %1066 = vmatpush1.bf16.msra.mxu0 0
        %1067 = vmatprep.subr.bf16.mxu0 0
        %1068 = vmatpush1.bf16.msra.mxu0 0
        %1069 = vmatprep.subr.bf16.mxu0 0
        %1070 = vmatpush1.bf16.msra.mxu0 0
        %1071 = vmatprep.subr.bf16.mxu0 0
        %1072 = vmatpush1.bf16.msra.mxu0 0
        %1073 = vmatprep.subr.bf16.mxu0 0
        %1074 = vmatpush1.bf16.msra.mxu0 0
        %1075 = vmatprep.mubr.bf16.mxu0 0
        %1076 = vmatmul.mubr.bf16.gmra.mrb[0].mxu0 %v1038
        %v1077 = vpop.f32.mrb[0].mxu0
        %v1078 = vadd.f32 0.0, %v1077
        %v1079 = vpop.f32.mrb[0].mxu0
        %v1080 = vpop.f32.mrb[0].mxu0
        %v1081 = vpop.f32.mrb[0].mxu0
        %1082 = vdwg.mxu0
        %v1083 = vpack.c.bf16 %v1078, %v1078
        %v1085 = vunpack.c.l.b16 %v1083
        %v1086 = vpack.c.b16 %v1085, %v1085
        %1087 = vrot.lane.b32.xlu0 %v1086, 64
        %v1088 = vpop.permute.xlu0 %1087
        %vm1090 = vcmask 781824
        %1091 = vst.msk [vmem:[#allocation2] sm:$0xf] %vm1090, %v1088
        %1092 = vrot.lane.b32.xlu0 %v729, 32
        %v1093 = vpop.permute.xlu0 %1092
        %1094 = vrot.lane.b32.xlu0 %v730, 32
        %v1095 = vpop.permute.xlu0 %1094
        %v1097 = vsel %vm741, %v1093, 0
        %v1100 = vsel %vm741, %v1095, 0
        %1102 = vmatprep.subr.bf16.mxu0 0
        %1103 = vmatpush1.bf16.xpose.msra.mxu0 %v1100
        %1104 = vmatprep.subr.bf16.mxu0 0
        %1105 = vmatpush1.bf16.xpose.msra.mxu0 0
        %1106 = vmatprep.subr.bf16.mxu0 0
        %1107 = vmatpush1.bf16.xpose.msra.mxu0 0
        %1108 = vmatprep.subr.bf16.mxu0 0
        %1109 = vmatpush1.bf16.xpose.msra.mxu0 0
        %1110 = vmatprep.subr.bf16.mxu0 0
        %1111 = vmatpush1.bf16.xpose.msra.mxu0 0
        %1112 = vmatprep.subr.bf16.mxu0 0
        %1113 = vmatpush1.bf16.xpose.msra.mxu0 0
        %1114 = vmatprep.subr.bf16.mxu0 0
        %1115 = vmatpush1.bf16.xpose.msra.mxu0 0
        %1116 = vmatprep.subr.bf16.mxu0 0
        %1117 = vmatpush1.bf16.xpose.msra.mxu0 0
        %1118 = vmatprep.subr.bf16.mxu0 0
        %1119 = vmatpush1.bf16.xpose.msra.mxu0 0
        %1120 = vmatprep.subr.bf16.mxu0 0
        %1121 = vmatpush1.bf16.xpose.msra.mxu0 0
        %1122 = vmatprep.subr.bf16.mxu0 0
        %1123 = vmatpush1.bf16.xpose.msra.mxu0 0
        %1124 = vmatprep.subr.bf16.mxu0 0
        %1125 = vmatpush1.bf16.xpose.msra.mxu0 0
        %1126 = vmatprep.subr.bf16.mxu0 0
        %1127 = vmatpush1.bf16.xpose.msra.mxu0 0
        %1128 = vmatprep.subr.bf16.mxu0 0
        %1129 = vmatpush1.bf16.xpose.msra.mxu0 0
        %1130 = vmatprep.subr.bf16.mxu0 0
        %1131 = vmatpush1.bf16.xpose.msra.mxu0 0
        %1132 = vmatprep.subr.bf16.mxu0 0
        %1133 = vmatpush1.bf16.xpose.msra.mxu0 0
        %1134 = vmatprep.mubr.bf16.mxu0 0
        %1135 = vmatmul.mubr.bf16.gmra.mrb[0].mxu0 %v1097
        %v1136 = vpop.f32.mrb[0].mxu0
        %v1137 = vadd.f32 %v739, %v1136
        %v1138 = vpop.f32.mrb[0].mxu0
        %v1139 = vpop.f32.mrb[0].mxu0
        %v1140 = vpop.f32.mrb[0].mxu0
        %1141 = vdwg.mxu0
        %v1142 = vsel %vm788, %v1137, -inf
        %1143 = vmax.xlane.f32.xlu0 %v1142
        %v1144 = vpop.xlane.xlu0 %1143
        %v1145 = vsub.f32 %v1137, %v1144
        %v1146 = vmul.f32 %v1145, 1.442695
        %v1147 = vpow.pop %v1146
        %v1148 = vsel %vm788, %v1147, 0.0
        %1149 = vadd.xlane.f32.xlu0 %v1148
        %v1150 = vpop.xlane.xlu0 %1149
        %v1151 = vrcp.pop %v1150
        %v1152 = vmul.f32 %v1147, %v1151
        %v1153 = vpack.c.bf16 %v1152, %v1152
        %1154 = vrot.lane.b32.xlu0 %v731, 32
        %v1155 = vpop.permute.xlu0 %1154
        %v1157 = vsel %vm788, %v1153, 0
        %v1160 = vsel %vm804, %v1155, 0
        %1162 = vmatprep.subr.bf16.mxu0 0
        %1163 = vmatpush1.bf16.msra.mxu0 %v1160
        %1164 = vmatprep.subr.bf16.mxu0 0
        %1165 = vmatpush1.bf16.msra.mxu0 0
        %1166 = vmatprep.subr.bf16.mxu0 0
        %1167 = vmatpush1.bf16.msra.mxu0 0
        %1168 = vmatprep.subr.bf16.mxu0 0
        %1169 = vmatpush1.bf16.msra.mxu0 0
        %1170 = vmatprep.subr.bf16.mxu0 0
        %1171 = vmatpush1.bf16.msra.mxu0 0
        %1172 = vmatprep.subr.bf16.mxu0 0
        %1173 = vmatpush1.bf16.msra.mxu0 0
        %1174 = vmatprep.subr.bf16.mxu0 0
        %1175 = vmatpush1.bf16.msra.mxu0 0
        %1176 = vmatprep.subr.bf16.mxu0 0
        %1177 = vmatpush1.bf16.msra.mxu0 0
        %1178 = vmatprep.subr.bf16.mxu0 0
        %1179 = vmatpush1.bf16.msra.mxu0 0
        %1180 = vmatprep.subr.bf16.mxu0 0
        %1181 = vmatpush1.bf16.msra.mxu0 0
        %1182 = vmatprep.subr.bf16.mxu0 0
        %1183 = vmatpush1.bf16.msra.mxu0 0
        %1184 = vmatprep.subr.bf16.mxu0 0
        %1185 = vmatpush1.bf16.msra.mxu0 0
        %1186 = vmatprep.subr.bf16.mxu0 0
        %1187 = vmatpush1.bf16.msra.mxu0 0
        %1188 = vmatprep.subr.bf16.mxu0 0
        %1189 = vmatpush1.bf16.msra.mxu0 0
        %1190 = vmatprep.subr.bf16.mxu0 0
        %1191 = vmatpush1.bf16.msra.mxu0 0
        %1192 = vmatprep.subr.bf16.mxu0 0
        %1193 = vmatpush1.bf16.msra.mxu0 0
        %1194 = vmatprep.mubr.bf16.mxu0 0
        %1195 = vmatmul.mubr.bf16.gmra.mrb[0].mxu0 %v1157
        %v1196 = vpop.f32.mrb[0].mxu0
        %v1197 = vadd.f32 0.0, %v1196
        %v1198 = vpop.f32.mrb[0].mxu0
        %v1199 = vpop.f32.mrb[0].mxu0
        %v1200 = vpop.f32.mrb[0].mxu0
        %1201 = vdwg.mxu0
        %v1202 = vpack.c.bf16 %v1197, %v1197
        %v1204 = vunpack.c.l.b16 %v1202
        %v1205 = vpack.c.b16 %v1204, %v1204
        %1206 = vrot.lane.b32.xlu0 %v1205, 96
        %v1207 = vpop.permute.xlu0 %1206
        %vm1209 = vcmask 1044224
        %1210 = vst.msk [vmem:[#allocation2] sm:$0xf] %vm1209, %v1207
        %v1211 = vld [vmem:[#allocation2] sm:$0xf]
        %v1212 = vld [vmem:[#allocation10] sm:$0xf]
        %v1213 = vld [vmem:[#allocation10 + $0x4] sm:$0xf]
        %v1214 = vld [vmem:[#allocation10 + $0x8] sm:$0xf]
        %v1215 = vld [vmem:[#allocation10 + $0xc] sm:$0xf]
        %v1216 = vld [vmem:[#allocation10 + $0x10] sm:$0xf]
        %v1217 = vld [vmem:[#allocation10 + $0x14] sm:$0xf]
        %v1218 = vld [vmem:[#allocation10 + $0x18] sm:$0xf]
        %v1219 = vld [vmem:[#allocation10 + $0x1c] sm:$0xf]
        %v1220 = vld [vmem:[#allocation10 + $0x20] sm:$0xf]
        %v1221 = vld [vmem:[#allocation10 + $0x24] sm:$0xf]
        %v1222 = vld [vmem:[#allocation10 + $0x28] sm:$0xf]
        %v1223 = vld [vmem:[#allocation10 + $0x2c] sm:$0xf]
        %v1224 = vld [vmem:[#allocation10 + $0x30] sm:$0xf]
        %v1225 = vld [vmem:[#allocation10 + $0x34] sm:$0xf]
        %v1226 = vld [vmem:[#allocation10 + $0x38] sm:$0xf]
        %v1227 = vld [vmem:[#allocation10 + $0x3c] sm:$0xf]
        %v1244 = vunpack.c.l.b16 %v1212
        %v1245 = vunpack.c.l.b16 %v1213
        %v1246 = vunpack.c.l.b16 %v1214
        %v1247 = vunpack.c.l.b16 %v1215
        %v1248 = vunpack.c.l.b16 %v1216
        %v1249 = vunpack.c.l.b16 %v1217
        %v1250 = vunpack.c.l.b16 %v1218
        %v1251 = vunpack.c.l.b16 %v1219
        %v1252 = vunpack.c.l.b16 %v1220
        %v1253 = vunpack.c.l.b16 %v1221
        %v1254 = vunpack.c.l.b16 %v1222
        %v1255 = vunpack.c.l.b16 %v1223
        %v1256 = vunpack.c.l.b16 %v1224
        %v1257 = vunpack.c.l.b16 %v1225
        %v1258 = vunpack.c.l.b16 %v1226
        %v1259 = vunpack.c.l.b16 %v1227
        %v1260 = vpack.c.b16 %v1245, %v1244
        %v1261 = vpack.c.b16 %v1247, %v1246
        %v1262 = vpack.c.b16 %v1249, %v1248
        %v1263 = vpack.c.b16 %v1251, %v1250
        %v1264 = vpack.c.b16 %v1253, %v1252
        %v1265 = vpack.c.b16 %v1255, %v1254
        %v1266 = vpack.c.b16 %v1257, %v1256
        %v1267 = vpack.c.b16 %v1259, %v1258
        %1276 = vmatprep.subr.bf16.mxu0 0
        %1277 = vmatpush1.bf16.msra.mxu0 %v1260
        %1278 = vmatprep.subr.bf16.mxu0 0
        %1279 = vmatpush1.bf16.msra.mxu0 %v1261
        %1280 = vmatprep.subr.bf16.mxu0 0
        %1281 = vmatpush1.bf16.msra.mxu0 %v1262
        %1282 = vmatprep.subr.bf16.mxu0 0
        %1283 = vmatpush1.bf16.msra.mxu0 %v1263
        %1284 = vmatprep.subr.bf16.mxu0 0
        %1285 = vmatpush1.bf16.msra.mxu0 %v1264
        %1286 = vmatprep.subr.bf16.mxu0 0
        %1287 = vmatpush1.bf16.msra.mxu0 %v1265
        %1288 = vmatprep.subr.bf16.mxu0 0
        %1289 = vmatpush1.bf16.msra.mxu0 %v1266
        %1290 = vmatprep.subr.bf16.mxu0 0
        %1291 = vmatpush1.bf16.msra.mxu0 %v1267
        %1292 = vmatprep.subr.bf16.mxu0 0
        %1293 = vmatpush1.bf16.msra.mxu0 0
        %1294 = vmatprep.subr.bf16.mxu0 0
        %1295 = vmatpush1.bf16.msra.mxu0 0
        %1296 = vmatprep.subr.bf16.mxu0 0
        %1297 = vmatpush1.bf16.msra.mxu0 0
        %1298 = vmatprep.subr.bf16.mxu0 0
        %1299 = vmatpush1.bf16.msra.mxu0 0
        %1300 = vmatprep.subr.bf16.mxu0 0
        %1301 = vmatpush1.bf16.msra.mxu0 0
        %1302 = vmatprep.subr.bf16.mxu0 0
        %1303 = vmatpush1.bf16.msra.mxu0 0
        %1304 = vmatprep.subr.bf16.mxu0 0
        %1305 = vmatpush1.bf16.msra.mxu0 0
        %1306 = vmatprep.subr.bf16.mxu0 0
        %1307 = vmatpush1.bf16.msra.mxu0 0
        %1308 = vmatprep.mubr.bf16.mxu0 0
        %1309 = vmatmul.mubr.bf16.gmra.mrb[0].mxu0 %v1211
        %v1310 = vpop.f32.mrb[0].mxu0
        %v1311 = vadd.f32 0.0, %v1310
        %v1312 = vpop.f32.mrb[0].mxu0
        %v1313 = vpop.f32.mrb[0].mxu0
        %v1314 = vpop.f32.mrb[0].mxu0
        %1315 = vdwg.mxu0
        %v1316 = vadd.f32 %v464, %v1311
        %v1317 = vld [vmem:[%s5] sm:$0x1]
        %v1319 = vlaneseq
        %v1320 = vshrl.u32 %v1319, 7
        %v1321 = vsub.s32 0, %v1320
        %v1322 = vrot.slane %v1317, %v1321
        %v1324 = vadd.f32 %v1316, %v1322
        %1325 = vadd.xlane.f32.xlu0 %v1324
        %v1326 = vpop.xlane.xlu0 %1325
        %v1327 = vmul.f32 %v1326, 0.0078125
        %v1328 = vsub.f32 %v1324, %v1327
        %v1329 = vmul.f32 %v1328, %v1328
        %1330 = vadd.xlane.f32.xlu0 %v1329
        %v1331 = vpop.xlane.xlu0 %1330
        %v1332 = vmul.f32 %v1331, 0.007874016
        %v1333 = vrsqrt.pop %v1332
        %v1334 = vmul.f32 %v1332, %v1333
        %vm1335 = vcmp.eq.f32.partialorder %v1332, inf
        %v1336 = vsel %vm1335, %v1332, %v1334
        %vm1337 = vcmp.eq.f32.partialorder %v1332, 0.0
        %v1338 = vand.u32 %v1332, 2147483648
        %v1339 = vsel %vm1337, %v1338, %v1336
        %v1340 = vadd.f32 %v1339, 1e-06
        %v1341 = vrcp.pop %v1340
        %v1342 = vstv %s462
        %v1343 = vmul.f32 %v1342, %v1328
        %v1344 = vmul.f32 %v1343, %v1341
        %v1345 = vstv %s463
        %v1346 = vadd.f32 %v1344, %v1345
        %v1347 = vpack.c.bf16 %v1346, %v1346
        %v1348 = vld [vmem:[#allocation11] sm:$0xff]
        %v1349 = vld [vmem:[#allocation11 + $0x8] sm:$0xff]
        %v1350 = vld [vmem:[#allocation11 + $0x10] sm:$0xff]
        %v1351 = vld [vmem:[#allocation11 + $0x18] sm:$0xff]
        %v1352 = vld [vmem:[#allocation11 + $0x20] sm:$0xff]
        %v1353 = vld [vmem:[#allocation11 + $0x28] sm:$0xff]
        %v1354 = vld [vmem:[#allocation11 + $0x30] sm:$0xff]
        %v1355 = vld [vmem:[#allocation11 + $0x38] sm:$0xff]
        %v1356 = vld [vmem:[#allocation11 + $0x40] sm:$0xff]
        %v1357 = vld [vmem:[#allocation11 + $0x48] sm:$0xff]
        %v1358 = vld [vmem:[#allocation11 + $0x50] sm:$0xff]
        %v1359 = vld [vmem:[#allocation11 + $0x58] sm:$0xff]
        %v1360 = vld [vmem:[#allocation11 + $0x60] sm:$0xff]
        %v1361 = vld [vmem:[#allocation11 + $0x68] sm:$0xff]
        %v1362 = vld [vmem:[#allocation11 + $0x70] sm:$0xff]
        %v1363 = vld [vmem:[#allocation11 + $0x78] sm:$0xff]
        %v1364 = vld [vmem:[%s7] sm:$0x3]
        %v1366 = vlaneseq
        %v1367 = vshrl.u32 %v1366, 7
        %v1368 = vsub.s32 0, %v1367
        %v1369 = vrot.slane %v1364, %v1368
        %v1370 = vlaneseq
        %v1371 = vshrl.u32 %v1370, 7
        %v1372 = vsub.s32 1, %v1371
        %v1373 = vrot.slane %v1364, %v1372
        %v1392 = vunpack.c.l.b16 %v1348
        %v1393 = vunpack.c.h.b16 %v1348
        %v1394 = vunpack.c.l.b16 %v1349
        %v1395 = vunpack.c.h.b16 %v1349
        %v1396 = vunpack.c.l.b16 %v1350
        %v1397 = vunpack.c.h.b16 %v1350
        %v1398 = vunpack.c.l.b16 %v1351
        %v1399 = vunpack.c.h.b16 %v1351
        %v1400 = vunpack.c.l.b16 %v1352
        %v1401 = vunpack.c.h.b16 %v1352
        %v1402 = vunpack.c.l.b16 %v1353
        %v1403 = vunpack.c.h.b16 %v1353
        %v1404 = vunpack.c.l.b16 %v1354
        %v1405 = vunpack.c.h.b16 %v1354
        %v1406 = vunpack.c.l.b16 %v1355
        %v1407 = vunpack.c.h.b16 %v1355
        %v1408 = vunpack.c.l.b16 %v1356
        %v1409 = vunpack.c.h.b16 %v1356
        %v1410 = vunpack.c.l.b16 %v1357
        %v1411 = vunpack.c.h.b16 %v1357
        %v1412 = vunpack.c.l.b16 %v1358
        %v1413 = vunpack.c.h.b16 %v1358
        %v1414 = vunpack.c.l.b16 %v1359
        %v1415 = vunpack.c.h.b16 %v1359
        %v1416 = vunpack.c.l.b16 %v1360
        %v1417 = vunpack.c.h.b16 %v1360
        %v1418 = vunpack.c.l.b16 %v1361
        %v1419 = vunpack.c.h.b16 %v1361
        %v1420 = vunpack.c.l.b16 %v1362
        %v1421 = vunpack.c.h.b16 %v1362
        %v1422 = vunpack.c.l.b16 %v1363
        %v1423 = vunpack.c.h.b16 %v1363
        %v1424 = vpack.c.b16 %v1394, %v1392
        %v1425 = vpack.c.b16 %v1395, %v1393
        %v1426 = vpack.c.b16 %v1398, %v1396
        %v1427 = vpack.c.b16 %v1399, %v1397
        %v1428 = vpack.c.b16 %v1402, %v1400
        %v1429 = vpack.c.b16 %v1403, %v1401
        %v1430 = vpack.c.b16 %v1406, %v1404
        %v1431 = vpack.c.b16 %v1407, %v1405
        %v1432 = vpack.c.b16 %v1410, %v1408
        %v1433 = vpack.c.b16 %v1411, %v1409
        %v1434 = vpack.c.b16 %v1414, %v1412
        %v1435 = vpack.c.b16 %v1415, %v1413
        %v1436 = vpack.c.b16 %v1418, %v1416
        %v1437 = vpack.c.b16 %v1419, %v1417
        %v1438 = vpack.c.b16 %v1422, %v1420
        %v1439 = vpack.c.b16 %v1423, %v1421
        %1456 = vmatprep.subr.bf16.mxu0 %v1425
        %1457 = vmatpush1.bf16.msra.mxu0 %v1424
        %1458 = vmatprep.subr.bf16.mxu0 %v1427
        %1459 = vmatpush1.bf16.msra.mxu0 %v1426
        %1460 = vmatprep.subr.bf16.mxu0 %v1429
        %1461 = vmatpush1.bf16.msra.mxu0 %v1428
        %1462 = vmatprep.subr.bf16.mxu0 %v1431
        %1463 = vmatpush1.bf16.msra.mxu0 %v1430
        %1464 = vmatprep.subr.bf16.mxu0 %v1433
        %1465 = vmatpush1.bf16.msra.mxu0 %v1432
        %1466 = vmatprep.subr.bf16.mxu0 %v1435
        %1467 = vmatpush1.bf16.msra.mxu0 %v1434
        %1468 = vmatprep.subr.bf16.mxu0 %v1437
        %1469 = vmatpush1.bf16.msra.mxu0 %v1436
        %1470 = vmatprep.subr.bf16.mxu0 %v1439
        %1471 = vmatpush1.bf16.msra.mxu0 %v1438
        %1472 = vmatprep.subr.bf16.mxu0 0
        %1473 = vmatpush1.bf16.msra.mxu0 0
        %1474 = vmatprep.subr.bf16.mxu0 0
        %1475 = vmatpush1.bf16.msra.mxu0 0
        %1476 = vmatprep.subr.bf16.mxu0 0
        %1477 = vmatpush1.bf16.msra.mxu0 0
        %1478 = vmatprep.subr.bf16.mxu0 0
        %1479 = vmatpush1.bf16.msra.mxu0 0
        %1480 = vmatprep.subr.bf16.mxu0 0
        %1481 = vmatpush1.bf16.msra.mxu0 0
        %1482 = vmatprep.subr.bf16.mxu0 0
        %1483 = vmatpush1.bf16.msra.mxu0 0
        %1484 = vmatprep.subr.bf16.mxu0 0
        %1485 = vmatpush1.bf16.msra.mxu0 0
        %1486 = vmatprep.subr.bf16.mxu0 0
        %1487 = vmatpush1.bf16.msra.mxu0 0
        %1488 = vmatprep.mubr.bf16.mxu0 0
        %1489 = vmatmul.mubr.bf16.gmra.mrb[0].mxu0 %v1347
        %v1490 = vpop.f32.mrb[0].mxu0
        %v1491 = vadd.f32 %v1369, %v1490
        %v1492 = vpop.f32.mrb[0].mxu0
        %v1493 = vadd.f32 %v1373, %v1492
        %v1494 = vpop.f32.mrb[0].mxu0
        %v1495 = vpop.f32.mrb[0].mxu0
        %1496 = vdwg.mxu0
        %v1497 = vmax.f32 %v1491, 0.0
        %v1498 = vmax.f32 %v1493, 0.0
        %v1499 = vpack.c.bf16 %v1497, %v1497
        %v1500 = vpack.c.bf16 %v1498, %v1498
        %v1501 = vld [vmem:[#allocation13] sm:$0xf]
        %v1502 = vld [vmem:[#allocation13 + $0x4] sm:$0xf]
        %v1503 = vld [vmem:[#allocation13 + $0x8] sm:$0xf]
        %v1504 = vld [vmem:[#allocation13 + $0xc] sm:$0xf]
        %v1505 = vld [vmem:[#allocation13 + $0x10] sm:$0xf]
        %v1506 = vld [vmem:[#allocation13 + $0x14] sm:$0xf]
        %v1507 = vld [vmem:[#allocation13 + $0x18] sm:$0xf]
        %v1508 = vld [vmem:[#allocation13 + $0x1c] sm:$0xf]
        %v1509 = vld [vmem:[#allocation13 + $0x20] sm:$0xf]
        %v1510 = vld [vmem:[#allocation13 + $0x24] sm:$0xf]
        %v1511 = vld [vmem:[#allocation13 + $0x28] sm:$0xf]
        %v1512 = vld [vmem:[#allocation13 + $0x2c] sm:$0xf]
        %v1513 = vld [vmem:[#allocation13 + $0x30] sm:$0xf]
        %v1514 = vld [vmem:[#allocation13 + $0x34] sm:$0xf]
        %v1515 = vld [vmem:[#allocation13 + $0x38] sm:$0xf]
        %v1516 = vld [vmem:[#allocation13 + $0x3c] sm:$0xf]
        %v1517 = vld [vmem:[#allocation13 + $0x40] sm:$0xf]
        %v1518 = vld [vmem:[#allocation13 + $0x44] sm:$0xf]
        %v1519 = vld [vmem:[#allocation13 + $0x48] sm:$0xf]
        %v1520 = vld [vmem:[#allocation13 + $0x4c] sm:$0xf]
        %v1521 = vld [vmem:[#allocation13 + $0x50] sm:$0xf]
        %v1522 = vld [vmem:[#allocation13 + $0x54] sm:$0xf]
        %v1523 = vld [vmem:[#allocation13 + $0x58] sm:$0xf]
        %v1524 = vld [vmem:[#allocation13 + $0x5c] sm:$0xf]
        %v1525 = vld [vmem:[#allocation13 + $0x60] sm:$0xf]
        %v1526 = vld [vmem:[#allocation13 + $0x64] sm:$0xf]
        %v1527 = vld [vmem:[#allocation13 + $0x68] sm:$0xf]
        %v1528 = vld [vmem:[#allocation13 + $0x6c] sm:$0xf]
        %v1529 = vld [vmem:[#allocation13 + $0x70] sm:$0xf]
        %v1530 = vld [vmem:[#allocation13 + $0x74] sm:$0xf]
        %v1531 = vld [vmem:[#allocation13 + $0x78] sm:$0xf]
        %v1532 = vld [vmem:[#allocation13 + $0x7c] sm:$0xf]
        %v1533 = vld [vmem:[%s9] sm:$0x1]
        %v1535 = vlaneseq
        %v1536 = vshrl.u32 %v1535, 7
        %v1537 = vsub.s32 0, %v1536
        %v1538 = vrot.slane %v1533, %v1537
        %v1572 = vunpack.c.l.b16 %v1501
        %v1573 = vunpack.c.l.b16 %v1502
        %v1574 = vunpack.c.l.b16 %v1503
        %v1575 = vunpack.c.l.b16 %v1504
        %v1576 = vunpack.c.l.b16 %v1505
        %v1577 = vunpack.c.l.b16 %v1506
        %v1578 = vunpack.c.l.b16 %v1507
        %v1579 = vunpack.c.l.b16 %v1508
        %v1580 = vunpack.c.l.b16 %v1509
        %v1581 = vunpack.c.l.b16 %v1510
        %v1582 = vunpack.c.l.b16 %v1511
        %v1583 = vunpack.c.l.b16 %v1512
        %v1584 = vunpack.c.l.b16 %v1513
        %v1585 = vunpack.c.l.b16 %v1514
        %v1586 = vunpack.c.l.b16 %v1515
        %v1587 = vunpack.c.l.b16 %v1516
        %v1588 = vunpack.c.l.b16 %v1517
        %v1589 = vunpack.c.l.b16 %v1518
        %v1590 = vunpack.c.l.b16 %v1519
        %v1591 = vunpack.c.l.b16 %v1520
        %v1592 = vunpack.c.l.b16 %v1521
        %v1593 = vunpack.c.l.b16 %v1522
        %v1594 = vunpack.c.l.b16 %v1523
        %v1595 = vunpack.c.l.b16 %v1524
        %v1596 = vunpack.c.l.b16 %v1525
        %v1597 = vunpack.c.l.b16 %v1526
        %v1598 = vunpack.c.l.b16 %v1527
        %v1599 = vunpack.c.l.b16 %v1528
        %v1600 = vunpack.c.l.b16 %v1529
        %v1601 = vunpack.c.l.b16 %v1530
        %v1602 = vunpack.c.l.b16 %v1531
        %v1603 = vunpack.c.l.b16 %v1532
        %v1604 = vpack.c.b16 %v1573, %v1572
        %v1605 = vpack.c.b16 %v1575, %v1574
        %v1606 = vpack.c.b16 %v1577, %v1576
        %v1607 = vpack.c.b16 %v1579, %v1578
        %v1608 = vpack.c.b16 %v1581, %v1580
        %v1609 = vpack.c.b16 %v1583, %v1582
        %v1610 = vpack.c.b16 %v1585, %v1584
        %v1611 = vpack.c.b16 %v1587, %v1586
        %v1612 = vpack.c.b16 %v1589, %v1588
        %v1613 = vpack.c.b16 %v1591, %v1590
        %v1614 = vpack.c.b16 %v1593, %v1592
        %v1615 = vpack.c.b16 %v1595, %v1594
        %v1616 = vpack.c.b16 %v1597, %v1596
        %v1617 = vpack.c.b16 %v1599, %v1598
        %v1618 = vpack.c.b16 %v1601, %v1600
        %v1619 = vpack.c.b16 %v1603, %v1602
        %1636 = vmatprep.subr.bf16.mxu0 0
        %1637 = vmatpush1.bf16.msra.mxu0 %v1604
        %1638 = vmatprep.subr.bf16.mxu0 0
        %1639 = vmatpush1.bf16.msra.mxu0 %v1605
        %1640 = vmatprep.subr.bf16.mxu0 0
        %1641 = vmatpush1.bf16.msra.mxu0 %v1606
        %1642 = vmatprep.subr.bf16.mxu0 0
        %1643 = vmatpush1.bf16.msra.mxu0 %v1607
        %1644 = vmatprep.subr.bf16.mxu0 0
        %1645 = vmatpush1.bf16.msra.mxu0 %v1608
        %1646 = vmatprep.subr.bf16.mxu0 0
        %1647 = vmatpush1.bf16.msra.mxu0 %v1609
        %1648 = vmatprep.subr.bf16.mxu0 0
        %1649 = vmatpush1.bf16.msra.mxu0 %v1610
        %1650 = vmatprep.subr.bf16.mxu0 0
        %1651 = vmatpush1.bf16.msra.mxu0 %v1611
        %1652 = vmatprep.subr.bf16.mxu0 0
        %1653 = vmatpush1.bf16.msra.mxu0 %v1612
        %1654 = vmatprep.subr.bf16.mxu0 0
        %1655 = vmatpush1.bf16.msra.mxu0 %v1613
        %1656 = vmatprep.subr.bf16.mxu0 0
        %1657 = vmatpush1.bf16.msra.mxu0 %v1614
        %1658 = vmatprep.subr.bf16.mxu0 0
        %1659 = vmatpush1.bf16.msra.mxu0 %v1615
        %1660 = vmatprep.subr.bf16.mxu0 0
        %1661 = vmatpush1.bf16.msra.mxu0 %v1616
        %1662 = vmatprep.subr.bf16.mxu0 0
        %1663 = vmatpush1.bf16.msra.mxu0 %v1617
        %1664 = vmatprep.subr.bf16.mxu0 0
        %1665 = vmatpush1.bf16.msra.mxu0 %v1618
        %1666 = vmatprep.subr.bf16.mxu0 0
        %1667 = vmatpush1.bf16.msra.mxu0 %v1619
        %1668 = vmatprep.mubr.bf16.mxu0 %v1500
        %1669 = vmatmul.mubr.bf16.gmra.mrb[0].mxu0 %v1499
        %v1670 = vpop.f32.mrb[0].mxu0
        %v1671 = vadd.f32 %v1538, %v1670
        %v1672 = vpop.f32.mrb[0].mxu0
        %v1673 = vpop.f32.mrb[0].mxu0
        %v1674 = vpop.f32.mrb[0].mxu0
        %1675 = vdwg.mxu0
        %v1676 = vadd.f32 %v1324, %v1671
        %1677 = vst [vmem:[%s455] sm:$0xff] %v1676
        %s1678 = sand.u32 %s258, 1
        %s1679 = scalar_lea.sflag [#allocation5], %s1678
        %s1680 = sand.u32 %s258, 1
        %s1681 = smul.addr %s1680, 8
        %s1682 = scalar_lea.vmem [#allocation14], %s1681
        // Predicated region
        $region85: #{tpu_custom_call.1} parent=59 // pred_check
          %p1683 = pneg %p268
        $region86: #{tpu_custom_call.1} parent=59 // pred_check_branch
          %1685 = sbr.rel (%p1683) target = $region88
        $region87: #{tpu_custom_call.1} parent=59 // pred_region
          %s1687 = ssub.s32 128, 128
          %1688 = vsyncadd %s1679, %s1687
          %s1689 = smul.addr %s30, 128
          %s1690 = scalar_lea.hbm %s10, %s1689
          %s1692 = sshll.u32 %s1682, 4
          %s1693 = int_to_ptr.vmem [resolvable:$true] %s1692
          %1695 = dma.vmem_to_hbm [thread:$0]  %s1693, 128, %s1690, %s1679
        $region88: #{tpu_custom_call.1} parent=59 // pred_fallthru
          _
      $region60: #{tpu_custom_call.1} parent=5 // pred_fallthru
        _
      %p1696 = scmp.le.s32.totalorder 2, %s25
      // Predicated region
      $region89: #{tpu_custom_call.1} parent=5 // pred_check
        %p1697 = pneg %p1696
      $region90: #{tpu_custom_call.1} parent=5 // pred_check_branch
        %1699 = sbr.rel (%p1697) target = $region92
      $region91: #{tpu_custom_call.1} parent=5 // pred_region
        %s1700 = ssub.s32 %s25, 2
        // Predicated region
        $region93: #{tpu_custom_call.1} parent=91 // pred_check
          %p1701 = pneg %p274
        $region94: #{tpu_custom_call.1} parent=91 // pred_check_branch
          %1703 = sbr.rel (%p1701) target = $region96
        $region95: #{tpu_custom_call.1} parent=91 // pred_region
          %s1704 = sand.u32 %s259, 1
          %s1705 = scalar_lea.sflag [#allocation5], %s1704
          %s1706 = sand.u32 %s259, 1
          %s1707 = smul.addr %s1706, 8
          %s1708 = scalar_lea.vmem [#allocation14], %s1707
          %1709 = dma.done %s1705, 128
        $region96: #{tpu_custom_call.1} parent=91 // pred_fallthru
          _
      $region92: #{tpu_custom_call.1} parent=5 // pred_fallthru
        _
    $region6: #{tpu_custom_call.1} parent=1 // loop_footer
      %s29 = sadd.s32 1, %s25
    $region7: #{tpu_custom_call.1} parent=1 // loop_footer_branch
      %24 = sbr.rel target = $region3
    $region8: #{tpu_custom_call.1} parent=1 // loop_exit
      _
    %1710 = vsyncpa [#allocation4], 1
    %s1711 = scalar_lea.sflag [#allocation4], 1
    %1712 = vsyncpa %s1711, 1
    %1713 = vsyncpa [#allocation9], 1
    %1714 = vsyncpa [#allocation12], 1
    %1715 = vsyncpa [#allocation5], 1
    %s1716 = scalar_lea.sflag [#allocation5], 1
    %1717 = vsyncpa %s1716, 1
    %1718 = vsyncpa [#allocation6], 1
    %s1719 = scalar_lea.sflag [#allocation6], 1
    %1720 = vsyncpa %s1719, 1

</llo_original>
